<compile_context>
chip_gen: v6e
topology: v6e:2x2x1
jax: 0.10.0
libtpu: 0.0.40
codegen_flags: <defaults>
</compile_context>

<pallas_src>
import functools
import math

import jax
import jax.numpy as jnp
from jax import lax
from jax.experimental import pallas as pl
from jax.experimental.pallas import tpu as pltpu


def _round_up(x, m):
    return ((x + m - 1) // m) * m


# -----------------------------------------------------------------------------
# Kernels.  Activation buffers use the "EXT" layout: per batch element a
# (C, E) bf16 buffer where lane index e = S + h*Wp + w holds the value at
# padded spatial coordinate (h, w) of the (Hp, Wp) zero-padded image, and all
# other lanes (flat extension of S lanes on each side, plus the padding ring)
# are zero.  S = p*(Wp+1), so every local / dilated tap of every valid output
# position is a static, in-bounds lane-offset slice of the buffer.
# -----------------------------------------------------------------------------
def _conv1x1_ext_kernel(x_ref, w_ref, b_ref, m_ref, o_ref, *, S, L):
    """input_conv: 1x1 conv over the EXT buffer, pad ring re-zeroed."""
    x = x_ref[:, S:S + L]                                     # (Cin, L) bf16
    acc = jnp.dot(w_ref[...], x, preferred_element_type=jnp.float32)
    res = (acc + b_ref[...]) * m_ref[...]                     # pad ring -> 0
    o_ref[...] = jnp.zeros_like(o_ref)
    o_ref[:, S:S + L] = res.astype(o_ref.dtype)


def _stage_compute(x_ref, w_ref, b_ref, m_ref, *, shifts, S, L):
    """relu(BN(local(x) - context(x))) on the valid region, 0 on the pad ring."""
    cout = w_ref.shape[1]
    acc = jnp.zeros((cout, L), jnp.float32)
    for t, s in enumerate(shifts):                            # 18 static taps
        xt = x_ref[:, S + s:S + s + L]                        # (C, L) shifted view
        acc = acc + jnp.dot(w_ref[t], xt, preferred_element_type=jnp.float32)
    return jnp.maximum(acc + b_ref[...], 0.0) * m_ref[...]    # (Cout, L) f32


def _ccl_stage_kernel(x_ref, w_ref, b_ref, m_ref, o_ref, *, shifts, S, L):
    res = _stage_compute(x_ref, w_ref, b_ref, m_ref, shifts=shifts, S=S, L=L)
    o_ref[...] = jnp.zeros_like(o_ref)
    o_ref[:, S:S + L] = res.astype(o_ref.dtype)


def _ccl_final_kernel(x3_ref, x1_ref, x2_ref, w_ref, b_ref, m_ref,
                      wo_ref, bo_ref, o_ref, *, shifts, S, L):
    """4th CCL stage fused with the 1x1 output_conv over the 4-way fusion."""
    res4 = _stage_compute(x3_ref, w_ref, b_ref, m_ref, shifts=shifts, S=S, L=L)
    out = jnp.dot(wo_ref[0], x1_ref[:, S:S + L],
                  preferred_element_type=jnp.float32)
    out = out + jnp.dot(wo_ref[1], x2_ref[:, S:S + L],
                        preferred_element_type=jnp.float32)
    out = out + jnp.dot(wo_ref[2], x3_ref[:, S:S + L],
                        preferred_element_type=jnp.float32)
    out = out + jnp.dot(wo_ref[3], res4.astype(jnp.bfloat16),
                        preferred_element_type=jnp.float32)
    o_ref[...] = out + bo_ref[...]


# -----------------------------------------------------------------------------
# Parameters (deterministic), eval-mode BN folded into the stage weights.
# -----------------------------------------------------------------------------
def build_ccl_params(in_planes, out_planes, rate, seed=1):
    key = jax.random.PRNGKey(seed)

    def nxt(shape, std):
        nonlocal key
        key, sub = jax.random.split(key)
        return std * jax.random.normal(sub, shape, jnp.float32)

    def conv_p(cin, cout, k):
        fan = cin * k * k
        return nxt((cout, cin, k, k), 1.0 / math.sqrt(fan)), nxt((cout,), 0.01)

    w_in, b_in = conv_p(in_planes, out_planes, 1)
    w_out, b_out = conv_p(out_planes * 4, out_planes, 1)
    w_loc, b_loc = conv_p(out_planes, out_planes, 3)
    w_ctx, b_ctx = conv_p(out_planes, out_planes, 3)

    # eval-mode BatchNorm running statistics, shared by all 4 stages
    gamma = 1.0 + nxt((out_planes,), 0.1)
    beta = nxt((out_planes,), 0.1)
    mean = nxt((out_planes,), 0.05)
    var = 0.5 + jnp.abs(nxt((out_planes,), 0.1))
    s = gamma / jnp.sqrt(var + 1e-5)

    C = out_planes
    # Fused stage weights: 18 per-tap (Cout, Cin) matrices.  Local taps
    # (dilation 1) first, then context taps (dilation `rate`), row-major over
    # (ki, kj) -- must match the shift enumeration in ccl_forward.  BN scale
    # `s` is folded per output row; the context branch is negated.
    taps = []
    for sign, w3 in ((1.0, w_loc), (-1.0, w_ctx)):
        for ki in range(3):
            for kj in range(3):
                taps.append(sign * s[:, None] * w3[:, :, ki, kj])
    w_stage = jnp.stack(taps, axis=0).astype(jnp.bfloat16)          # (18, C, C)
    b_stage = (s * (b_loc - b_ctx - mean) + beta).reshape(C, 1)

    params = dict(
        rate=rate, in_planes=in_planes, out_planes=out_planes,
        w_in=w_in.reshape(C, in_planes).astype(jnp.bfloat16),
        b_in=b_in.reshape(C, 1),
        w_stage=w_stage,
        b_stage=b_stage,
        # (Cout, 4*C, 1, 1) 1x1 weights -> (4, Cout, C): one matrix per stage
        w_out=w_out.reshape(C, 4, C).transpose(1, 0, 2).astype(jnp.bfloat16),
        b_out=b_out.reshape(C, 1),
    )
    raw = dict(w_in=w_in, b_in=b_in, w_out=w_out, b_out=b_out,
               w_loc=w_loc, b_loc=b_loc, w_ctx=w_ctx, b_ctx=b_ctx,
               gamma=gamma, beta=beta, mean=mean, var=var)
    return params, raw


# -----------------------------------------------------------------------------
# CCL forward (public interface NCHW)
# -----------------------------------------------------------------------------
def ccl_forward(x_nchw, params):
    rate = params["rate"]
    C = params["out_planes"]
    Cin = params["in_planes"]
    N, cx, H, W = x_nchw.shape
    assert cx == Cin

    p = max(1, rate)
    Hp, Wp = H + 2 * p, W + 2 * p
    L = Hp * Wp                       # flattened padded-image length
    S = p * (Wp + 1)                  # flat extension covering the largest tap shift
    E = _round_up(L + 2 * S, 128)     # lane-dense EXT buffer length

    # tap shift list -- MUST match the weight stacking order in build_ccl_params
    shifts = tuple(dil * (ki - 1) * Wp + dil * (kj - 1)
                   for dil in (1, rate) for ki in range(3) for kj in range(3))

    # validity mask over the padded (Hp, Wp) grid (1 inside, 0 on the pad ring)
    lidx = jnp.arange(L)
    hh, ww = lidx // Wp, lidx % Wp
    valid = (hh >= p) & (hh < p + H) & (ww >= p) & (ww < p + W)
    mask = valid.astype(jnp.float32)[None, :]                       # (1, L)

    # Raw input -> EXT layout (one small boundary copy; everything downstream
    # flows kernel -> kernel with no glue ops).
    xpad = jnp.pad(x_nchw.astype(jnp.float32), ((0, 0), (0, 0), (p, p), (p, p)))
    x_ext = jnp.pad(xpad.reshape(N, Cin, L),
                    ((0, 0), (0, 0), (S, E - L - S))).astype(jnp.bfloat16)

    cparams = pltpu.CompilerParams(dimension_semantics=("parallel",))

    def ext_spec(c):
        return pl.BlockSpec((None, c, E), lambda b: (b, 0, 0))

    w_spec = pl.BlockSpec((18, C, C), lambda b: (0, 0, 0))
    wo_spec = pl.BlockSpec((4, C, C), lambda b: (0, 0, 0))
    bias_spec = pl.BlockSpec((C, 1), lambda b: (0, 0))
    mask_spec = pl.BlockSpec((1, L), lambda b: (0, 0))

    # 1) input_conv (1x1) -> EXT feature buffer
    y0 = pl.pallas_call(
        functools.partial(_conv1x1_ext_kernel, S=S, L=L),
        out_shape=jax.ShapeDtypeStruct((N, C, E), jnp.bfloat16),
        grid=(N,),
        in_specs=[ext_spec(Cin),
                  pl.BlockSpec((C, Cin), lambda b: (0, 0)),
                  bias_spec, mask_spec],
        out_specs=ext_spec(C),
        compiler_params=cparams,
    )(x_ext, params["w_in"], params["b_in"], mask)

    # 2) three CCL stages (the 4th is fused into the final kernel below)
    stage = pl.pallas_call(
        functools.partial(_ccl_stage_kernel, shifts=shifts, S=S, L=L),
        out_shape=jax.ShapeDtypeStruct((N, C, E), jnp.bfloat16),
        grid=(N,),
        in_specs=[ext_spec(C), w_spec, bias_spec, mask_spec],
        out_specs=ext_spec(C),
        compiler_params=cparams,
    )
    f1 = stage(y0, params["w_stage"], params["b_stage"], mask)
    f2 = stage(f1, params["w_stage"], params["b_stage"], mask)
    f3 = stage(f2, params["w_stage"], params["b_stage"], mask)

    # 3) 4th stage + output_conv fused: ccl_4 and the channel-concat fusion
    #    buffer never touch HBM.
    out_flat = pl.pallas_call(
        functools.partial(_ccl_final_kernel, shifts=shifts, S=S, L=L),
        out_shape=jax.ShapeDtypeStruct((N, C, L), jnp.float32),
        grid=(N,),
        in_specs=[ext_spec(C), ext_spec(C), ext_spec(C),
                  w_spec, bias_spec, mask_spec, wo_spec, bias_spec],
        out_specs=pl.BlockSpec((None, C, L), lambda b: (b, 0, 0)),
        compiler_params=cparams,
    )(f3, f1, f2, params["w_stage"], params["b_stage"], mask,
      params["w_out"], params["b_out"])

    # one strided slice at the public boundary: drop the padding ring
    out = out_flat.reshape(N, C, Hp, Wp)[:, :, p:p + H, p:p + W]
    return out


# -----------------------------------------------------------------------------
# Pure-JAX f32 reference (eval-mode BN), used only for a tolerance check.
# -----------------------------------------------------------------------------
def ccl_reference(x, raw, rate):
    def conv(x, w, b, dil, pad):
        y = lax.conv_general_dilated(
            x, w, window_strides=(1, 1),
            padding=((pad, pad), (pad, pad)),
            rhs_dilation=(dil, dil),
            dimension_numbers=("NCHW", "OIHW", "NCHW"))
        return y + b[None, :, None, None]

    s = raw["gamma"] / jnp.sqrt(raw["var"] + 1e-5)

    def bn(z):
        return (s[None, :, None, None] * (z - raw["mean"][None, :, None, None])
                + raw["beta"][None, :, None, None])

    cur = conv(x, raw["w_in"], raw["b_in"], 1, 0)
    feats = []
    for _ in range(4):
        z = (conv(cur, raw["w_loc"], raw["b_loc"], 1, 1)
             - conv(cur, raw["w_ctx"], raw["b_ctx"], rate, rate))
        cur = jnp.maximum(bn(z), 0.0)
        feats.append(cur)
    fusion = jnp.concatenate(feats, axis=1)
    return conv(fusion, raw["w_out"], raw["b_out"], 1, 0)


# -----------------------------------------------------------------------------
if __name__ == "__main__":
    in_planes, out_planes, rate = 4, 8, 2
    params, raw = build_ccl_params(in_planes, out_planes, rate, seed=1)

    x = jax.random.normal(jax.random.PRNGKey(0), (2, in_planes, 16, 16),
                          jnp.float32)

    fwd = jax.jit(functools.partial(ccl_forward, params=params))
    out = jax.block_until_ready(fwd(x))

    assert out.shape == (2, out_planes, 16, 16), out.shape
    assert bool(jnp.all(jnp.isfinite(out)))

    # Pallas path uses bf16 operands with f32 accumulation through 6 fused
    # GEMM stages, so compare against the f32 reference with a loose bound.
    ref = jax.block_until_ready(ccl_reference(x, raw, rate))
    err = float(jnp.max(jnp.abs(out - ref)))
    assert err < 0.3, f"max abs error vs reference too large: {err}"

    print("KERNEL_OK")
</pallas_src>

<mosaic_0001>
module attributes {stable_mosaic.version = 11 : i64} {
  func.func @_conv1x1_ext_kernel(%arg0: i32, %arg1: memref<1x4x512xbf16, #tpu.memory_space<vmem>>, %arg2: memref<8x4xbf16, #tpu.memory_space<vmem>>, %arg3: memref<8x1xf32, #tpu.memory_space<vmem>>, %arg4: memref<1x400xf32, #tpu.memory_space<vmem>>, %arg5: memref<1x8x512xbf16, #tpu.memory_space<vmem>>) attributes {dimension_semantics = [#tpu.dimension_semantics<parallel>], iteration_bounds = array<i64: 2>, scalar_prefetch = 0 : i64, scratch_operands = 0 : i64, tpu.core_type = #tpu.core_type<tc>, window_params = [{transform_indices = @transform_0, window_bounds = array<i64: 1, 4, 512>}, {pipeline_mode = #tpu.pipeline_mode<synchronous>, transform_indices = @transform_1, window_bounds = array<i64: 8, 4>}, {pipeline_mode = #tpu.pipeline_mode<synchronous>, transform_indices = @transform_2, window_bounds = array<i64: 8, 1>}, {pipeline_mode = #tpu.pipeline_mode<synchronous>, transform_indices = @transform_3, window_bounds = array<i64: 1, 400>}, {transform_indices = @transform_4, window_bounds = array<i64: 1, 8, 512>}]} {
    %c0 = arith.constant 0 : index
    %c0_0 = arith.constant 0 : index
    %c42 = arith.constant 42 : index
    %0 = vector.load %arg1[%c0, %c0_0, %c42] : memref<1x4x512xbf16, #tpu.memory_space<vmem>>, vector<1x4x400xbf16>
    %1 = vector.shape_cast %0 : vector<1x4x400xbf16> to vector<4x400xbf16>
    %c0_1 = arith.constant 0 : index
    %c0_2 = arith.constant 0 : index
    %2 = vector.load %arg2[%c0_1, %c0_2] : memref<8x4xbf16, #tpu.memory_space<vmem>>, vector<8x4xbf16>
    %cst = arith.constant dense<0.000000e+00> : vector<8x400xf32>
    %3 = tpu.matmul %2, %1, %cst {dimension_numbers = #tpu.dot_dimension_numbers<[1], [0], [0], [1], [0, 0, 1, 1], [], []>} : vector<8x4xbf16>, vector<4x400xbf16>, vector<8x400xf32> -> vector<8x400xf32>
    %c0_3 = arith.constant 0 : index
    %c0_4 = arith.constant 0 : index
    %4 = vector.load %arg3[%c0_3, %c0_4] : memref<8x1xf32, #tpu.memory_space<vmem>>, vector<8x1xf32>
    %5 = vector.broadcast %4 : vector<8x1xf32> to vector<8x400xf32>
    %6 = arith.addf %3, %5 : vector<8x400xf32>
    %c0_5 = arith.constant 0 : index
    %c0_6 = arith.constant 0 : index
    %7 = vector.load %arg4[%c0_5, %c0_6] : memref<1x400xf32, #tpu.memory_space<vmem>>, vector<1x400xf32>
    %8 = vector.broadcast %7 : vector<1x400xf32> to vector<8x400xf32>
    %9 = arith.mulf %6, %8 : vector<8x400xf32>
    %cst_7 = arith.constant 0.000000e+00 : bf16
    %10 = vector.broadcast %cst_7 : bf16 to vector<8x512xbf16>
    %c0_8 = arith.constant 0 : index
    %c0_9 = arith.constant 0 : index
    %c0_10 = arith.constant 0 : index
    %11 = vector.load %arg5[%c0_8, %c0_9, %c0_10] : memref<1x8x512xbf16, #tpu.memory_space<vmem>>, vector<1x8x512xbf16>
    %12 = vector.shape_cast %11 : vector<1x8x512xbf16> to vector<8x512xbf16>
    %13 = vector.shape_cast %10 : vector<8x512xbf16> to vector<1x8x512xbf16>
    tpu.vector_store %arg5[%c0_8, %c0_9, %c0_10], %13 {strides = array<i32>} : memref<1x8x512xbf16, #tpu.memory_space<vmem>>, vector<1x8x512xbf16>,
    %14 = arith.truncf %9 : vector<8x400xf32> to vector<8x400xbf16>
    %c0_11 = arith.constant 0 : index
    %c0_12 = arith.constant 0 : index
    %c42_13 = arith.constant 42 : index
    %15 = vector.load %arg5[%c0_11, %c0_12, %c42_13] : memref<1x8x512xbf16, #tpu.memory_space<vmem>>, vector<1x8x400xbf16>
    %16 = vector.shape_cast %15 : vector<1x8x400xbf16> to vector<8x400xbf16>
    %17 = vector.shape_cast %14 : vector<8x400xbf16> to vector<1x8x400xbf16>
    tpu.vector_store %arg5[%c0_11, %c0_12, %c42_13], %17 {strides = array<i32>} : memref<1x8x512xbf16, #tpu.memory_space<vmem>>, vector<1x8x400xbf16>,
    return
  }
  func.func @transform_0(%arg0: i32) -> (i32, i32, i32) {
    %c0_i32 = arith.constant 0 : i32
    %c0_i32_0 = arith.constant 0 : i32
    %c0_i32_1 = arith.constant 0 : i32
    return %arg0, %c0_i32, %c0_i32_0 : i32, i32, i32
  }
  func.func @transform_1(%arg0: i32) -> (i32, i32) {
    %c0_i32 = arith.constant 0 : i32
    %c0_i32_0 = arith.constant 0 : i32
    %c0_i32_1 = arith.constant 0 : i32
    return %c0_i32, %c0_i32_0 : i32, i32
  }
  func.func @transform_2(%arg0: i32) -> (i32, i32) {
    %c0_i32 = arith.constant 0 : i32
    %c0_i32_0 = arith.constant 0 : i32
    %c0_i32_1 = arith.constant 0 : i32
    return %c0_i32, %c0_i32_0 : i32, i32
  }
  func.func @transform_3(%arg0: i32) -> (i32, i32) {
    %c0_i32 = arith.constant 0 : i32
    %c0_i32_0 = arith.constant 0 : i32
    %c0_i32_1 = arith.constant 0 : i32
    return %c0_i32, %c0_i32_0 : i32, i32
  }
  func.func @transform_4(%arg0: i32) -> (i32, i32, i32) {
    %c0_i32 = arith.constant 0 : i32
    %c0_i32_0 = arith.constant 0 : i32
    %c0_i32_1 = arith.constant 0 : i32
    return %arg0, %c0_i32, %c0_i32_0 : i32, i32, i32
  }
}

module attributes {stable_mosaic.version = 11 : i64} {
  func.func @_ccl_stage_kernel(%arg0: i32, %arg1: memref<1x8x512xbf16, #tpu.memory_space<vmem>>, %arg2: memref<18x8x8xbf16, #tpu.memory_space<vmem>>, %arg3: memref<8x1xf32, #tpu.memory_space<vmem>>, %arg4: memref<1x400xf32, #tpu.memory_space<vmem>>, %arg5: memref<1x8x512xbf16, #tpu.memory_space<vmem>>) attributes {dimension_semantics = [#tpu.dimension_semantics<parallel>], iteration_bounds = array<i64: 2>, scalar_prefetch = 0 : i64, scratch_operands = 0 : i64, tpu.core_type = #tpu.core_type<tc>, window_params = [{transform_indices = @transform_0, window_bounds = array<i64: 1, 8, 512>}, {pipeline_mode = #tpu.pipeline_mode<synchronous>, transform_indices = @transform_1, window_bounds = array<i64: 18, 8, 8>}, {pipeline_mode = #tpu.pipeline_mode<synchronous>, transform_indices = @transform_2, window_bounds = array<i64: 8, 1>}, {pipeline_mode = #tpu.pipeline_mode<synchronous>, transform_indices = @transform_3, window_bounds = array<i64: 1, 400>}, {transform_indices = @transform_4, window_bounds = array<i64: 1, 8, 512>}]} {
    %cst = arith.constant 0.000000e+00 : f32
    %0 = vector.broadcast %cst : f32 to vector<8x400xf32>
    %c0 = arith.constant 0 : index
    %c0_0 = arith.constant 0 : index
    %c21 = arith.constant 21 : index
    %1 = vector.load %arg1[%c0, %c0_0, %c21] : memref<1x8x512xbf16, #tpu.memory_space<vmem>>, vector<1x8x400xbf16>
    %2 = vector.shape_cast %1 : vector<1x8x400xbf16> to vector<8x400xbf16>
    %c0_1 = arith.constant 0 : index
    %c0_2 = arith.constant 0 : index
    %c0_3 = arith.constant 0 : index
    %3 = vector.load %arg2[%c0_1, %c0_2, %c0_3] : memref<18x8x8xbf16, #tpu.memory_space<vmem>>, vector<1x8x8xbf16>
    %4 = vector.shape_cast %3 : vector<1x8x8xbf16> to vector<8x8xbf16>
    %cst_4 = arith.constant dense<0.000000e+00> : vector<8x400xf32>
    %5 = tpu.matmul %4, %2, %cst_4 {dimension_numbers = #tpu.dot_dimension_numbers<[1], [0], [0], [1], [0, 0, 1, 1], [], []>} : vector<8x8xbf16>, vector<8x400xbf16>, vector<8x400xf32> -> vector<8x400xf32>
    %6 = arith.addf %0, %5 : vector<8x400xf32>
    %c0_5 = arith.constant 0 : index
    %c0_6 = arith.constant 0 : index
    %c22 = arith.constant 22 : index
    %7 = vector.load %arg1[%c0_5, %c0_6, %c22] : memref<1x8x512xbf16, #tpu.memory_space<vmem>>, vector<1x8x400xbf16>
    %8 = vector.shape_cast %7 : vector<1x8x400xbf16> to vector<8x400xbf16>
    %c1 = arith.constant 1 : index
    %c0_7 = arith.constant 0 : index
    %c0_8 = arith.constant 0 : index
    %9 = vector.load %arg2[%c1, %c0_7, %c0_8] : memref<18x8x8xbf16, #tpu.memory_space<vmem>>, vector<1x8x8xbf16>
    %10 = vector.shape_cast %9 : vector<1x8x8xbf16> to vector<8x8xbf16>
    %cst_9 = arith.constant dense<0.000000e+00> : vector<8x400xf32>
    %11 = tpu.matmul %10, %8, %cst_9 {dimension_numbers = #tpu.dot_dimension_numbers<[1], [0], [0], [1], [0, 0, 1, 1], [], []>} : vector<8x8xbf16>, vector<8x400xbf16>, vector<8x400xf32> -> vector<8x400xf32>
    %12 = arith.addf %6, %11 : vector<8x400xf32>
    %c0_10 = arith.constant 0 : index
    %c0_11 = arith.constant 0 : index
    %c23 = arith.constant 23 : index
    %13 = vector.load %arg1[%c0_10, %c0_11, %c23] : memref<1x8x512xbf16, #tpu.memory_space<vmem>>, vector<1x8x400xbf16>
    %14 = vector.shape_cast %13 : vector<1x8x400xbf16> to vector<8x400xbf16>
    %c2 = arith.constant 2 : index
    %c0_12 = arith.constant 0 : index
    %c0_13 = arith.constant 0 : index
    %15 = vector.load %arg2[%c2, %c0_12, %c0_13] : memref<18x8x8xbf16, #tpu.memory_space<vmem>>, vector<1x8x8xbf16>
    %16 = vector.shape_cast %15 : vector<1x8x8xbf16> to vector<8x8xbf16>
    %cst_14 = arith.constant dense<0.000000e+00> : vector<8x400xf32>
    %17 = tpu.matmul %16, %14, %cst_14 {dimension_numbers = #tpu.dot_dimension_numbers<[1], [0], [0], [1], [0, 0, 1, 1], [], []>} : vector<8x8xbf16>, vector<8x400xbf16>, vector<8x400xf32> -> vector<8x400xf32>
    %18 = arith.addf %12, %17 : vector<8x400xf32>
    %c0_15 = arith.constant 0 : index
    %c0_16 = arith.constant 0 : index
    %c41 = arith.constant 41 : index
    %19 = vector.load %arg1[%c0_15, %c0_16, %c41] : memref<1x8x512xbf16, #tpu.memory_space<vmem>>, vector<1x8x400xbf16>
    %20 = vector.shape_cast %19 : vector<1x8x400xbf16> to vector<8x400xbf16>
    %c3 = arith.constant 3 : index
    %c0_17 = arith.constant 0 : index
    %c0_18 = arith.constant 0 : index
    %21 = vector.load %arg2[%c3, %c0_17, %c0_18] : memref<18x8x8xbf16, #tpu.memory_space<vmem>>, vector<1x8x8xbf16>
    %22 = vector.shape_cast %21 : vector<1x8x8xbf16> to vector<8x8xbf16>
    %cst_19 = arith.constant dense<0.000000e+00> : vector<8x400xf32>
    %23 = tpu.matmul %22, %20, %cst_19 {dimension_numbers = #tpu.dot_dimension_numbers<[1], [0], [0], [1], [0, 0, 1, 1], [], []>} : vector<8x8xbf16>, vector<8x400xbf16>, vector<8x400xf32> -> vector<8x400xf32>
    %24 = arith.addf %18, %23 : vector<8x400xf32>
    %c0_20 = arith.constant 0 : index
    %c0_21 = arith.constant 0 : index
    %c42 = arith.constant 42 : index
    %25 = vector.load %arg1[%c0_20, %c0_21, %c42] : memref<1x8x512xbf16, #tpu.memory_space<vmem>>, vector<1x8x400xbf16>
    %26 = vector.shape_cast %25 : vector<1x8x400xbf16> to vector<8x400xbf16>
    %c4 = arith.constant 4 : index
    %c0_22 = arith.constant 0 : index
    %c0_23 = arith.constant 0 : index
    %27 = vector.load %arg2[%c4, %c0_22, %c0_23] : memref<18x8x8xbf16, #tpu.memory_space<vmem>>, vector<1x8x8xbf16>
    %28 = vector.shape_cast %27 : vector<1x8x8xbf16> to vector<8x8xbf16>
    %cst_24 = arith.constant dense<0.000000e+00> : vector<8x400xf32>
    %29 = tpu.matmul %28, %26, %cst_24 {dimension_numbers = #tpu.dot_dimension_numbers<[1], [0], [0], [1], [0, 0, 1, 1], [], []>} : vector<8x8xbf16>, vector<8x400xbf16>, vector<8x400xf32> -> vector<8x400xf32>
    %30 = arith.addf %24, %29 : vector<8x400xf32>
    %c0_25 = arith.constant 0 : index
    %c0_26 = arith.constant 0 : index
    %c43 = arith.constant 43 : index
    %31 = vector.load %arg1[%c0_25, %c0_26, %c43] : memref<1x8x512xbf16, #tpu.memory_space<vmem>>, vector<1x8x400xbf16>
    %32 = vector.shape_cast %31 : vector<1x8x400xbf16> to vector<8x400xbf16>
    %c5 = arith.constant 5 : index
    %c0_27 = arith.constant 0 : index
    %c0_28 = arith.constant 0 : index
    %33 = vector.load %arg2[%c5, %c0_27, %c0_28] : memref<18x8x8xbf16, #tpu.memory_space<vmem>>, vector<1x8x8xbf16>
    %34 = vector.shape_cast %33 : vector<1x8x8xbf16> to vector<8x8xbf16>
    %cst_29 = arith.constant dense<0.000000e+00> : vector<8x400xf32>
    %35 = tpu.matmul %34, %32, %cst_29 {dimension_numbers = #tpu.dot_dimension_numbers<[1], [0], [0], [1], [0, 0, 1, 1], [], []>} : vector<8x8xbf16>, vector<8x400xbf16>, vector<8x400xf32> -> vector<8x400xf32>
    %36 = arith.addf %30, %35 : vector<8x400xf32>
    %c0_30 = arith.constant 0 : index
    %c0_31 = arith.constant 0 : index
    %c61 = arith.constant 61 : index
    %37 = vector.load %arg1[%c0_30, %c0_31, %c61] : memref<1x8x512xbf16, #tpu.memory_space<vmem>>, vector<1x8x400xbf16>
    %38 = vector.shape_cast %37 : vector<1x8x400xbf16> to vector<8x400xbf16>
    %c6 = arith.constant 6 : index
    %c0_32 = arith.constant 0 : index
    %c0_33 = arith.constant 0 : index
    %39 = vector.load %arg2[%c6, %c0_32, %c0_33] : memref<18x8x8xbf16, #tpu.memory_space<vmem>>, vector<1x8x8xbf16>
    %40 = vector.shape_cast %39 : vector<1x8x8xbf16> to vector<8x8xbf16>
    %cst_34 = arith.constant dense<0.000000e+00> : vector<8x400xf32>
    %41 = tpu.matmul %40, %38, %cst_34 {dimension_numbers = #tpu.dot_dimension_numbers<[1], [0], [0], [1], [0, 0, 1, 1], [], []>} : vector<8x8xbf16>, vector<8x400xbf16>, vector<8x400xf32> -> vector<8x400xf32>
    %42 = arith.addf %36, %41 : vector<8x400xf32>
    %c0_35 = arith.constant 0 : index
    %c0_36 = arith.constant 0 : index
    %c62 = arith.constant 62 : index
    %43 = vector.load %arg1[%c0_35, %c0_36, %c62] : memref<1x8x512xbf16, #tpu.memory_space<vmem>>, vector<1x8x400xbf16>
    %44 = vector.shape_cast %43 : vector<1x8x400xbf16> to vector<8x400xbf16>
    %c7 = arith.constant 7 : index
    %c0_37 = arith.constant 0 : index
    %c0_38 = arith.constant 0 : index
    %45 = vector.load %arg2[%c7, %c0_37, %c0_38] : memref<18x8x8xbf16, #tpu.memory_space<vmem>>, vector<1x8x8xbf16>
    %46 = vector.shape_cast %45 : vector<1x8x8xbf16> to vector<8x8xbf16>
    %cst_39 = arith.constant dense<0.000000e+00> : vector<8x400xf32>
    %47 = tpu.matmul %46, %44, %cst_39 {dimension_numbers = #tpu.dot_dimension_numbers<[1], [0], [0], [1], [0, 0, 1, 1], [], []>} : vector<8x8xbf16>, vector<8x400xbf16>, vector<8x400xf32> -> vector<8x400xf32>
    %48 = arith.addf %42, %47 : vector<8x400xf32>
    %c0_40 = arith.constant 0 : index
    %c0_41 = arith.constant 0 : index
    %c63 = arith.constant 63 : index
    %49 = vector.load %arg1[%c0_40, %c0_41, %c63] : memref<1x8x512xbf16, #tpu.memory_space<vmem>>, vector<1x8x400xbf16>
    %50 = vector.shape_cast %49 : vector<1x8x400xbf16> to vector<8x400xbf16>
    %c8 = arith.constant 8 : index
    %c0_42 = arith.constant 0 : index
    %c0_43 = arith.constant 0 : index
    %51 = vector.load %arg2[%c8, %c0_42, %c0_43] : memref<18x8x8xbf16, #tpu.memory_space<vmem>>, vector<1x8x8xbf16>
    %52 = vector.shape_cast %51 : vector<1x8x8xbf16> to vector<8x8xbf16>
    %cst_44 = arith.constant dense<0.000000e+00> : vector<8x400xf32>
    %53 = tpu.matmul %52, %50, %cst_44 {dimension_numbers = #tpu.dot_dimension_numbers<[1], [0], [0], [1], [0, 0, 1, 1], [], []>} : vector<8x8xbf16>, vector<8x400xbf16>, vector<8x400xf32> -> vector<8x400xf32>
    %54 = arith.addf %48, %53 : vector<8x400xf32>
    %c0_45 = arith.constant 0 : index
    %c0_46 = arith.constant 0 : index
    %c0_47 = arith.constant 0 : index
    %55 = vector.load %arg1[%c0_45, %c0_46, %c0_47] : memref<1x8x512xbf16, #tpu.memory_space<vmem>>, vector<1x8x400xbf16>
    %56 = vector.shape_cast %55 : vector<1x8x400xbf16> to vector<8x400xbf16>
    %c9 = arith.constant 9 : index
    %c0_48 = arith.constant 0 : index
    %c0_49 = arith.constant 0 : index
    %57 = vector.load %arg2[%c9, %c0_48, %c0_49] : memref<18x8x8xbf16, #tpu.memory_space<vmem>>, vector<1x8x8xbf16>
    %58 = vector.shape_cast %57 : vector<1x8x8xbf16> to vector<8x8xbf16>
    %cst_50 = arith.constant dense<0.000000e+00> : vector<8x400xf32>
    %59 = tpu.matmul %58, %56, %cst_50 {dimension_numbers = #tpu.dot_dimension_numbers<[1], [0], [0], [1], [0, 0, 1, 1], [], []>} : vector<8x8xbf16>, vector<8x400xbf16>, vector<8x400xf32> -> vector<8x400xf32>
    %60 = arith.addf %54, %59 : vector<8x400xf32>
    %c0_51 = arith.constant 0 : index
    %c0_52 = arith.constant 0 : index
    %c2_53 = arith.constant 2 : index
    %61 = vector.load %arg1[%c0_51, %c0_52, %c2_53] : memref<1x8x512xbf16, #tpu.memory_space<vmem>>, vector<1x8x400xbf16>
    %62 = vector.shape_cast %61 : vector<1x8x400xbf16> to vector<8x400xbf16>
    %c10 = arith.constant 10 : index
    %c0_54 = arith.constant 0 : index
    %c0_55 = arith.constant 0 : index
    %63 = vector.load %arg2[%c10, %c0_54, %c0_55] : memref<18x8x8xbf16, #tpu.memory_space<vmem>>, vector<1x8x8xbf16>
    %64 = vector.shape_cast %63 : vector<1x8x8xbf16> to vector<8x8xbf16>
    %cst_56 = arith.constant dense<0.000000e+00> : vector<8x400xf32>
    %65 = tpu.matmul %64, %62, %cst_56 {dimension_numbers = #tpu.dot_dimension_numbers<[1], [0], [0], [1], [0, 0, 1, 1], [], []>} : vector<8x8xbf16>, vector<8x400xbf16>, vector<8x400xf32> -> vector<8x400xf32>
    %66 = arith.addf %60, %65 : vector<8x400xf32>
    %c0_57 = arith.constant 0 : index
    %c0_58 = arith.constant 0 : index
    %c4_59 = arith.constant 4 : index
    %67 = vector.load %arg1[%c0_57, %c0_58, %c4_59] : memref<1x8x512xbf16, #tpu.memory_space<vmem>>, vector<1x8x400xbf16>
    %68 = vector.shape_cast %67 : vector<1x8x400xbf16> to vector<8x400xbf16>
    %c11 = arith.constant 11 : index
    %c0_60 = arith.constant 0 : index
    %c0_61 = arith.constant 0 : index
    %69 = vector.load %arg2[%c11, %c0_60, %c0_61] : memref<18x8x8xbf16, #tpu.memory_space<vmem>>, vector<1x8x8xbf16>
    %70 = vector.shape_cast %69 : vector<1x8x8xbf16> to vector<8x8xbf16>
    %cst_62 = arith.constant dense<0.000000e+00> : vector<8x400xf32>
    %71 = tpu.matmul %70, %68, %cst_62 {dimension_numbers = #tpu.dot_dimension_numbers<[1], [0], [0], [1], [0, 0, 1, 1], [], []>} : vector<8x8xbf16>, vector<8x400xbf16>, vector<8x400xf32> -> vector<8x400xf32>
    %72 = arith.addf %66, %71 : vector<8x400xf32>
    %c0_63 = arith.constant 0 : index
    %c0_64 = arith.constant 0 : index
    %c40 = arith.constant 40 : index
    %73 = vector.load %arg1[%c0_63, %c0_64, %c40] : memref<1x8x512xbf16, #tpu.memory_space<vmem>>, vector<1x8x400xbf16>
    %74 = vector.shape_cast %73 : vector<1x8x400xbf16> to vector<8x400xbf16>
    %c12 = arith.constant 12 : index
    %c0_65 = arith.constant 0 : index
    %c0_66 = arith.constant 0 : index
    %75 = vector.load %arg2[%c12, %c0_65, %c0_66] : memref<18x8x8xbf16, #tpu.memory_space<vmem>>, vector<1x8x8xbf16>
    %76 = vector.shape_cast %75 : vector<1x8x8xbf16> to vector<8x8xbf16>
    %cst_67 = arith.constant dense<0.000000e+00> : vector<8x400xf32>
    %77 = tpu.matmul %76, %74, %cst_67 {dimension_numbers = #tpu.dot_dimension_numbers<[1], [0], [0], [1], [0, 0, 1, 1], [], []>} : vector<8x8xbf16>, vector<8x400xbf16>, vector<8x400xf32> -> vector<8x400xf32>
    %78 = arith.addf %72, %77 : vector<8x400xf32>
    %c0_68 = arith.constant 0 : index
    %c0_69 = arith.constant 0 : index
    %c42_70 = arith.constant 42 : index
    %79 = vector.load %arg1[%c0_68, %c0_69, %c42_70] : memref<1x8x512xbf16, #tpu.memory_space<vmem>>, vector<1x8x400xbf16>
    %80 = vector.shape_cast %79 : vector<1x8x400xbf16> to vector<8x400xbf16>
    %c13 = arith.constant 13 : index
    %c0_71 = arith.constant 0 : index
    %c0_72 = arith.constant 0 : index
    %81 = vector.load %arg2[%c13, %c0_71, %c0_72] : memref<18x8x8xbf16, #tpu.memory_space<vmem>>, vector<1x8x8xbf16>
    %82 = vector.shape_cast %81 : vector<1x8x8xbf16> to vector<8x8xbf16>
    %cst_73 = arith.constant dense<0.000000e+00> : vector<8x400xf32>
    %83 = tpu.matmul %82, %80, %cst_73 {dimension_numbers = #tpu.dot_dimension_numbers<[1], [0], [0], [1], [0, 0, 1, 1], [], []>} : vector<8x8xbf16>, vector<8x400xbf16>, vector<8x400xf32> -> vector<8x400xf32>
    %84 = arith.addf %78, %83 : vector<8x400xf32>
    %c0_74 = arith.constant 0 : index
    %c0_75 = arith.constant 0 : index
    %c44 = arith.constant 44 : index
    %85 = vector.load %arg1[%c0_74, %c0_75, %c44] : memref<1x8x512xbf16, #tpu.memory_space<vmem>>, vector<1x8x400xbf16>
    %86 = vector.shape_cast %85 : vector<1x8x400xbf16> to vector<8x400xbf16>
    %c14 = arith.constant 14 : index
    %c0_76 = arith.constant 0 : index
    %c0_77 = arith.constant 0 : index
    %87 = vector.load %arg2[%c14, %c0_76, %c0_77] : memref<18x8x8xbf16, #tpu.memory_space<vmem>>, vector<1x8x8xbf16>
    %88 = vector.shape_cast %87 : vector<1x8x8xbf16> to vector<8x8xbf16>
    %cst_78 = arith.constant dense<0.000000e+00> : vector<8x400xf32>
    %89 = tpu.matmul %88, %86, %cst_78 {dimension_numbers = #tpu.dot_dimension_numbers<[1], [0], [0], [1], [0, 0, 1, 1], [], []>} : vector<8x8xbf16>, vector<8x400xbf16>, vector<8x400xf32> -> vector<8x400xf32>
    %90 = arith.addf %84, %89 : vector<8x400xf32>
    %c0_79 = arith.constant 0 : index
    %c0_80 = arith.constant 0 : index
    %c80 = arith.constant 80 : index
    %91 = vector.load %arg1[%c0_79, %c0_80, %c80] : memref<1x8x512xbf16, #tpu.memory_space<vmem>>, vector<1x8x400xbf16>
    %92 = vector.shape_cast %91 : vector<1x8x400xbf16> to vector<8x400xbf16>
    %c15 = arith.constant 15 : index
    %c0_81 = arith.constant 0 : index
    %c0_82 = arith.constant 0 : index
    %93 = vector.load %arg2[%c15, %c0_81, %c0_82] : memref<18x8x8xbf16, #tpu.memory_space<vmem>>, vector<1x8x8xbf16>
    %94 = vector.shape_cast %93 : vector<1x8x8xbf16> to vector<8x8xbf16>
    %cst_83 = arith.constant dense<0.000000e+00> : vector<8x400xf32>
    %95 = tpu.matmul %94, %92, %cst_83 {dimension_numbers = #tpu.dot_dimension_numbers<[1], [0], [0], [1], [0, 0, 1, 1], [], []>} : vector<8x8xbf16>, vector<8x400xbf16>, vector<8x400xf32> -> vector<8x400xf32>
    %96 = arith.addf %90, %95 : vector<8x400xf32>
    %c0_84 = arith.constant 0 : index
    %c0_85 = arith.constant 0 : index
    %c82 = arith.constant 82 : index
    %97 = vector.load %arg1[%c0_84, %c0_85, %c82] : memref<1x8x512xbf16, #tpu.memory_space<vmem>>, vector<1x8x400xbf16>
    %98 = vector.shape_cast %97 : vector<1x8x400xbf16> to vector<8x400xbf16>
    %c16 = arith.constant 16 : index
    %c0_86 = arith.constant 0 : index
    %c0_87 = arith.constant 0 : index
    %99 = vector.load %arg2[%c16, %c0_86, %c0_87] : memref<18x8x8xbf16, #tpu.memory_space<vmem>>, vector<1x8x8xbf16>
    %100 = vector.shape_cast %99 : vector<1x8x8xbf16> to vector<8x8xbf16>
    %cst_88 = arith.constant dense<0.000000e+00> : vector<8x400xf32>
    %101 = tpu.matmul %100, %98, %cst_88 {dimension_numbers = #tpu.dot_dimension_numbers<[1], [0], [0], [1], [0, 0, 1, 1], [], []>} : vector<8x8xbf16>, vector<8x400xbf16>, vector<8x400xf32> -> vector<8x400xf32>
    %102 = arith.addf %96, %101 : vector<8x400xf32>
    %c0_89 = arith.constant 0 : index
    %c0_90 = arith.constant 0 : index
    %c84 = arith.constant 84 : index
    %103 = vector.load %arg1[%c0_89, %c0_90, %c84] : memref<1x8x512xbf16, #tpu.memory_space<vmem>>, vector<1x8x400xbf16>
    %104 = vector.shape_cast %103 : vector<1x8x400xbf16> to vector<8x400xbf16>
    %c17 = arith.constant 17 : index
    %c0_91 = arith.constant 0 : index
    %c0_92 = arith.constant 0 : index
    %105 = vector.load %arg2[%c17, %c0_91, %c0_92] : memref<18x8x8xbf16, #tpu.memory_space<vmem>>, vector<1x8x8xbf16>
    %106 = vector.shape_cast %105 : vector<1x8x8xbf16> to vector<8x8xbf16>
    %cst_93 = arith.constant dense<0.000000e+00> : vector<8x400xf32>
    %107 = tpu.matmul %106, %104, %cst_93 {dimension_numbers = #tpu.dot_dimension_numbers<[1], [0], [0], [1], [0, 0, 1, 1], [], []>} : vector<8x8xbf16>, vector<8x400xbf16>, vector<8x400xf32> -> vector<8x400xf32>
    %108 = arith.addf %102, %107 : vector<8x400xf32>
    %c0_94 = arith.constant 0 : index
    %c0_95 = arith.constant 0 : index
    %109 = vector.load %arg3[%c0_94, %c0_95] : memref<8x1xf32, #tpu.memory_space<vmem>>, vector<8x1xf32>
    %110 = vector.broadcast %109 : vector<8x1xf32> to vector<8x400xf32>
    %111 = arith.addf %108, %110 : vector<8x400xf32>
    %cst_96 = arith.constant 0.000000e+00 : f32
    %112 = vector.broadcast %cst_96 : f32 to vector<8x400xf32>
    %113 = arith.maximumf %111, %112 : vector<8x400xf32>
    %c0_97 = arith.constant 0 : index
    %c0_98 = arith.constant 0 : index
    %114 = vector.load %arg4[%c0_97, %c0_98] : memref<1x400xf32, #tpu.memory_space<vmem>>, vector<1x400xf32>
    %115 = vector.broadcast %114 : vector<1x400xf32> to vector<8x400xf32>
    %116 = arith.mulf %113, %115 : vector<8x400xf32>
    %cst_99 = arith.constant 0.000000e+00 : bf16
    %117 = vector.broadcast %cst_99 : bf16 to vector<8x512xbf16>
    %c0_100 = arith.constant 0 : index
    %c0_101 = arith.constant 0 : index
    %c0_102 = arith.constant 0 : index
    %118 = vector.load %arg5[%c0_100, %c0_101, %c0_102] : memref<1x8x512xbf16, #tpu.memory_space<vmem>>, vector<1x8x512xbf16>
    %119 = vector.shape_cast %118 : vector<1x8x512xbf16> to vector<8x512xbf16>
    %120 = vector.shape_cast %117 : vector<8x512xbf16> to vector<1x8x512xbf16>
    tpu.vector_store %arg5[%c0_100, %c0_101, %c0_102], %120 {strides = array<i32>} : memref<1x8x512xbf16, #tpu.memory_space<vmem>>, vector<1x8x512xbf16>,
    %121 = arith.truncf %116 : vector<8x400xf32> to vector<8x400xbf16>
    %c0_103 = arith.constant 0 : index
    %c0_104 = arith.constant 0 : index
    %c42_105 = arith.constant 42 : index
    %122 = vector.load %arg5[%c0_103, %c0_104, %c42_105] : memref<1x8x512xbf16, #tpu.memory_space<vmem>>, vector<1x8x400xbf16>
    %123 = vector.shape_cast %122 : vector<1x8x400xbf16> to vector<8x400xbf16>
    %124 = vector.shape_cast %121 : vector<8x400xbf16> to vector<1x8x400xbf16>
    tpu.vector_store %arg5[%c0_103, %c0_104, %c42_105], %124 {strides = array<i32>} : memref<1x8x512xbf16, #tpu.memory_space<vmem>>, vector<1x8x400xbf16>,
    return
  }
  func.func @transform_0(%arg0: i32) -> (i32, i32, i32) {
    %c0_i32 = arith.constant 0 : i32
    %c0_i32_0 = arith.constant 0 : i32
    %c0_i32_1 = arith.constant 0 : i32
    return %arg0, %c0_i32, %c0_i32_0 : i32, i32, i32
  }
  func.func @transform_1(%arg0: i32) -> (i32, i32, i32) {
    %c0_i32 = arith.constant 0 : i32
    %c0_i32_0 = arith.constant 0 : i32
    %c0_i32_1 = arith.constant 0 : i32
    %c0_i32_2 = arith.constant 0 : i32
    return %c0_i32, %c0_i32_0, %c0_i32_1 : i32, i32, i32
  }
  func.func @transform_2(%arg0: i32) -> (i32, i32) {
    %c0_i32 = arith.constant 0 : i32
    %c0_i32_0 = arith.constant 0 : i32
    %c0_i32_1 = arith.constant 0 : i32
    return %c0_i32, %c0_i32_0 : i32, i32
  }
  func.func @transform_3(%arg0: i32) -> (i32, i32) {
    %c0_i32 = arith.constant 0 : i32
    %c0_i32_0 = arith.constant 0 : i32
    %c0_i32_1 = arith.constant 0 : i32
    return %c0_i32, %c0_i32_0 : i32, i32
  }
  func.func @transform_4(%arg0: i32) -> (i32, i32, i32) {
    %c0_i32 = arith.constant 0 : i32
    %c0_i32_0 = arith.constant 0 : i32
    %c0_i32_1 = arith.constant 0 : i32
    return %arg0, %c0_i32, %c0_i32_0 : i32, i32, i32
  }
}

module attributes {stable_mosaic.version = 11 : i64} {
  func.func @_ccl_final_kernel(%arg0: i32, %arg1: memref<1x8x512xbf16, #tpu.memory_space<vmem>>, %arg2: memref<1x8x512xbf16, #tpu.memory_space<vmem>>, %arg3: memref<1x8x512xbf16, #tpu.memory_space<vmem>>, %arg4: memref<18x8x8xbf16, #tpu.memory_space<vmem>>, %arg5: memref<8x1xf32, #tpu.memory_space<vmem>>, %arg6: memref<1x400xf32, #tpu.memory_space<vmem>>, %arg7: memref<4x8x8xbf16, #tpu.memory_space<vmem>>, %arg8: memref<8x1xf32, #tpu.memory_space<vmem>>, %arg9: memref<1x8x400xf32, #tpu.memory_space<vmem>>) attributes {dimension_semantics = [#tpu.dimension_semantics<parallel>], iteration_bounds = array<i64: 2>, scalar_prefetch = 0 : i64, scratch_operands = 0 : i64, tpu.core_type = #tpu.core_type<tc>, window_params = [{transform_indices = @transform_0, window_bounds = array<i64: 1, 8, 512>}, {transform_indices = @transform_1, window_bounds = array<i64: 1, 8, 512>}, {transform_indices = @transform_2, window_bounds = array<i64: 1, 8, 512>}, {pipeline_mode = #tpu.pipeline_mode<synchronous>, transform_indices = @transform_3, window_bounds = array<i64: 18, 8, 8>}, {pipeline_mode = #tpu.pipeline_mode<synchronous>, transform_indices = @transform_4, window_bounds = array<i64: 8, 1>}, {pipeline_mode = #tpu.pipeline_mode<synchronous>, transform_indices = @transform_5, window_bounds = array<i64: 1, 400>}, {pipeline_mode = #tpu.pipeline_mode<synchronous>, transform_indices = @transform_6, window_bounds = array<i64: 4, 8, 8>}, {pipeline_mode = #tpu.pipeline_mode<synchronous>, transform_indices = @transform_7, window_bounds = array<i64: 8, 1>}, {transform_indices = @transform_8, window_bounds = array<i64: 1, 8, 400>}]} {
    %cst = arith.constant 0.000000e+00 : f32
    %0 = vector.broadcast %cst : f32 to vector<8x400xf32>
    %c0 = arith.constant 0 : index
    %c0_0 = arith.constant 0 : index
    %c21 = arith.constant 21 : index
    %1 = vector.load %arg1[%c0, %c0_0, %c21] : memref<1x8x512xbf16, #tpu.memory_space<vmem>>, vector<1x8x400xbf16>
    %2 = vector.shape_cast %1 : vector<1x8x400xbf16> to vector<8x400xbf16>
    %c0_1 = arith.constant 0 : index
    %c0_2 = arith.constant 0 : index
    %c0_3 = arith.constant 0 : index
    %3 = vector.load %arg4[%c0_1, %c0_2, %c0_3] : memref<18x8x8xbf16, #tpu.memory_space<vmem>>, vector<1x8x8xbf16>
    %4 = vector.shape_cast %3 : vector<1x8x8xbf16> to vector<8x8xbf16>
    %cst_4 = arith.constant dense<0.000000e+00> : vector<8x400xf32>
    %5 = tpu.matmul %4, %2, %cst_4 {dimension_numbers = #tpu.dot_dimension_numbers<[1], [0], [0], [1], [0, 0, 1, 1], [], []>} : vector<8x8xbf16>, vector<8x400xbf16>, vector<8x400xf32> -> vector<8x400xf32>
    %6 = arith.addf %0, %5 : vector<8x400xf32>
    %c0_5 = arith.constant 0 : index
    %c0_6 = arith.constant 0 : index
    %c22 = arith.constant 22 : index
    %7 = vector.load %arg1[%c0_5, %c0_6, %c22] : memref<1x8x512xbf16, #tpu.memory_space<vmem>>, vector<1x8x400xbf16>
    %8 = vector.shape_cast %7 : vector<1x8x400xbf16> to vector<8x400xbf16>
    %c1 = arith.constant 1 : index
    %c0_7 = arith.constant 0 : index
    %c0_8 = arith.constant 0 : index
    %9 = vector.load %arg4[%c1, %c0_7, %c0_8] : memref<18x8x8xbf16, #tpu.memory_space<vmem>>, vector<1x8x8xbf16>
    %10 = vector.shape_cast %9 : vector<1x8x8xbf16> to vector<8x8xbf16>
    %cst_9 = arith.constant dense<0.000000e+00> : vector<8x400xf32>
    %11 = tpu.matmul %10, %8, %cst_9 {dimension_numbers = #tpu.dot_dimension_numbers<[1], [0], [0], [1], [0, 0, 1, 1], [], []>} : vector<8x8xbf16>, vector<8x400xbf16>, vector<8x400xf32> -> vector<8x400xf32>
    %12 = arith.addf %6, %11 : vector<8x400xf32>
    %c0_10 = arith.constant 0 : index
    %c0_11 = arith.constant 0 : index
    %c23 = arith.constant 23 : index
    %13 = vector.load %arg1[%c0_10, %c0_11, %c23] : memref<1x8x512xbf16, #tpu.memory_space<vmem>>, vector<1x8x400xbf16>
    %14 = vector.shape_cast %13 : vector<1x8x400xbf16> to vector<8x400xbf16>
    %c2 = arith.constant 2 : index
    %c0_12 = arith.constant 0 : index
    %c0_13 = arith.constant 0 : index
    %15 = vector.load %arg4[%c2, %c0_12, %c0_13] : memref<18x8x8xbf16, #tpu.memory_space<vmem>>, vector<1x8x8xbf16>
    %16 = vector.shape_cast %15 : vector<1x8x8xbf16> to vector<8x8xbf16>
    %cst_14 = arith.constant dense<0.000000e+00> : vector<8x400xf32>
    %17 = tpu.matmul %16, %14, %cst_14 {dimension_numbers = #tpu.dot_dimension_numbers<[1], [0], [0], [1], [0, 0, 1, 1], [], []>} : vector<8x8xbf16>, vector<8x400xbf16>, vector<8x400xf32> -> vector<8x400xf32>
    %18 = arith.addf %12, %17 : vector<8x400xf32>
    %c0_15 = arith.constant 0 : index
    %c0_16 = arith.constant 0 : index
    %c41 = arith.constant 41 : index
    %19 = vector.load %arg1[%c0_15, %c0_16, %c41] : memref<1x8x512xbf16, #tpu.memory_space<vmem>>, vector<1x8x400xbf16>
    %20 = vector.shape_cast %19 : vector<1x8x400xbf16> to vector<8x400xbf16>
    %c3 = arith.constant 3 : index
    %c0_17 = arith.constant 0 : index
    %c0_18 = arith.constant 0 : index
    %21 = vector.load %arg4[%c3, %c0_17, %c0_18] : memref<18x8x8xbf16, #tpu.memory_space<vmem>>, vector<1x8x8xbf16>
    %22 = vector.shape_cast %21 : vector<1x8x8xbf16> to vector<8x8xbf16>
    %cst_19 = arith.constant dense<0.000000e+00> : vector<8x400xf32>
    %23 = tpu.matmul %22, %20, %cst_19 {dimension_numbers = #tpu.dot_dimension_numbers<[1], [0], [0], [1], [0, 0, 1, 1], [], []>} : vector<8x8xbf16>, vector<8x400xbf16>, vector<8x400xf32> -> vector<8x400xf32>
    %24 = arith.addf %18, %23 : vector<8x400xf32>
    %c0_20 = arith.constant 0 : index
    %c0_21 = arith.constant 0 : index
    %c42 = arith.constant 42 : index
    %25 = vector.load %arg1[%c0_20, %c0_21, %c42] : memref<1x8x512xbf16, #tpu.memory_space<vmem>>, vector<1x8x400xbf16>
    %26 = vector.shape_cast %25 : vector<1x8x400xbf16> to vector<8x400xbf16>
    %c4 = arith.constant 4 : index
    %c0_22 = arith.constant 0 : index
    %c0_23 = arith.constant 0 : index
    %27 = vector.load %arg4[%c4, %c0_22, %c0_23] : memref<18x8x8xbf16, #tpu.memory_space<vmem>>, vector<1x8x8xbf16>
    %28 = vector.shape_cast %27 : vector<1x8x8xbf16> to vector<8x8xbf16>
    %cst_24 = arith.constant dense<0.000000e+00> : vector<8x400xf32>
    %29 = tpu.matmul %28, %26, %cst_24 {dimension_numbers = #tpu.dot_dimension_numbers<[1], [0], [0], [1], [0, 0, 1, 1], [], []>} : vector<8x8xbf16>, vector<8x400xbf16>, vector<8x400xf32> -> vector<8x400xf32>
    %30 = arith.addf %24, %29 : vector<8x400xf32>
    %c0_25 = arith.constant 0 : index
    %c0_26 = arith.constant 0 : index
    %c43 = arith.constant 43 : index
    %31 = vector.load %arg1[%c0_25, %c0_26, %c43] : memref<1x8x512xbf16, #tpu.memory_space<vmem>>, vector<1x8x400xbf16>
    %32 = vector.shape_cast %31 : vector<1x8x400xbf16> to vector<8x400xbf16>
    %c5 = arith.constant 5 : index
    %c0_27 = arith.constant 0 : index
    %c0_28 = arith.constant 0 : index
    %33 = vector.load %arg4[%c5, %c0_27, %c0_28] : memref<18x8x8xbf16, #tpu.memory_space<vmem>>, vector<1x8x8xbf16>
    %34 = vector.shape_cast %33 : vector<1x8x8xbf16> to vector<8x8xbf16>
    %cst_29 = arith.constant dense<0.000000e+00> : vector<8x400xf32>
    %35 = tpu.matmul %34, %32, %cst_29 {dimension_numbers = #tpu.dot_dimension_numbers<[1], [0], [0], [1], [0, 0, 1, 1], [], []>} : vector<8x8xbf16>, vector<8x400xbf16>, vector<8x400xf32> -> vector<8x400xf32>
    %36 = arith.addf %30, %35 : vector<8x400xf32>
    %c0_30 = arith.constant 0 : index
    %c0_31 = arith.constant 0 : index
    %c61 = arith.constant 61 : index
    %37 = vector.load %arg1[%c0_30, %c0_31, %c61] : memref<1x8x512xbf16, #tpu.memory_space<vmem>>, vector<1x8x400xbf16>
    %38 = vector.shape_cast %37 : vector<1x8x400xbf16> to vector<8x400xbf16>
    %c6 = arith.constant 6 : index
    %c0_32 = arith.constant 0 : index
    %c0_33 = arith.constant 0 : index
    %39 = vector.load %arg4[%c6, %c0_32, %c0_33] : memref<18x8x8xbf16, #tpu.memory_space<vmem>>, vector<1x8x8xbf16>
    %40 = vector.shape_cast %39 : vector<1x8x8xbf16> to vector<8x8xbf16>
    %cst_34 = arith.constant dense<0.000000e+00> : vector<8x400xf32>
    %41 = tpu.matmul %40, %38, %cst_34 {dimension_numbers = #tpu.dot_dimension_numbers<[1], [0], [0], [1], [0, 0, 1, 1], [], []>} : vector<8x8xbf16>, vector<8x400xbf16>, vector<8x400xf32> -> vector<8x400xf32>
    %42 = arith.addf %36, %41 : vector<8x400xf32>
    %c0_35 = arith.constant 0 : index
    %c0_36 = arith.constant 0 : index
    %c62 = arith.constant 62 : index
    %43 = vector.load %arg1[%c0_35, %c0_36, %c62] : memref<1x8x512xbf16, #tpu.memory_space<vmem>>, vector<1x8x400xbf16>
    %44 = vector.shape_cast %43 : vector<1x8x400xbf16> to vector<8x400xbf16>
    %c7 = arith.constant 7 : index
    %c0_37 = arith.constant 0 : index
    %c0_38 = arith.constant 0 : index
    %45 = vector.load %arg4[%c7, %c0_37, %c0_38] : memref<18x8x8xbf16, #tpu.memory_space<vmem>>, vector<1x8x8xbf16>
    %46 = vector.shape_cast %45 : vector<1x8x8xbf16> to vector<8x8xbf16>
    %cst_39 = arith.constant dense<0.000000e+00> : vector<8x400xf32>
    %47 = tpu.matmul %46, %44, %cst_39 {dimension_numbers = #tpu.dot_dimension_numbers<[1], [0], [0], [1], [0, 0, 1, 1], [], []>} : vector<8x8xbf16>, vector<8x400xbf16>, vector<8x400xf32> -> vector<8x400xf32>
    %48 = arith.addf %42, %47 : vector<8x400xf32>
    %c0_40 = arith.constant 0 : index
    %c0_41 = arith.constant 0 : index
    %c63 = arith.constant 63 : index
    %49 = vector.load %arg1[%c0_40, %c0_41, %c63] : memref<1x8x512xbf16, #tpu.memory_space<vmem>>, vector<1x8x400xbf16>
    %50 = vector.shape_cast %49 : vector<1x8x400xbf16> to vector<8x400xbf16>
    %c8 = arith.constant 8 : index
    %c0_42 = arith.constant 0 : index
    %c0_43 = arith.constant 0 : index
    %51 = vector.load %arg4[%c8, %c0_42, %c0_43] : memref<18x8x8xbf16, #tpu.memory_space<vmem>>, vector<1x8x8xbf16>
    %52 = vector.shape_cast %51 : vector<1x8x8xbf16> to vector<8x8xbf16>
    %cst_44 = arith.constant dense<0.000000e+00> : vector<8x400xf32>
    %53 = tpu.matmul %52, %50, %cst_44 {dimension_numbers = #tpu.dot_dimension_numbers<[1], [0], [0], [1], [0, 0, 1, 1], [], []>} : vector<8x8xbf16>, vector<8x400xbf16>, vector<8x400xf32> -> vector<8x400xf32>
    %54 = arith.addf %48, %53 : vector<8x400xf32>
    %c0_45 = arith.constant 0 : index
    %c0_46 = arith.constant 0 : index
    %c0_47 = arith.constant 0 : index
    %55 = vector.load %arg1[%c0_45, %c0_46, %c0_47] : memref<1x8x512xbf16, #tpu.memory_space<vmem>>, vector<1x8x400xbf16>
    %56 = vector.shape_cast %55 : vector<1x8x400xbf16> to vector<8x400xbf16>
    %c9 = arith.constant 9 : index
    %c0_48 = arith.constant 0 : index
    %c0_49 = arith.constant 0 : index
    %57 = vector.load %arg4[%c9, %c0_48, %c0_49] : memref<18x8x8xbf16, #tpu.memory_space<vmem>>, vector<1x8x8xbf16>
    %58 = vector.shape_cast %57 : vector<1x8x8xbf16> to vector<8x8xbf16>
    %cst_50 = arith.constant dense<0.000000e+00> : vector<8x400xf32>
    %59 = tpu.matmul %58, %56, %cst_50 {dimension_numbers = #tpu.dot_dimension_numbers<[1], [0], [0], [1], [0, 0, 1, 1], [], []>} : vector<8x8xbf16>, vector<8x400xbf16>, vector<8x400xf32> -> vector<8x400xf32>
    %60 = arith.addf %54, %59 : vector<8x400xf32>
    %c0_51 = arith.constant 0 : index
    %c0_52 = arith.constant 0 : index
    %c2_53 = arith.constant 2 : index
    %61 = vector.load %arg1[%c0_51, %c0_52, %c2_53] : memref<1x8x512xbf16, #tpu.memory_space<vmem>>, vector<1x8x400xbf16>
    %62 = vector.shape_cast %61 : vector<1x8x400xbf16> to vector<8x400xbf16>
    %c10 = arith.constant 10 : index
    %c0_54 = arith.constant 0 : index
    %c0_55 = arith.constant 0 : index
    %63 = vector.load %arg4[%c10, %c0_54, %c0_55] : memref<18x8x8xbf16, #tpu.memory_space<vmem>>, vector<1x8x8xbf16>
    %64 = vector.shape_cast %63 : vector<1x8x8xbf16> to vector<8x8xbf16>
    %cst_56 = arith.constant dense<0.000000e+00> : vector<8x400xf32>
    %65 = tpu.matmul %64, %62, %cst_56 {dimension_numbers = #tpu.dot_dimension_numbers<[1], [0], [0], [1], [0, 0, 1, 1], [], []>} : vector<8x8xbf16>, vector<8x400xbf16>, vector<8x400xf32> -> vector<8x400xf32>
    %66 = arith.addf %60, %65 : vector<8x400xf32>
    %c0_57 = arith.constant 0 : index
    %c0_58 = arith.constant 0 : index
    %c4_59 = arith.constant 4 : index
    %67 = vector.load %arg1[%c0_57, %c0_58, %c4_59] : memref<1x8x512xbf16, #tpu.memory_space<vmem>>, vector<1x8x400xbf16>
    %68 = vector.shape_cast %67 : vector<1x8x400xbf16> to vector<8x400xbf16>
    %c11 = arith.constant 11 : index
    %c0_60 = arith.constant 0 : index
    %c0_61 = arith.constant 0 : index
    %69 = vector.load %arg4[%c11, %c0_60, %c0_61] : memref<18x8x8xbf16, #tpu.memory_space<vmem>>, vector<1x8x8xbf16>
    %70 = vector.shape_cast %69 : vector<1x8x8xbf16> to vector<8x8xbf16>
    %cst_62 = arith.constant dense<0.000000e+00> : vector<8x400xf32>
    %71 = tpu.matmul %70, %68, %cst_62 {dimension_numbers = #tpu.dot_dimension_numbers<[1], [0], [0], [1], [0, 0, 1, 1], [], []>} : vector<8x8xbf16>, vector<8x400xbf16>, vector<8x400xf32> -> vector<8x400xf32>
    %72 = arith.addf %66, %71 : vector<8x400xf32>
    %c0_63 = arith.constant 0 : index
    %c0_64 = arith.constant 0 : index
    %c40 = arith.constant 40 : index
    %73 = vector.load %arg1[%c0_63, %c0_64, %c40] : memref<1x8x512xbf16, #tpu.memory_space<vmem>>, vector<1x8x400xbf16>
    %74 = vector.shape_cast %73 : vector<1x8x400xbf16> to vector<8x400xbf16>
    %c12 = arith.constant 12 : index
    %c0_65 = arith.constant 0 : index
    %c0_66 = arith.constant 0 : index
    %75 = vector.load %arg4[%c12, %c0_65, %c0_66] : memref<18x8x8xbf16, #tpu.memory_space<vmem>>, vector<1x8x8xbf16>
    %76 = vector.shape_cast %75 : vector<1x8x8xbf16> to vector<8x8xbf16>
    %cst_67 = arith.constant dense<0.000000e+00> : vector<8x400xf32>
    %77 = tpu.matmul %76, %74, %cst_67 {dimension_numbers = #tpu.dot_dimension_numbers<[1], [0], [0], [1], [0, 0, 1, 1], [], []>} : vector<8x8xbf16>, vector<8x400xbf16>, vector<8x400xf32> -> vector<8x400xf32>
    %78 = arith.addf %72, %77 : vector<8x400xf32>
    %c0_68 = arith.constant 0 : index
    %c0_69 = arith.constant 0 : index
    %c42_70 = arith.constant 42 : index
    %79 = vector.load %arg1[%c0_68, %c0_69, %c42_70] : memref<1x8x512xbf16, #tpu.memory_space<vmem>>, vector<1x8x400xbf16>
    %80 = vector.shape_cast %79 : vector<1x8x400xbf16> to vector<8x400xbf16>
    %c13 = arith.constant 13 : index
    %c0_71 = arith.constant 0 : index
    %c0_72 = arith.constant 0 : index
    %81 = vector.load %arg4[%c13, %c0_71, %c0_72] : memref<18x8x8xbf16, #tpu.memory_space<vmem>>, vector<1x8x8xbf16>
    %82 = vector.shape_cast %81 : vector<1x8x8xbf16> to vector<8x8xbf16>
    %cst_73 = arith.constant dense<0.000000e+00> : vector<8x400xf32>
    %83 = tpu.matmul %82, %80, %cst_73 {dimension_numbers = #tpu.dot_dimension_numbers<[1], [0], [0], [1], [0, 0, 1, 1], [], []>} : vector<8x8xbf16>, vector<8x400xbf16>, vector<8x400xf32> -> vector<8x400xf32>
    %84 = arith.addf %78, %83 : vector<8x400xf32>
    %c0_74 = arith.constant 0 : index
    %c0_75 = arith.constant 0 : index
    %c44 = arith.constant 44 : index
    %85 = vector.load %arg1[%c0_74, %c0_75, %c44] : memref<1x8x512xbf16, #tpu.memory_space<vmem>>, vector<1x8x400xbf16>
    %86 = vector.shape_cast %85 : vector<1x8x400xbf16> to vector<8x400xbf16>
    %c14 = arith.constant 14 : index
    %c0_76 = arith.constant 0 : index
    %c0_77 = arith.constant 0 : index
    %87 = vector.load %arg4[%c14, %c0_76, %c0_77] : memref<18x8x8xbf16, #tpu.memory_space<vmem>>, vector<1x8x8xbf16>
    %88 = vector.shape_cast %87 : vector<1x8x8xbf16> to vector<8x8xbf16>
    %cst_78 = arith.constant dense<0.000000e+00> : vector<8x400xf32>
    %89 = tpu.matmul %88, %86, %cst_78 {dimension_numbers = #tpu.dot_dimension_numbers<[1], [0], [0], [1], [0, 0, 1, 1], [], []>} : vector<8x8xbf16>, vector<8x400xbf16>, vector<8x400xf32> -> vector<8x400xf32>
    %90 = arith.addf %84, %89 : vector<8x400xf32>
    %c0_79 = arith.constant 0 : index
    %c0_80 = arith.constant 0 : index
    %c80 = arith.constant 80 : index
    %91 = vector.load %arg1[%c0_79, %c0_80, %c80] : memref<1x8x512xbf16, #tpu.memory_space<vmem>>, vector<1x8x400xbf16>
    %92 = vector.shape_cast %91 : vector<1x8x400xbf16> to vector<8x400xbf16>
    %c15 = arith.constant 15 : index
    %c0_81 = arith.constant 0 : index
    %c0_82 = arith.constant 0 : index
    %93 = vector.load %arg4[%c15, %c0_81, %c0_82] : memref<18x8x8xbf16, #tpu.memory_space<vmem>>, vector<1x8x8xbf16>
    %94 = vector.shape_cast %93 : vector<1x8x8xbf16> to vector<8x8xbf16>
    %cst_83 = arith.constant dense<0.000000e+00> : vector<8x400xf32>
    %95 = tpu.matmul %94, %92, %cst_83 {dimension_numbers = #tpu.dot_dimension_numbers<[1], [0], [0], [1], [0, 0, 1, 1], [], []>} : vector<8x8xbf16>, vector<8x400xbf16>, vector<8x400xf32> -> vector<8x400xf32>
    %96 = arith.addf %90, %95 : vector<8x400xf32>
    %c0_84 = arith.constant 0 : index
    %c0_85 = arith.constant 0 : index
    %c82 = arith.constant 82 : index
    %97 = vector.load %arg1[%c0_84, %c0_85, %c82] : memref<1x8x512xbf16, #tpu.memory_space<vmem>>, vector<1x8x400xbf16>
    %98 = vector.shape_cast %97 : vector<1x8x400xbf16> to vector<8x400xbf16>
    %c16 = arith.constant 16 : index
    %c0_86 = arith.constant 0 : index
    %c0_87 = arith.constant 0 : index
    %99 = vector.load %arg4[%c16, %c0_86, %c0_87] : memref<18x8x8xbf16, #tpu.memory_space<vmem>>, vector<1x8x8xbf16>
    %100 = vector.shape_cast %99 : vector<1x8x8xbf16> to vector<8x8xbf16>
    %cst_88 = arith.constant dense<0.000000e+00> : vector<8x400xf32>
    %101 = tpu.matmul %100, %98, %cst_88 {dimension_numbers = #tpu.dot_dimension_numbers<[1], [0], [0], [1], [0, 0, 1, 1], [], []>} : vector<8x8xbf16>, vector<8x400xbf16>, vector<8x400xf32> -> vector<8x400xf32>
    %102 = arith.addf %96, %101 : vector<8x400xf32>
    %c0_89 = arith.constant 0 : index
    %c0_90 = arith.constant 0 : index
    %c84 = arith.constant 84 : index
    %103 = vector.load %arg1[%c0_89, %c0_90, %c84] : memref<1x8x512xbf16, #tpu.memory_space<vmem>>, vector<1x8x400xbf16>
    %104 = vector.shape_cast %103 : vector<1x8x400xbf16> to vector<8x400xbf16>
    %c17 = arith.constant 17 : index
    %c0_91 = arith.constant 0 : index
    %c0_92 = arith.constant 0 : index
    %105 = vector.load %arg4[%c17, %c0_91, %c0_92] : memref<18x8x8xbf16, #tpu.memory_space<vmem>>, vector<1x8x8xbf16>
    %106 = vector.shape_cast %105 : vector<1x8x8xbf16> to vector<8x8xbf16>
    %cst_93 = arith.constant dense<0.000000e+00> : vector<8x400xf32>
    %107 = tpu.matmul %106, %104, %cst_93 {dimension_numbers = #tpu.dot_dimension_numbers<[1], [0], [0], [1], [0, 0, 1, 1], [], []>} : vector<8x8xbf16>, vector<8x400xbf16>, vector<8x400xf32> -> vector<8x400xf32>
    %108 = arith.addf %102, %107 : vector<8x400xf32>
    %c0_94 = arith.constant 0 : index
    %c0_95 = arith.constant 0 : index
    %109 = vector.load %arg5[%c0_94, %c0_95] : memref<8x1xf32, #tpu.memory_space<vmem>>, vector<8x1xf32>
    %110 = vector.broadcast %109 : vector<8x1xf32> to vector<8x400xf32>
    %111 = arith.addf %108, %110 : vector<8x400xf32>
    %cst_96 = arith.constant 0.000000e+00 : f32
    %112 = vector.broadcast %cst_96 : f32 to vector<8x400xf32>
    %113 = arith.maximumf %111, %112 : vector<8x400xf32>
    %c0_97 = arith.constant 0 : index
    %c0_98 = arith.constant 0 : index
    %114 = vector.load %arg6[%c0_97, %c0_98] : memref<1x400xf32, #tpu.memory_space<vmem>>, vector<1x400xf32>
    %115 = vector.broadcast %114 : vector<1x400xf32> to vector<8x400xf32>
    %116 = arith.mulf %113, %115 : vector<8x400xf32>
    %c0_99 = arith.constant 0 : index
    %c0_100 = arith.constant 0 : index
    %c0_101 = arith.constant 0 : index
    %117 = vector.load %arg7[%c0_99, %c0_100, %c0_101] : memref<4x8x8xbf16, #tpu.memory_space<vmem>>, vector<1x8x8xbf16>
    %118 = vector.shape_cast %117 : vector<1x8x8xbf16> to vector<8x8xbf16>
    %c0_102 = arith.constant 0 : index
    %c0_103 = arith.constant 0 : index
    %c42_104 = arith.constant 42 : index
    %119 = vector.load %arg2[%c0_102, %c0_103, %c42_104] : memref<1x8x512xbf16, #tpu.memory_space<vmem>>, vector<1x8x400xbf16>
    %120 = vector.shape_cast %119 : vector<1x8x400xbf16> to vector<8x400xbf16>
    %cst_105 = arith.constant dense<0.000000e+00> : vector<8x400xf32>
    %121 = tpu.matmul %118, %120, %cst_105 {dimension_numbers = #tpu.dot_dimension_numbers<[1], [0], [0], [1], [0, 0, 1, 1], [], []>} : vector<8x8xbf16>, vector<8x400xbf16>, vector<8x400xf32> -> vector<8x400xf32>
    %c1_106 = arith.constant 1 : index
    %c0_107 = arith.constant 0 : index
    %c0_108 = arith.constant 0 : index
    %122 = vector.load %arg7[%c1_106, %c0_107, %c0_108] : memref<4x8x8xbf16, #tpu.memory_space<vmem>>, vector<1x8x8xbf16>
    %123 = vector.shape_cast %122 : vector<1x8x8xbf16> to vector<8x8xbf16>
    %c0_109 = arith.constant 0 : index
    %c0_110 = arith.constant 0 : index
    %c42_111 = arith.constant 42 : index
    %124 = vector.load %arg3[%c0_109, %c0_110, %c42_111] : memref<1x8x512xbf16, #tpu.memory_space<vmem>>, vector<1x8x400xbf16>
    %125 = vector.shape_cast %124 : vector<1x8x400xbf16> to vector<8x400xbf16>
    %cst_112 = arith.constant dense<0.000000e+00> : vector<8x400xf32>
    %126 = tpu.matmul %123, %125, %cst_112 {dimension_numbers = #tpu.dot_dimension_numbers<[1], [0], [0], [1], [0, 0, 1, 1], [], []>} : vector<8x8xbf16>, vector<8x400xbf16>, vector<8x400xf32> -> vector<8x400xf32>
    %127 = arith.addf %121, %126 : vector<8x400xf32>
    %c2_113 = arith.constant 2 : index
    %c0_114 = arith.constant 0 : index
    %c0_115 = arith.constant 0 : index
    %128 = vector.load %arg7[%c2_113, %c0_114, %c0_115] : memref<4x8x8xbf16, #tpu.memory_space<vmem>>, vector<1x8x8xbf16>
    %129 = vector.shape_cast %128 : vector<1x8x8xbf16> to vector<8x8xbf16>
    %c0_116 = arith.constant 0 : index
    %c0_117 = arith.constant 0 : index
    %c42_118 = arith.constant 42 : index
    %130 = vector.load %arg1[%c0_116, %c0_117, %c42_118] : memref<1x8x512xbf16, #tpu.memory_space<vmem>>, vector<1x8x400xbf16>
    %131 = vector.shape_cast %130 : vector<1x8x400xbf16> to vector<8x400xbf16>
    %cst_119 = arith.constant dense<0.000000e+00> : vector<8x400xf32>
    %132 = tpu.matmul %129, %131, %cst_119 {dimension_numbers = #tpu.dot_dimension_numbers<[1], [0], [0], [1], [0, 0, 1, 1], [], []>} : vector<8x8xbf16>, vector<8x400xbf16>, vector<8x400xf32> -> vector<8x400xf32>
    %133 = arith.addf %127, %132 : vector<8x400xf32>
    %c3_120 = arith.constant 3 : index
    %c0_121 = arith.constant 0 : index
    %c0_122 = arith.constant 0 : index
    %134 = vector.load %arg7[%c3_120, %c0_121, %c0_122] : memref<4x8x8xbf16, #tpu.memory_space<vmem>>, vector<1x8x8xbf16>
    %135 = vector.shape_cast %134 : vector<1x8x8xbf16> to vector<8x8xbf16>
    %136 = arith.truncf %116 : vector<8x400xf32> to vector<8x400xbf16>
    %cst_123 = arith.constant dense<0.000000e+00> : vector<8x400xf32>
    %137 = tpu.matmul %135, %136, %cst_123 {dimension_numbers = #tpu.dot_dimension_numbers<[1], [0], [0], [1], [0, 0, 1, 1], [], []>} : vector<8x8xbf16>, vector<8x400xbf16>, vector<8x400xf32> -> vector<8x400xf32>
    %138 = arith.addf %133, %137 : vector<8x400xf32>
    %c0_124 = arith.constant 0 : index
    %c0_125 = arith.constant 0 : index
    %139 = vector.load %arg8[%c0_124, %c0_125] : memref<8x1xf32, #tpu.memory_space<vmem>>, vector<8x1xf32>
    %140 = vector.broadcast %139 : vector<8x1xf32> to vector<8x400xf32>
    %141 = arith.addf %138, %140 : vector<8x400xf32>
    %c0_126 = arith.constant 0 : index
    %c0_127 = arith.constant 0 : index
    %c0_128 = arith.constant 0 : index
    %142 = vector.load %arg9[%c0_126, %c0_127, %c0_128] : memref<1x8x400xf32, #tpu.memory_space<vmem>>, vector<1x8x400xf32>
    %143 = vector.shape_cast %142 : vector<1x8x400xf32> to vector<8x400xf32>
    %144 = vector.shape_cast %141 : vector<8x400xf32> to vector<1x8x400xf32>
    tpu.vector_store %arg9[%c0_126, %c0_127, %c0_128], %144 {strides = array<i32>} : memref<1x8x400xf32, #tpu.memory_space<vmem>>, vector<1x8x400xf32>,
    return
  }
  func.func @transform_0(%arg0: i32) -> (i32, i32, i32) {
    %c0_i32 = arith.constant 0 : i32
    %c0_i32_0 = arith.constant 0 : i32
    %c0_i32_1 = arith.constant 0 : i32
    return %arg0, %c0_i32, %c0_i32_0 : i32, i32, i32
  }
  func.func @transform_1(%arg0: i32) -> (i32, i32, i32) {
    %c0_i32 = arith.constant 0 : i32
    %c0_i32_0 = arith.constant 0 : i32
    %c0_i32_1 = arith.constant 0 : i32
    return %arg0, %c0_i32, %c0_i32_0 : i32, i32, i32
  }
  func.func @transform_2(%arg0: i32) -> (i32, i32, i32) {
    %c0_i32 = arith.constant 0 : i32
    %c0_i32_0 = arith.constant 0 : i32
    %c0_i32_1 = arith.constant 0 : i32
    return %arg0, %c0_i32, %c0_i32_0 : i32, i32, i32
  }
  func.func @transform_3(%arg0: i32) -> (i32, i32, i32) {
    %c0_i32 = arith.constant 0 : i32
    %c0_i32_0 = arith.constant 0 : i32
    %c0_i32_1 = arith.constant 0 : i32
    %c0_i32_2 = arith.constant 0 : i32
    return %c0_i32, %c0_i32_0, %c0_i32_1 : i32, i32, i32
  }
  func.func @transform_4(%arg0: i32) -> (i32, i32) {
    %c0_i32 = arith.constant 0 : i32
    %c0_i32_0 = arith.constant 0 : i32
    %c0_i32_1 = arith.constant 0 : i32
    return %c0_i32, %c0_i32_0 : i32, i32
  }
  func.func @transform_5(%arg0: i32) -> (i32, i32) {
    %c0_i32 = arith.constant 0 : i32
    %c0_i32_0 = arith.constant 0 : i32
    %c0_i32_1 = arith.constant 0 : i32
    return %c0_i32, %c0_i32_0 : i32, i32
  }
  func.func @transform_6(%arg0: i32) -> (i32, i32, i32) {
    %c0_i32 = arith.constant 0 : i32
    %c0_i32_0 = arith.constant 0 : i32
    %c0_i32_1 = arith.constant 0 : i32
    %c0_i32_2 = arith.constant 0 : i32
    return %c0_i32, %c0_i32_0, %c0_i32_1 : i32, i32, i32
  }
  func.func @transform_7(%arg0: i32) -> (i32, i32) {
    %c0_i32 = arith.constant 0 : i32
    %c0_i32_0 = arith.constant 0 : i32
    %c0_i32_1 = arith.constant 0 : i32
    return %c0_i32, %c0_i32_0 : i32, i32
  }
  func.func @transform_8(%arg0: i32) -> (i32, i32, i32) {
    %c0_i32 = arith.constant 0 : i32
    %c0_i32_0 = arith.constant 0 : i32
    %c0_i32_1 = arith.constant 0 : i32
    return %arg0, %c0_i32, %c0_i32_0 : i32, i32, i32
  }
}

</mosaic_0001>

<llo_original>
// kernel: ccl_forward.5
$region0: #{ccl_forward.5}
  #allocation0 [shape = 'u32[]', space=smem, size = 0x4, offset = 0x4, fixed_abs, tag = 'smem constant byte address 0x4 - core index']
  #allocation1 [shape = 'u32[144,128]{1,0:T(1,128)}', space=vmem, size = 0x12000, scoped, tag = 'internal scratch']
  %s0 = inlined_call_operand.vmem [shape: bf16[2,4,512], index: 0, kind: input, shape index: {}]
  %s1 = inlined_call_operand.vmem [shape: bf16[8,4], index: 1, kind: input, shape index: {}]
  %s2 = inlined_call_operand.vmem [shape: f32[8,1], index: 2, kind: input, shape index: {}]
  %s3 = inlined_call_operand.vmem [shape: f32[1,400], index: 3, kind: input, shape index: {}]
  %s4 = inlined_call_operand.vmem [shape: bf16[2,8,512], index: 4, kind: output, shape index: {}]
  %s5 = sld [smem:[#allocation0]]
  $region49: #{ccl_forward.5} parent=0
    _
  %s7 = ssub.s32 1, %s5
  %s8 = scalar_select 0, %s7, %s5
  loop: start=0, step=1, limit=4
  $region2: #{ccl_forward.5} parent=0 // loop_pre_header
    _
  $region3: #{ccl_forward.5} parent=0 // loop_header
    %s10 = sphi 0, %s14
    %p11 = scmp.ge.s32.totalorder %s10, 4
    %s20 = sphi 0, %s22
    %s23 = sphi 0, %s20
    %s24 = sphi 0, %s23
    %s40 = sphi 0, %s24
    %s44 = sphi 0, %s44
    %s46 = sphi 0, %s44
    %s47 = sphi 0, %s46
    %s61 = sphi 0, %s47
    %s65 = sphi 0, %s65
    %s67 = sphi 0, %s65
    %s68 = sphi 0, %s67
    %s82 = sphi 0, %s68
    %s86 = sphi 0, %s86
    %s88 = sphi 0, %s86
    %s89 = sphi 0, %s88
    %s103 = sphi 0, %s89
    %s109 = sphi 0, %s111
    %s112 = sphi 0, %s109
    %s113 = sphi 0, %s112
    %s129 = sphi 0, %s113
  $region4: #{ccl_forward.5} parent=0 // loop_header_branch
    %13 = sbr.rel (%p11) target = $region8
  $region5: #{ccl_forward.5} parent=0 // loop_body
    %s15 = ssub.s32 %s10, 1
    %s16 = ssub.s32 %s10, 2
    %s17 = sadd.s32 %s10, 1
    %s18 = ssub.s32 %s10, %s17
    %p19 = scmp.eq.s32.totalorder %s18, 0
    %s21 = sadd.s32 %s20, 1
    %s22 = scalar_select %p19, %s20, %s21
    %p25 = pneg %p19
    %p26 = scmp.eq.s32.totalorder %s10, 1
    %p27 = por %p25, %p26
    %p28 = scmp.ne.s32.totalorder %s20, %s23
    %p29 = scmp.eq.s32.totalorder %s10, 0
    %p30 = por %p28, %p29
    %p31 = scmp.ne.s32.totalorder %s20, %s23
    %p32 = scmp.eq.s32.totalorder %s15, 1
    %p33 = por %p31, %p32
    %p34 = scmp.ne.s32.totalorder %s23, %s24
    %p35 = scmp.eq.s32.totalorder %s15, 0
    %p36 = por %p34, %p35
    %p37 = scmp.ne.s32.totalorder %s23, %s24
    %p38 = scmp.eq.s32.totalorder %s16, 1
    %p39 = por %p37, %p38
    %p41 = scmp.ne.s32.totalorder %s24, %s40
    %p42 = scmp.eq.s32.totalorder %s16, 0
    %p43 = por %p41, %p42
    %s45 = sadd.s32 %s44, 1
    %p48 = scmp.eq.s32.totalorder %s10, 1
    %p49 = scmp.ne.s32.totalorder %s44, %s46
    %p50 = scmp.eq.s32.totalorder %s10, 0
    %p51 = por %p49, %p50
    %p52 = scmp.ne.s32.totalorder %s44, %s46
    %p53 = scmp.eq.s32.totalorder %s15, 1
    %p54 = por %p52, %p53
    %p55 = scmp.ne.s32.totalorder %s46, %s47
    %p56 = scmp.eq.s32.totalorder %s15, 0
    %p57 = por %p55, %p56
    %p58 = scmp.ne.s32.totalorder %s46, %s47
    %p59 = scmp.eq.s32.totalorder %s16, 1
    %p60 = por %p58, %p59
    %p62 = scmp.ne.s32.totalorder %s47, %s61
    %p63 = scmp.eq.s32.totalorder %s16, 0
    %p64 = por %p62, %p63
    %s66 = sadd.s32 %s65, 1
    %p69 = scmp.eq.s32.totalorder %s10, 1
    %p70 = scmp.ne.s32.totalorder %s65, %s67
    %p71 = scmp.eq.s32.totalorder %s10, 0
    %p72 = por %p70, %p71
    %p73 = scmp.ne.s32.totalorder %s65, %s67
    %p74 = scmp.eq.s32.totalorder %s15, 1
    %p75 = por %p73, %p74
    %p76 = scmp.ne.s32.totalorder %s67, %s68
    %p77 = scmp.eq.s32.totalorder %s15, 0
    %p78 = por %p76, %p77
    %p79 = scmp.ne.s32.totalorder %s67, %s68
    %p80 = scmp.eq.s32.totalorder %s16, 1
    %p81 = por %p79, %p80
    %p83 = scmp.ne.s32.totalorder %s68, %s82
    %p84 = scmp.eq.s32.totalorder %s16, 0
    %p85 = por %p83, %p84
    %s87 = sadd.s32 %s86, 1
    %p90 = scmp.eq.s32.totalorder %s10, 1
    %p91 = scmp.ne.s32.totalorder %s86, %s88
    %p92 = scmp.eq.s32.totalorder %s10, 0
    %p93 = por %p91, %p92
    %p94 = scmp.ne.s32.totalorder %s86, %s88
    %p95 = scmp.eq.s32.totalorder %s15, 1
    %p96 = por %p94, %p95
    %p97 = scmp.ne.s32.totalorder %s88, %s89
    %p98 = scmp.eq.s32.totalorder %s15, 0
    %p99 = por %p97, %p98
    %p100 = scmp.ne.s32.totalorder %s88, %s89
    %p101 = scmp.eq.s32.totalorder %s16, 1
    %p102 = por %p100, %p101
    %p104 = scmp.ne.s32.totalorder %s89, %s103
    %p105 = scmp.eq.s32.totalorder %s16, 0
    %p106 = por %p104, %p105
    %s107 = ssub.s32 %s10, %s17
    %p108 = scmp.eq.s32.totalorder %s107, 0
    %s110 = sadd.s32 %s109, 1
    %s111 = scalar_select %p108, %s109, %s110
    %p114 = pneg %p108
    %p115 = scmp.eq.s32.totalorder %s10, 1
    %p116 = por %p114, %p115
    %p117 = scmp.ne.s32.totalorder %s109, %s112
    %p118 = scmp.eq.s32.totalorder %s10, 0
    %p119 = por %p117, %p118
    %p120 = scmp.ne.s32.totalorder %s109, %s112
    %p121 = scmp.eq.s32.totalorder %s15, 1
    %p122 = por %p120, %p121
    %p123 = scmp.ne.s32.totalorder %s112, %s113
    %p124 = scmp.eq.s32.totalorder %s15, 0
    %p125 = por %p123, %p124
    %p126 = scmp.ne.s32.totalorder %s112, %s113
    %p127 = scmp.eq.s32.totalorder %s16, 1
    %p128 = por %p126, %p127
    %p130 = scmp.ne.s32.totalorder %s113, %s129
    %p131 = scmp.eq.s32.totalorder %s16, 0
    %p132 = por %p130, %p131
    %p133 = scmp.le.s32.totalorder 1, %s10
    %p134 = scmp.lt.s32.totalorder %s10, 3
    %p135 = pnand %p133, %p134
    %p136 = pneg %p135
    // Predicated region
    $region9: #{ccl_forward.5} parent=5 // pred_check
      _
    $region10: #{ccl_forward.5} parent=5 // pred_check_branch
      %138 = sbr.rel (%p135) target = $region12
    $region11: #{ccl_forward.5} parent=5 // pred_region
      %s139 = ssub.s32 %s10, 1
      // Predicated region
      $region13: #{ccl_forward.5} parent=11 // pred_check
        %p140 = pneg %p57
      $region14: #{ccl_forward.5} parent=11 // pred_check_branch
        %142 = sbr.rel (%p140) target = $region16
      $region15: #{ccl_forward.5} parent=11 // pred_region
        _
      $region16: #{ccl_forward.5} parent=11 // pred_fallthru
        _
      // Predicated region
      $region17: #{ccl_forward.5} parent=11 // pred_check
        %p143 = pneg %p78
      $region18: #{ccl_forward.5} parent=11 // pred_check_branch
        %145 = sbr.rel (%p143) target = $region20
      $region19: #{ccl_forward.5} parent=11 // pred_region
        _
      $region20: #{ccl_forward.5} parent=11 // pred_fallthru
        _
      // Predicated region
      $region21: #{ccl_forward.5} parent=11 // pred_check
        %p146 = pneg %p99
      $region22: #{ccl_forward.5} parent=11 // pred_check_branch
        %148 = sbr.rel (%p146) target = $region24
      $region23: #{ccl_forward.5} parent=11 // pred_region
        _
      $region24: #{ccl_forward.5} parent=11 // pred_fallthru
        _
    $region12: #{ccl_forward.5} parent=5 // pred_fallthru
      _
    %p149 = scmp.lt.s32.totalorder %s10, 2
    // Predicated region
    $region25: #{ccl_forward.5} parent=5 // pred_check
      %p150 = pneg %p149
    $region26: #{ccl_forward.5} parent=5 // pred_check_branch
      %152 = sbr.rel (%p150) target = $region28
    $region27: #{ccl_forward.5} parent=5 // pred_region
      // Predicated region
      $region29: #{ccl_forward.5} parent=27 // pred_check
        %p153 = pneg %p30
      $region30: #{ccl_forward.5} parent=27 // pred_check_branch
        %155 = sbr.rel (%p153) target = $region32
      $region31: #{ccl_forward.5} parent=27 // pred_region
        %p156 = scmp.lt.s32.totalorder %s10, 1
        %s157 = scalar_select %p156, %s10, 1
        %s158 = smul.addr %s157, 4
        %s159 = smul.addr %s158, 2
        %s160 = scalar_lea.vmem %s0, %s159
      $region32: #{ccl_forward.5} parent=27 // pred_fallthru
        _
    $region28: #{ccl_forward.5} parent=5 // pred_fallthru
      _
    %p161 = scmp.le.s32.totalorder 1, %s10
    %p162 = scmp.lt.s32.totalorder %s10, 3
    %p163 = pnand %p161, %p162
    %p164 = pneg %p163
    // Predicated region
    $region33: #{ccl_forward.5} parent=5 // pred_check
      _
    $region34: #{ccl_forward.5} parent=5 // pred_check_branch
      %166 = sbr.rel (%p163) target = $region36
    $region35: #{ccl_forward.5} parent=5 // pred_region
      %s167 = ssub.s32 %s10, 1
      %p168 = scmp.lt.s32.totalorder %s15, 1
      %s169 = scalar_select %p168, %s15, 1
      %s170 = smul.addr %s169, 4
      %s171 = smul.addr %s170, 2
      %s172 = scalar_lea.vmem %s0, %s171
      %p173 = pneg %p36
      %p174 = pneg %p33
      %p175 = pneg %p57
      %p176 = pneg %p54
      %p177 = pneg %p78
      %p178 = pneg %p75
      %p179 = pneg %p99
      %p180 = pneg %p96
      %p181 = pneg %p125
      %p182 = pneg %p122
      %p183 = scmp.lt.s32.totalorder %s15, 1
      %s184 = scalar_select %p183, %s15, 1
      %s185 = smul.addr %s184, 4
      %s186 = smul.addr %s185, 4
      %s187 = scalar_lea.vmem %s4, %s186
      %p188 = scmp.lt.s32.totalorder %s15, 1
      %s189 = scalar_select %p188, %s15, 1
      %s190 = smul.addr %s189, 4
      %s191 = smul.addr %s190, 2
      %s192 = scalar_lea.vmem %s0, %s191
      %p193 = scmp.lt.s32.totalorder %s15, 1
      %s194 = scalar_select %p193, %s15, 1
      %s195 = smul.addr %s194, 4
      %s196 = smul.addr %s195, 4
      %s197 = scalar_lea.vmem %s4, %s196
      %v199 = vld [vmem:[%s192] sm:$0xff]
      %v200 = vld [vmem:[%s1] sm:$0xf]
      %v201 = vld [vmem:[%s2] sm:$0xff]
      %203 = vset.pattern.permute.xlu0 0
      %204 = vperm.xlu0 %203, %v201
      %v205 = vpop.permute.xlu0 %204
      %v208 = vcombine.high %v199, %v199
      %v210 = vunpack.c.l.s4 1983009808
      %v211 = vunpack.c.0.s8 %v210
      %v212 = vlaneseq
      %v213 = vshrl.u32 %v212, 7
      %v214 = vsub.s32 %v211, %v213
      %v215 = vrot.slane %v199, %v214
      %v217 = vunpack.c.l.s4 1983009808
      %v218 = vunpack.c.0.s8 %v217
      %v219 = vlaneseq
      %v220 = vshrl.u32 %v219, 7
      %v221 = vsub.s32 %v218, %v220
      %v222 = vrot.slane %v208, %v221
      %v223 = vcombine.high %v215, %v215
      %v224 = vcombine.high %v222, %v222
      %225 = vrot.lane.b32.xlu0 %v215, 86
      %v226 = vpop.permute.xlu0 %225
      %227 = vrot.lane.b32.xlu0 %v223, 86
      %v228 = vpop.permute.xlu0 %227
      %229 = vrot.lane.b32.xlu0 %v222, 86
      %v230 = vpop.permute.xlu0 %229
      %231 = vrot.lane.b32.xlu0 %v224, 86
      %v232 = vpop.permute.xlu0 %231
      %vm233 = vcmask 703488
      %v234 = vsel %vm233, %v226, %v228
      %v235 = vsel %vm233, %v228, %v230
      %v236 = vsel %vm233, %v230, %v232
      %vm237 = vcmask 31744
      %v239 = vsel %vm237, %v200, 0
      %vm241 = vcmask 1041408
      %v243 = vsel %vm241, %v234, 0
      %v246 = vsel %vm241, %v235, 0
      %v249 = vsel %vm241, %v236, 0
      %v252 = vsel %vm241, %v232, 0
      %254 = vmatprep.subr.bf16.mxu0 0
      %255 = vmatpush1.bf16.msra.mxu0 0
      %256 = vmatprep.subr.bf16.mxu0 0
      %257 = vmatpush1.bf16.msra.mxu0 0
      %258 = vmatprep.subr.bf16.mxu0 0
      %259 = vmatpush1.bf16.msra.mxu0 0
      %260 = vmatprep.subr.bf16.mxu0 0
      %261 = vmatpush1.bf16.msra.mxu0 0
      %262 = vmatprep.subr.bf16.mxu0 0
      %263 = vmatpush1.bf16.msra.mxu0 0
      %264 = vmatprep.subr.bf16.mxu0 0
      %265 = vmatpush1.bf16.msra.mxu0 0
      %266 = vmatprep.subr.bf16.mxu0 0
      %267 = vmatpush1.bf16.msra.mxu0 0
      %268 = vmatprep.subr.bf16.mxu0 %v246
      %269 = vmatpush1.bf16.msra.mxu0 %v243
      %270 = vmatprep.subr.bf16.mxu0 0
      %271 = vmatpush2.bf16.msra.mxu0 0
      %272 = vmatprep.subr.bf16.mxu0 0
      %273 = vmatpush2.bf16.msra.mxu0 0
      %274 = vmatprep.subr.bf16.mxu0 0
      %275 = vmatpush2.bf16.msra.mxu0 0
      %276 = vmatprep.subr.bf16.mxu0 0
      %277 = vmatpush2.bf16.msra.mxu0 0
      %278 = vmatprep.subr.bf16.mxu0 0
      %279 = vmatpush2.bf16.msra.mxu0 0
      %280 = vmatprep.subr.bf16.mxu0 0
      %281 = vmatpush2.bf16.msra.mxu0 0
      %282 = vmatprep.subr.bf16.mxu0 0
      %283 = vmatpush2.bf16.msra.mxu0 0
      %284 = vmatprep.subr.bf16.mxu0 0
      %285 = vmatpush2.bf16.msra.mxu0 0
      %286 = vmatprep.mubr.bf16.mxu0 0
      %287 = vmatmul.mubr.bf16.gmra.mxu0 %v239
      %v288 = vpop.f32.mrf.mxu0
      %v289 = vadd.f32 %v205, %v288
      %v290 = vpop.f32.mrf.mxu0
      %v291 = vadd.f32 %v205, %v290
      %v292 = vpop.f32.mrf.mxu0
      %v293 = vpop.f32.mrf.mxu0
      %294 = vdwg.mxu0
      %295 = vmatprep.subr.bf16.mxu0 0
      %296 = vmatpush1.bf16.msra.mxu0 0
      %297 = vmatprep.subr.bf16.mxu0 0
      %298 = vmatpush1.bf16.msra.mxu0 0
      %299 = vmatprep.subr.bf16.mxu0 0
      %300 = vmatpush1.bf16.msra.mxu0 0
      %301 = vmatprep.subr.bf16.mxu0 0
      %302 = vmatpush1.bf16.msra.mxu0 0
      %303 = vmatprep.subr.bf16.mxu0 0
      %304 = vmatpush1.bf16.msra.mxu0 0
      %305 = vmatprep.subr.bf16.mxu0 0
      %306 = vmatpush1.bf16.msra.mxu0 0
      %307 = vmatprep.subr.bf16.mxu0 0
      %308 = vmatpush1.bf16.msra.mxu0 0
      %309 = vmatprep.subr.bf16.mxu0 %v252
      %310 = vmatpush1.bf16.msra.mxu0 %v249
      %311 = vmatprep.subr.bf16.mxu0 0
      %312 = vmatpush2.bf16.msra.mxu0 0
      %313 = vmatprep.subr.bf16.mxu0 0
      %314 = vmatpush2.bf16.msra.mxu0 0
      %315 = vmatprep.subr.bf16.mxu0 0
      %316 = vmatpush2.bf16.msra.mxu0 0
      %317 = vmatprep.subr.bf16.mxu0 0
      %318 = vmatpush2.bf16.msra.mxu0 0
      %319 = vmatprep.subr.bf16.mxu0 0
      %320 = vmatpush2.bf16.msra.mxu0 0
      %321 = vmatprep.subr.bf16.mxu0 0
      %322 = vmatpush2.bf16.msra.mxu0 0
      %323 = vmatprep.subr.bf16.mxu0 0
      %324 = vmatpush2.bf16.msra.mxu0 0
      %325 = vmatprep.subr.bf16.mxu0 0
      %326 = vmatpush2.bf16.msra.mxu0 0
      %327 = vmatprep.mubr.bf16.mxu0 0
      %328 = vmatmul.mubr.bf16.gmra.mxu0 %v239
      %v329 = vpop.f32.mrf.mxu0
      %v330 = vadd.f32 %v205, %v329
      %v331 = vpop.f32.mrf.mxu0
      %v332 = vadd.f32 %v205, %v331
      %v333 = vpop.f32.mrf.mxu0
      %v334 = vpop.f32.mrf.mxu0
      %335 = vdwg.mxu0
      %v336 = vld [vmem:[%s3] sm:$0xf]
      %v338 = vlaneseq
      %v339 = vshrl.u32 %v338, 7
      %v340 = vsub.s32 0, %v339
      %v341 = vrot.slane %v336, %v340
      %v342 = vlaneseq
      %v343 = vshrl.u32 %v342, 7
      %v344 = vsub.s32 1, %v343
      %v345 = vrot.slane %v336, %v344
      %v346 = vlaneseq
      %v347 = vshrl.u32 %v346, 7
      %v348 = vsub.s32 2, %v347
      %v349 = vrot.slane %v336, %v348
      %v350 = vlaneseq
      %v351 = vshrl.u32 %v350, 7
      %v352 = vsub.s32 3, %v351
      %v353 = vrot.slane %v336, %v352
      %v358 = vmul.f32 %v289, %v341
      %v359 = vmul.f32 %v291, %v345
      %v360 = vmul.f32 %v330, %v349
      %v361 = vmul.f32 %v332, %v353
      %362 = vst [vmem:[%s197] sm:$0xff] 0
      %363 = vst [vmem:[%s197 + $0x8] sm:$0xff] 0
      %v364 = vpack.c.bf16 %v358, %v358
      %v365 = vpack.c.bf16 %v359, %v359
      %v366 = vpack.c.bf16 %v360, %v360
      %v367 = vpack.c.bf16 %v361, %v361
      %v372 = vunpack.c.l.b16 %v364
      %v373 = vunpack.c.l.b16 %v365
      %v374 = vunpack.c.l.b16 %v366
      %v375 = vunpack.c.l.b16 %v367
      %v376 = vpack.c.b16 %v373, %v372
      %v377 = vpack.c.b16 %v375, %v374
      %378 = vrot.lane.b32.xlu0 %v376, 42
      %v379 = vpop.permute.xlu0 %378
      %380 = vrot.lane.b32.xlu0 %v377, 42
      %v381 = vpop.permute.xlu0 %380
      %v382 = vrot.slane %v379, 4
      %v383 = vrot.slane %v381, 4
      %vm384 = vcmask 343040
      %v385 = vsel %vm384, %v382, %v379
      %vm386 = vcmask 1043456
      %v387 = vsel %vm386, %v382, %v383
      %v388 = vsel %vm384, %v387, %v381
      %vm391 = vcmask 1043792
      %vm392 = vcmask 1047556
      %vm393 = vmor %vm392, %vm391
      %394 = vst.msk [vmem:[%s197] sm:$0xff] %vm393, %v385
      %vm395 = vcmask 1043456
      %vm396 = vcmask 474116
      %vm397 = vmor %vm396, %vm395
      %398 = vst.msk [vmem:[%s197 + $0x8] sm:$0xff] %vm397, %v388
      %p399 = scmp.lt.s32.totalorder %s15, 1
      %s400 = scalar_select %p399, %s15, 1
      %s401 = smul.addr %s400, 4
      %s402 = smul.addr %s401, 4
      %s403 = scalar_lea.vmem %s4, %s402
      // Predicated region
      $region37: #{ccl_forward.5} parent=35 // pred_check
        %p404 = pneg %p122
      $region38: #{ccl_forward.5} parent=35 // pred_check_branch
        %406 = sbr.rel (%p404) target = $region40
      $region39: #{ccl_forward.5} parent=35 // pred_region
        _
      $region40: #{ccl_forward.5} parent=35 // pred_fallthru
        _
    $region36: #{ccl_forward.5} parent=5 // pred_fallthru
      _
    %p407 = scmp.le.s32.totalorder 2, %s10
    // Predicated region
    $region41: #{ccl_forward.5} parent=5 // pred_check
      %p408 = pneg %p407
    $region42: #{ccl_forward.5} parent=5 // pred_check_branch
      %410 = sbr.rel (%p408) target = $region44
    $region43: #{ccl_forward.5} parent=5 // pred_region
      %s411 = ssub.s32 %s10, 2
      // Predicated region
      $region45: #{ccl_forward.5} parent=43 // pred_check
        %p412 = pneg %p128
      $region46: #{ccl_forward.5} parent=43 // pred_check_branch
        %414 = sbr.rel (%p412) target = $region48
      $region47: #{ccl_forward.5} parent=43 // pred_region
        %p415 = scmp.lt.s32.totalorder %s16, 1
        %s416 = scalar_select %p415, %s16, 1
        %s417 = smul.addr %s416, 4
        %s418 = smul.addr %s417, 4
        %s419 = scalar_lea.vmem %s4, %s418
      $region48: #{ccl_forward.5} parent=43 // pred_fallthru
        _
    $region44: #{ccl_forward.5} parent=5 // pred_fallthru
      _
  $region6: #{ccl_forward.5} parent=0 // loop_footer
    %s14 = sadd.s32 1, %s10
  $region7: #{ccl_forward.5} parent=0 // loop_footer_branch
    %9 = sbr.rel target = $region3
  $region8: #{ccl_forward.5} parent=0 // loop_exit
    _

// kernel: ccl_forward.6
$region0: #{ccl_forward.6}
  #allocation0 [shape = 'u32[]', space=smem, size = 0x4, offset = 0x4, fixed_abs, tag = 'smem constant byte address 0x4 - core index']
  #allocation1 [shape = 'u32[144,128]{1,0:T(1,128)}', space=vmem, size = 0x12000, scoped, tag = 'internal scratch']
  %s0 = inlined_call_operand.vmem [shape: bf16[2,8,512], index: 0, kind: input, shape index: {}]
  %s1 = inlined_call_operand.vmem [shape: bf16[18,8,8], index: 1, kind: input, shape index: {}]
  %s2 = inlined_call_operand.vmem [shape: f32[8,1], index: 2, kind: input, shape index: {}]
  %s3 = inlined_call_operand.vmem [shape: f32[1,400], index: 3, kind: input, shape index: {}]
  %s4 = inlined_call_operand.vmem [shape: bf16[2,8,512], index: 4, kind: output, shape index: {}]
  %s5 = sld [smem:[#allocation0]]
  $region49: #{ccl_forward.6} parent=0
    _
  %s7 = ssub.s32 1, %s5
  %s8 = scalar_select 0, %s7, %s5
  loop: start=0, step=1, limit=4
  $region2: #{ccl_forward.6} parent=0 // loop_pre_header
    _
  $region3: #{ccl_forward.6} parent=0 // loop_header
    %s10 = sphi 0, %s14
    %p11 = scmp.ge.s32.totalorder %s10, 4
    %s20 = sphi 0, %s22
    %s23 = sphi 0, %s20
    %s24 = sphi 0, %s23
    %s40 = sphi 0, %s24
    %s44 = sphi 0, %s44
    %s46 = sphi 0, %s44
    %s47 = sphi 0, %s46
    %s61 = sphi 0, %s47
    %s65 = sphi 0, %s65
    %s67 = sphi 0, %s65
    %s68 = sphi 0, %s67
    %s82 = sphi 0, %s68
    %s86 = sphi 0, %s86
    %s88 = sphi 0, %s86
    %s89 = sphi 0, %s88
    %s103 = sphi 0, %s89
    %s109 = sphi 0, %s111
    %s112 = sphi 0, %s109
    %s113 = sphi 0, %s112
    %s129 = sphi 0, %s113
  $region4: #{ccl_forward.6} parent=0 // loop_header_branch
    %13 = sbr.rel (%p11) target = $region8
  $region5: #{ccl_forward.6} parent=0 // loop_body
    %s15 = ssub.s32 %s10, 1
    %s16 = ssub.s32 %s10, 2
    %s17 = sadd.s32 %s10, 1
    %s18 = ssub.s32 %s10, %s17
    %p19 = scmp.eq.s32.totalorder %s18, 0
    %s21 = sadd.s32 %s20, 1
    %s22 = scalar_select %p19, %s20, %s21
    %p25 = pneg %p19
    %p26 = scmp.eq.s32.totalorder %s10, 1
    %p27 = por %p25, %p26
    %p28 = scmp.ne.s32.totalorder %s20, %s23
    %p29 = scmp.eq.s32.totalorder %s10, 0
    %p30 = por %p28, %p29
    %p31 = scmp.ne.s32.totalorder %s20, %s23
    %p32 = scmp.eq.s32.totalorder %s15, 1
    %p33 = por %p31, %p32
    %p34 = scmp.ne.s32.totalorder %s23, %s24
    %p35 = scmp.eq.s32.totalorder %s15, 0
    %p36 = por %p34, %p35
    %p37 = scmp.ne.s32.totalorder %s23, %s24
    %p38 = scmp.eq.s32.totalorder %s16, 1
    %p39 = por %p37, %p38
    %p41 = scmp.ne.s32.totalorder %s24, %s40
    %p42 = scmp.eq.s32.totalorder %s16, 0
    %p43 = por %p41, %p42
    %s45 = sadd.s32 %s44, 1
    %p48 = scmp.eq.s32.totalorder %s10, 1
    %p49 = scmp.ne.s32.totalorder %s44, %s46
    %p50 = scmp.eq.s32.totalorder %s10, 0
    %p51 = por %p49, %p50
    %p52 = scmp.ne.s32.totalorder %s44, %s46
    %p53 = scmp.eq.s32.totalorder %s15, 1
    %p54 = por %p52, %p53
    %p55 = scmp.ne.s32.totalorder %s46, %s47
    %p56 = scmp.eq.s32.totalorder %s15, 0
    %p57 = por %p55, %p56
    %p58 = scmp.ne.s32.totalorder %s46, %s47
    %p59 = scmp.eq.s32.totalorder %s16, 1
    %p60 = por %p58, %p59
    %p62 = scmp.ne.s32.totalorder %s47, %s61
    %p63 = scmp.eq.s32.totalorder %s16, 0
    %p64 = por %p62, %p63
    %s66 = sadd.s32 %s65, 1
    %p69 = scmp.eq.s32.totalorder %s10, 1
    %p70 = scmp.ne.s32.totalorder %s65, %s67
    %p71 = scmp.eq.s32.totalorder %s10, 0
    %p72 = por %p70, %p71
    %p73 = scmp.ne.s32.totalorder %s65, %s67
    %p74 = scmp.eq.s32.totalorder %s15, 1
    %p75 = por %p73, %p74
    %p76 = scmp.ne.s32.totalorder %s67, %s68
    %p77 = scmp.eq.s32.totalorder %s15, 0
    %p78 = por %p76, %p77
    %p79 = scmp.ne.s32.totalorder %s67, %s68
    %p80 = scmp.eq.s32.totalorder %s16, 1
    %p81 = por %p79, %p80
    %p83 = scmp.ne.s32.totalorder %s68, %s82
    %p84 = scmp.eq.s32.totalorder %s16, 0
    %p85 = por %p83, %p84
    %s87 = sadd.s32 %s86, 1
    %p90 = scmp.eq.s32.totalorder %s10, 1
    %p91 = scmp.ne.s32.totalorder %s86, %s88
    %p92 = scmp.eq.s32.totalorder %s10, 0
    %p93 = por %p91, %p92
    %p94 = scmp.ne.s32.totalorder %s86, %s88
    %p95 = scmp.eq.s32.totalorder %s15, 1
    %p96 = por %p94, %p95
    %p97 = scmp.ne.s32.totalorder %s88, %s89
    %p98 = scmp.eq.s32.totalorder %s15, 0
    %p99 = por %p97, %p98
    %p100 = scmp.ne.s32.totalorder %s88, %s89
    %p101 = scmp.eq.s32.totalorder %s16, 1
    %p102 = por %p100, %p101
    %p104 = scmp.ne.s32.totalorder %s89, %s103
    %p105 = scmp.eq.s32.totalorder %s16, 0
    %p106 = por %p104, %p105
    %s107 = ssub.s32 %s10, %s17
    %p108 = scmp.eq.s32.totalorder %s107, 0
    %s110 = sadd.s32 %s109, 1
    %s111 = scalar_select %p108, %s109, %s110
    %p114 = pneg %p108
    %p115 = scmp.eq.s32.totalorder %s10, 1
    %p116 = por %p114, %p115
    %p117 = scmp.ne.s32.totalorder %s109, %s112
    %p118 = scmp.eq.s32.totalorder %s10, 0
    %p119 = por %p117, %p118
    %p120 = scmp.ne.s32.totalorder %s109, %s112
    %p121 = scmp.eq.s32.totalorder %s15, 1
    %p122 = por %p120, %p121
    %p123 = scmp.ne.s32.totalorder %s112, %s113
    %p124 = scmp.eq.s32.totalorder %s15, 0
    %p125 = por %p123, %p124
    %p126 = scmp.ne.s32.totalorder %s112, %s113
    %p127 = scmp.eq.s32.totalorder %s16, 1
    %p128 = por %p126, %p127
    %p130 = scmp.ne.s32.totalorder %s113, %s129
    %p131 = scmp.eq.s32.totalorder %s16, 0
    %p132 = por %p130, %p131
    %p133 = scmp.le.s32.totalorder 1, %s10
    %p134 = scmp.lt.s32.totalorder %s10, 3
    %p135 = pnand %p133, %p134
    %p136 = pneg %p135
    // Predicated region
    $region9: #{ccl_forward.6} parent=5 // pred_check
      _
    $region10: #{ccl_forward.6} parent=5 // pred_check_branch
      %138 = sbr.rel (%p135) target = $region12
    $region11: #{ccl_forward.6} parent=5 // pred_region
      %s139 = ssub.s32 %s10, 1
      // Predicated region
      $region13: #{ccl_forward.6} parent=11 // pred_check
        %p140 = pneg %p57
      $region14: #{ccl_forward.6} parent=11 // pred_check_branch
        %142 = sbr.rel (%p140) target = $region16
      $region15: #{ccl_forward.6} parent=11 // pred_region
        _
      $region16: #{ccl_forward.6} parent=11 // pred_fallthru
        _
      // Predicated region
      $region17: #{ccl_forward.6} parent=11 // pred_check
        %p143 = pneg %p78
      $region18: #{ccl_forward.6} parent=11 // pred_check_branch
        %145 = sbr.rel (%p143) target = $region20
      $region19: #{ccl_forward.6} parent=11 // pred_region
        _
      $region20: #{ccl_forward.6} parent=11 // pred_fallthru
        _
      // Predicated region
      $region21: #{ccl_forward.6} parent=11 // pred_check
        %p146 = pneg %p99
      $region22: #{ccl_forward.6} parent=11 // pred_check_branch
        %148 = sbr.rel (%p146) target = $region24
      $region23: #{ccl_forward.6} parent=11 // pred_region
        _
      $region24: #{ccl_forward.6} parent=11 // pred_fallthru
        _
    $region12: #{ccl_forward.6} parent=5 // pred_fallthru
      _
    %p149 = scmp.lt.s32.totalorder %s10, 2
    // Predicated region
    $region25: #{ccl_forward.6} parent=5 // pred_check
      %p150 = pneg %p149
    $region26: #{ccl_forward.6} parent=5 // pred_check_branch
      %152 = sbr.rel (%p150) target = $region28
    $region27: #{ccl_forward.6} parent=5 // pred_region
      // Predicated region
      $region29: #{ccl_forward.6} parent=27 // pred_check
        %p153 = pneg %p30
      $region30: #{ccl_forward.6} parent=27 // pred_check_branch
        %155 = sbr.rel (%p153) target = $region32
      $region31: #{ccl_forward.6} parent=27 // pred_region
        %p156 = scmp.lt.s32.totalorder %s10, 1
        %s157 = scalar_select %p156, %s10, 1
        %s158 = smul.addr %s157, 4
        %s159 = smul.addr %s158, 4
        %s160 = scalar_lea.vmem %s0, %s159
      $region32: #{ccl_forward.6} parent=27 // pred_fallthru
        _
    $region28: #{ccl_forward.6} parent=5 // pred_fallthru
      _
    %p161 = scmp.le.s32.totalorder 1, %s10
    %p162 = scmp.lt.s32.totalorder %s10, 3
    %p163 = pnand %p161, %p162
    %p164 = pneg %p163
    // Predicated region
    $region33: #{ccl_forward.6} parent=5 // pred_check
      _
    $region34: #{ccl_forward.6} parent=5 // pred_check_branch
      %166 = sbr.rel (%p163) target = $region36
    $region35: #{ccl_forward.6} parent=5 // pred_region
      %s167 = ssub.s32 %s10, 1
      %p168 = scmp.lt.s32.totalorder %s15, 1
      %s169 = scalar_select %p168, %s15, 1
      %s170 = smul.addr %s169, 4
      %s171 = smul.addr %s170, 4
      %s172 = scalar_lea.vmem %s0, %s171
      %p173 = pneg %p36
      %p174 = pneg %p33
      %p175 = pneg %p57
      %p176 = pneg %p54
      %p177 = pneg %p78
      %p178 = pneg %p75
      %p179 = pneg %p99
      %p180 = pneg %p96
      %p181 = pneg %p125
      %p182 = pneg %p122
      %p183 = scmp.lt.s32.totalorder %s15, 1
      %s184 = scalar_select %p183, %s15, 1
      %s185 = smul.addr %s184, 4
      %s186 = smul.addr %s185, 4
      %s187 = scalar_lea.vmem %s4, %s186
      %p188 = scmp.lt.s32.totalorder %s15, 1
      %s189 = scalar_select %p188, %s15, 1
      %s190 = smul.addr %s189, 4
      %s191 = smul.addr %s190, 4
      %s192 = scalar_lea.vmem %s0, %s191
      %p193 = scmp.lt.s32.totalorder %s15, 1
      %s194 = scalar_select %p193, %s15, 1
      %s195 = smul.addr %s194, 4
      %s196 = smul.addr %s195, 4
      %s197 = scalar_lea.vmem %s4, %s196
      %v199 = vld [vmem:[%s192] sm:$0xff]
      %v200 = vld [vmem:[%s192 + $0x8] sm:$0xff]
      %v201 = vld [vmem:[%s1] sm:$0xf]
      %s202 = scalar_lea.vmem %s1, 4
      %v203 = vld [vmem:[%s202] sm:$0xf]
      %v206 = vunpack.c.l.b16 %v199
      %v207 = vunpack.c.h.b16 %v199
      %v208 = vunpack.c.l.b16 %v200
      %v209 = vunpack.c.h.b16 %v200
      %v210 = vpack.c.b16 %v206, %v206
      %v211 = vpack.c.b16 %v207, %v207
      %v212 = vpack.c.b16 %v208, %v208
      %v213 = vpack.c.b16 %v209, %v209
      %214 = vrot.lane.b32.xlu0 %v210, 106
      %v215 = vpop.permute.xlu0 %214
      %216 = vrot.lane.b32.xlu0 %v211, 106
      %v217 = vpop.permute.xlu0 %216
      %218 = vrot.lane.b32.xlu0 %v212, 106
      %v219 = vpop.permute.xlu0 %218
      %220 = vrot.lane.b32.xlu0 %v213, 106
      %v221 = vpop.permute.xlu0 %220
      %vm222 = vcmask 867328
      %v223 = vsel %vm222, %v215, %v217
      %v224 = vsel %vm222, %v217, %v219
      %v225 = vsel %vm222, %v219, %v221
      %vm226 = vcmask 64512
      %v228 = vsel %vm226, %v203, 0
      %vm230 = vcmask 1043456
      %v232 = vsel %vm230, %v223, 0
      %v235 = vsel %vm230, %v224, 0
      %v238 = vsel %vm230, %v225, 0
      %v241 = vsel %vm230, %v221, 0
      %243 = vmatprep.subr.bf16.mxu0 0
      %244 = vmatpush1.bf16.msra.mxu0 0
      %245 = vmatprep.subr.bf16.mxu0 0
      %246 = vmatpush1.bf16.msra.mxu0 0
      %247 = vmatprep.subr.bf16.mxu0 0
      %248 = vmatpush1.bf16.msra.mxu0 0
      %249 = vmatprep.subr.bf16.mxu0 0
      %250 = vmatpush1.bf16.msra.mxu0 0
      %251 = vmatprep.subr.bf16.mxu0 0
      %252 = vmatpush1.bf16.msra.mxu0 0
      %253 = vmatprep.subr.bf16.mxu0 0
      %254 = vmatpush1.bf16.msra.mxu0 0
      %255 = vmatprep.subr.bf16.mxu0 0
      %256 = vmatpush1.bf16.msra.mxu0 0
      %257 = vmatprep.subr.bf16.mxu0 %v235
      %258 = vmatpush1.bf16.msra.mxu0 %v232
      %259 = vmatprep.subr.bf16.mxu0 0
      %260 = vmatpush2.bf16.msra.mxu0 0
      %261 = vmatprep.subr.bf16.mxu0 0
      %262 = vmatpush2.bf16.msra.mxu0 0
      %263 = vmatprep.subr.bf16.mxu0 0
      %264 = vmatpush2.bf16.msra.mxu0 0
      %265 = vmatprep.subr.bf16.mxu0 0
      %266 = vmatpush2.bf16.msra.mxu0 0
      %267 = vmatprep.subr.bf16.mxu0 0
      %268 = vmatpush2.bf16.msra.mxu0 0
      %269 = vmatprep.subr.bf16.mxu0 0
      %270 = vmatpush2.bf16.msra.mxu0 0
      %271 = vmatprep.subr.bf16.mxu0 0
      %272 = vmatpush2.bf16.msra.mxu0 0
      %273 = vmatprep.subr.bf16.mxu0 0
      %274 = vmatpush2.bf16.msra.mxu0 0
      %275 = vmatprep.mubr.bf16.mxu0 0
      %276 = vmatmul.mubr.bf16.gmra.mxu0 %v228
      %v277 = vpop.f32.mrf.mxu0
      %v278 = vadd.f32 0.0, %v277
      %v279 = vpop.f32.mrf.mxu0
      %v280 = vadd.f32 0.0, %v279
      %v281 = vpop.f32.mrf.mxu0
      %v282 = vpop.f32.mrf.mxu0
      %283 = vdwg.mxu0
      %284 = vmatprep.subr.bf16.mxu0 0
      %285 = vmatpush1.bf16.msra.mxu0 0
      %286 = vmatprep.subr.bf16.mxu0 0
      %287 = vmatpush1.bf16.msra.mxu0 0
      %288 = vmatprep.subr.bf16.mxu0 0
      %289 = vmatpush1.bf16.msra.mxu0 0
      %290 = vmatprep.subr.bf16.mxu0 0
      %291 = vmatpush1.bf16.msra.mxu0 0
      %292 = vmatprep.subr.bf16.mxu0 0
      %293 = vmatpush1.bf16.msra.mxu0 0
      %294 = vmatprep.subr.bf16.mxu0 0
      %295 = vmatpush1.bf16.msra.mxu0 0
      %296 = vmatprep.subr.bf16.mxu0 0
      %297 = vmatpush1.bf16.msra.mxu0 0
      %298 = vmatprep.subr.bf16.mxu0 %v241
      %299 = vmatpush1.bf16.msra.mxu0 %v238
      %300 = vmatprep.subr.bf16.mxu0 0
      %301 = vmatpush2.bf16.msra.mxu0 0
      %302 = vmatprep.subr.bf16.mxu0 0
      %303 = vmatpush2.bf16.msra.mxu0 0
      %304 = vmatprep.subr.bf16.mxu0 0
      %305 = vmatpush2.bf16.msra.mxu0 0
      %306 = vmatprep.subr.bf16.mxu0 0
      %307 = vmatpush2.bf16.msra.mxu0 0
      %308 = vmatprep.subr.bf16.mxu0 0
      %309 = vmatpush2.bf16.msra.mxu0 0
      %310 = vmatprep.subr.bf16.mxu0 0
      %311 = vmatpush2.bf16.msra.mxu0 0
      %312 = vmatprep.subr.bf16.mxu0 0
      %313 = vmatpush2.bf16.msra.mxu0 0
      %314 = vmatprep.subr.bf16.mxu0 0
      %315 = vmatpush2.bf16.msra.mxu0 0
      %316 = vmatprep.mubr.bf16.mxu0 0
      %317 = vmatmul.mubr.bf16.gmra.mxu0 %v228
      %v318 = vpop.f32.mrf.mxu0
      %v319 = vadd.f32 0.0, %v318
      %v320 = vpop.f32.mrf.mxu0
      %v321 = vadd.f32 0.0, %v320
      %v322 = vpop.f32.mrf.mxu0
      %v323 = vpop.f32.mrf.mxu0
      %324 = vdwg.mxu0
      %325 = vrot.lane.b32.xlu0 %v210, 107
      %v326 = vpop.permute.xlu0 %325
      %327 = vrot.lane.b32.xlu0 %v211, 107
      %v328 = vpop.permute.xlu0 %327
      %329 = vrot.lane.b32.xlu0 %v212, 107
      %v330 = vpop.permute.xlu0 %329
      %331 = vrot.lane.b32.xlu0 %v213, 107
      %v332 = vpop.permute.xlu0 %331
      %vm333 = vcmask 875520
      %v334 = vsel %vm333, %v326, %v328
      %v335 = vsel %vm333, %v328, %v330
      %v336 = vsel %vm333, %v330, %v332
      %v338 = vsel %vm226, %v201, 0
      %v341 = vsel %vm230, %v334, 0
      %v344 = vsel %vm230, %v335, 0
      %v347 = vsel %vm230, %v336, 0
      %v350 = vsel %vm230, %v332, 0
      %352 = vmatprep.subr.bf16.mxu0 0
      %353 = vmatpush1.bf16.msra.mxu0 0
      %354 = vmatprep.subr.bf16.mxu0 0
      %355 = vmatpush1.bf16.msra.mxu0 0
      %356 = vmatprep.subr.bf16.mxu0 0
      %357 = vmatpush1.bf16.msra.mxu0 0
      %358 = vmatprep.subr.bf16.mxu0 0
      %359 = vmatpush1.bf16.msra.mxu0 0
      %360 = vmatprep.subr.bf16.mxu0 0
      %361 = vmatpush1.bf16.msra.mxu0 0
      %362 = vmatprep.subr.bf16.mxu0 0
      %363 = vmatpush1.bf16.msra.mxu0 0
      %364 = vmatprep.subr.bf16.mxu0 0
      %365 = vmatpush1.bf16.msra.mxu0 0
      %366 = vmatprep.subr.bf16.mxu0 %v344
      %367 = vmatpush1.bf16.msra.mxu0 %v341
      %368 = vmatprep.subr.bf16.mxu0 0
      %369 = vmatpush2.bf16.msra.mxu0 0
      %370 = vmatprep.subr.bf16.mxu0 0
      %371 = vmatpush2.bf16.msra.mxu0 0
      %372 = vmatprep.subr.bf16.mxu0 0
      %373 = vmatpush2.bf16.msra.mxu0 0
      %374 = vmatprep.subr.bf16.mxu0 0
      %375 = vmatpush2.bf16.msra.mxu0 0
      %376 = vmatprep.subr.bf16.mxu0 0
      %377 = vmatpush2.bf16.msra.mxu0 0
      %378 = vmatprep.subr.bf16.mxu0 0
      %379 = vmatpush2.bf16.msra.mxu0 0
      %380 = vmatprep.subr.bf16.mxu0 0
      %381 = vmatpush2.bf16.msra.mxu0 0
      %382 = vmatprep.subr.bf16.mxu0 0
      %383 = vmatpush2.bf16.msra.mxu0 0
      %384 = vmatprep.mubr.bf16.mxu0 0
      %385 = vmatmul.mubr.bf16.gmra.mxu0 %v338
      %v386 = vpop.f32.mrf.mxu0
      %v387 = vadd.f32 %v278, %v386
      %v388 = vpop.f32.mrf.mxu0
      %v389 = vadd.f32 %v280, %v388
      %v390 = vpop.f32.mrf.mxu0
      %v391 = vpop.f32.mrf.mxu0
      %392 = vdwg.mxu0
      %393 = vmatprep.subr.bf16.mxu0 0
      %394 = vmatpush1.bf16.msra.mxu0 0
      %395 = vmatprep.subr.bf16.mxu0 0
      %396 = vmatpush1.bf16.msra.mxu0 0
      %397 = vmatprep.subr.bf16.mxu0 0
      %398 = vmatpush1.bf16.msra.mxu0 0
      %399 = vmatprep.subr.bf16.mxu0 0
      %400 = vmatpush1.bf16.msra.mxu0 0
      %401 = vmatprep.subr.bf16.mxu0 0
      %402 = vmatpush1.bf16.msra.mxu0 0
      %403 = vmatprep.subr.bf16.mxu0 0
      %404 = vmatpush1.bf16.msra.mxu0 0
      %405 = vmatprep.subr.bf16.mxu0 0
      %406 = vmatpush1.bf16.msra.mxu0 0
      %407 = vmatprep.subr.bf16.mxu0 %v350
      %408 = vmatpush1.bf16.msra.mxu0 %v347
      %409 = vmatprep.subr.bf16.mxu0 0
      %410 = vmatpush2.bf16.msra.mxu0 0
      %411 = vmatprep.subr.bf16.mxu0 0
      %412 = vmatpush2.bf16.msra.mxu0 0
      %413 = vmatprep.subr.bf16.mxu0 0
      %414 = vmatpush2.bf16.msra.mxu0 0
      %415 = vmatprep.subr.bf16.mxu0 0
      %416 = vmatpush2.bf16.msra.mxu0 0
      %417 = vmatprep.subr.bf16.mxu0 0
      %418 = vmatpush2.bf16.msra.mxu0 0
      %419 = vmatprep.subr.bf16.mxu0 0
      %420 = vmatpush2.bf16.msra.mxu0 0
      %421 = vmatprep.subr.bf16.mxu0 0
      %422 = vmatpush2.bf16.msra.mxu0 0
      %423 = vmatprep.subr.bf16.mxu0 0
      %424 = vmatpush2.bf16.msra.mxu0 0
      %425 = vmatprep.mubr.bf16.mxu0 0
      %426 = vmatmul.mubr.bf16.gmra.mxu0 %v338
      %v427 = vpop.f32.mrf.mxu0
      %v428 = vadd.f32 %v319, %v427
      %v429 = vpop.f32.mrf.mxu0
      %v430 = vadd.f32 %v321, %v429
      %v431 = vpop.f32.mrf.mxu0
      %v432 = vpop.f32.mrf.mxu0
      %433 = vdwg.mxu0
      %s434 = scalar_lea.vmem %s1, 8
      %v435 = vld [vmem:[%s434] sm:$0xf]
      %436 = vrot.lane.b32.xlu0 %v210, 105
      %v437 = vpop.permute.xlu0 %436
      %438 = vrot.lane.b32.xlu0 %v211, 105
      %v439 = vpop.permute.xlu0 %438
      %440 = vrot.lane.b32.xlu0 %v212, 105
      %v441 = vpop.permute.xlu0 %440
      %442 = vrot.lane.b32.xlu0 %v213, 105
      %v443 = vpop.permute.xlu0 %442
      %vm444 = vcmask 859136
      %v445 = vsel %vm444, %v437, %v439
      %v446 = vsel %vm444, %v439, %v441
      %v447 = vsel %vm444, %v441, %v443
      %v449 = vsel %vm226, %v435, 0
      %v452 = vsel %vm230, %v445, 0
      %v455 = vsel %vm230, %v446, 0
      %v458 = vsel %vm230, %v447, 0
      %v461 = vsel %vm230, %v443, 0
      %463 = vmatprep.subr.bf16.mxu0 0
      %464 = vmatpush1.bf16.msra.mxu0 0
      %465 = vmatprep.subr.bf16.mxu0 0
      %466 = vmatpush1.bf16.msra.mxu0 0
      %467 = vmatprep.subr.bf16.mxu0 0
      %468 = vmatpush1.bf16.msra.mxu0 0
      %469 = vmatprep.subr.bf16.mxu0 0
      %470 = vmatpush1.bf16.msra.mxu0 0
      %471 = vmatprep.subr.bf16.mxu0 0
      %472 = vmatpush1.bf16.msra.mxu0 0
      %473 = vmatprep.subr.bf16.mxu0 0
      %474 = vmatpush1.bf16.msra.mxu0 0
      %475 = vmatprep.subr.bf16.mxu0 0
      %476 = vmatpush1.bf16.msra.mxu0 0
      %477 = vmatprep.subr.bf16.mxu0 %v455
      %478 = vmatpush1.bf16.msra.mxu0 %v452
      %479 = vmatprep.subr.bf16.mxu0 0
      %480 = vmatpush2.bf16.msra.mxu0 0
      %481 = vmatprep.subr.bf16.mxu0 0
      %482 = vmatpush2.bf16.msra.mxu0 0
      %483 = vmatprep.subr.bf16.mxu0 0
      %484 = vmatpush2.bf16.msra.mxu0 0
      %485 = vmatprep.subr.bf16.mxu0 0
      %486 = vmatpush2.bf16.msra.mxu0 0
      %487 = vmatprep.subr.bf16.mxu0 0
      %488 = vmatpush2.bf16.msra.mxu0 0
      %489 = vmatprep.subr.bf16.mxu0 0
      %490 = vmatpush2.bf16.msra.mxu0 0
      %491 = vmatprep.subr.bf16.mxu0 0
      %492 = vmatpush2.bf16.msra.mxu0 0
      %493 = vmatprep.subr.bf16.mxu0 0
      %494 = vmatpush2.bf16.msra.mxu0 0
      %495 = vmatprep.mubr.bf16.mxu0 0
      %496 = vmatmul.mubr.bf16.gmra.mxu0 %v449
      %v497 = vpop.f32.mrf.mxu0
      %v498 = vadd.f32 0.0, %v497
      %v499 = vpop.f32.mrf.mxu0
      %v500 = vadd.f32 0.0, %v499
      %v501 = vpop.f32.mrf.mxu0
      %v502 = vpop.f32.mrf.mxu0
      %503 = vdwg.mxu0
      %504 = vmatprep.subr.bf16.mxu0 0
      %505 = vmatpush1.bf16.msra.mxu0 0
      %506 = vmatprep.subr.bf16.mxu0 0
      %507 = vmatpush1.bf16.msra.mxu0 0
      %508 = vmatprep.subr.bf16.mxu0 0
      %509 = vmatpush1.bf16.msra.mxu0 0
      %510 = vmatprep.subr.bf16.mxu0 0
      %511 = vmatpush1.bf16.msra.mxu0 0
      %512 = vmatprep.subr.bf16.mxu0 0
      %513 = vmatpush1.bf16.msra.mxu0 0
      %514 = vmatprep.subr.bf16.mxu0 0
      %515 = vmatpush1.bf16.msra.mxu0 0
      %516 = vmatprep.subr.bf16.mxu0 0
      %517 = vmatpush1.bf16.msra.mxu0 0
      %518 = vmatprep.subr.bf16.mxu0 %v461
      %519 = vmatpush1.bf16.msra.mxu0 %v458
      %520 = vmatprep.subr.bf16.mxu0 0
      %521 = vmatpush2.bf16.msra.mxu0 0
      %522 = vmatprep.subr.bf16.mxu0 0
      %523 = vmatpush2.bf16.msra.mxu0 0
      %524 = vmatprep.subr.bf16.mxu0 0
      %525 = vmatpush2.bf16.msra.mxu0 0
      %526 = vmatprep.subr.bf16.mxu0 0
      %527 = vmatpush2.bf16.msra.mxu0 0
      %528 = vmatprep.subr.bf16.mxu0 0
      %529 = vmatpush2.bf16.msra.mxu0 0
      %530 = vmatprep.subr.bf16.mxu0 0
      %531 = vmatpush2.bf16.msra.mxu0 0
      %532 = vmatprep.subr.bf16.mxu0 0
      %533 = vmatpush2.bf16.msra.mxu0 0
      %534 = vmatprep.subr.bf16.mxu0 0
      %535 = vmatpush2.bf16.msra.mxu0 0
      %536 = vmatprep.mubr.bf16.mxu0 0
      %537 = vmatmul.mubr.bf16.gmra.mxu0 %v449
      %v538 = vpop.f32.mrf.mxu0
      %v539 = vadd.f32 0.0, %v538
      %v540 = vpop.f32.mrf.mxu0
      %v541 = vadd.f32 0.0, %v540
      %v542 = vpop.f32.mrf.mxu0
      %v543 = vpop.f32.mrf.mxu0
      %544 = vdwg.mxu0
      %v545 = vadd.f32 %v387, %v498
      %v546 = vadd.f32 %v389, %v500
      %v547 = vadd.f32 %v428, %v539
      %v548 = vadd.f32 %v430, %v541
      %s549 = scalar_lea.vmem %s1, 12
      %v550 = vld [vmem:[%s549] sm:$0xf]
      %551 = vrot.lane.b32.xlu0 %v210, 87
      %v552 = vpop.permute.xlu0 %551
      %553 = vrot.lane.b32.xlu0 %v211, 87
      %v554 = vpop.permute.xlu0 %553
      %555 = vrot.lane.b32.xlu0 %v212, 87
      %v556 = vpop.permute.xlu0 %555
      %557 = vrot.lane.b32.xlu0 %v213, 87
      %v558 = vpop.permute.xlu0 %557
      %vm559 = vcmask 711680
      %v560 = vsel %vm559, %v552, %v554
      %v561 = vsel %vm559, %v554, %v556
      %v562 = vsel %vm559, %v556, %v558
      %v564 = vsel %vm226, %v550, 0
      %v567 = vsel %vm230, %v560, 0
      %v570 = vsel %vm230, %v561, 0
      %v573 = vsel %vm230, %v562, 0
      %v576 = vsel %vm230, %v558, 0
      %578 = vmatprep.subr.bf16.mxu0 0
      %579 = vmatpush1.bf16.msra.mxu0 0
      %580 = vmatprep.subr.bf16.mxu0 0
      %581 = vmatpush1.bf16.msra.mxu0 0
      %582 = vmatprep.subr.bf16.mxu0 0
      %583 = vmatpush1.bf16.msra.mxu0 0
      %584 = vmatprep.subr.bf16.mxu0 0
      %585 = vmatpush1.bf16.msra.mxu0 0
      %586 = vmatprep.subr.bf16.mxu0 0
      %587 = vmatpush1.bf16.msra.mxu0 0
      %588 = vmatprep.subr.bf16.mxu0 0
      %589 = vmatpush1.bf16.msra.mxu0 0
      %590 = vmatprep.subr.bf16.mxu0 0
      %591 = vmatpush1.bf16.msra.mxu0 0
      %592 = vmatprep.subr.bf16.mxu0 %v570
      %593 = vmatpush1.bf16.msra.mxu0 %v567
      %594 = vmatprep.subr.bf16.mxu0 0
      %595 = vmatpush2.bf16.msra.mxu0 0
      %596 = vmatprep.subr.bf16.mxu0 0
      %597 = vmatpush2.bf16.msra.mxu0 0
      %598 = vmatprep.subr.bf16.mxu0 0
      %599 = vmatpush2.bf16.msra.mxu0 0
      %600 = vmatprep.subr.bf16.mxu0 0
      %601 = vmatpush2.bf16.msra.mxu0 0
      %602 = vmatprep.subr.bf16.mxu0 0
      %603 = vmatpush2.bf16.msra.mxu0 0
      %604 = vmatprep.subr.bf16.mxu0 0
      %605 = vmatpush2.bf16.msra.mxu0 0
      %606 = vmatprep.subr.bf16.mxu0 0
      %607 = vmatpush2.bf16.msra.mxu0 0
      %608 = vmatprep.subr.bf16.mxu0 0
      %609 = vmatpush2.bf16.msra.mxu0 0
      %610 = vmatprep.mubr.bf16.mxu0 0
      %611 = vmatmul.mubr.bf16.gmra.mxu0 %v564
      %v612 = vpop.f32.mrf.mxu0
      %v613 = vadd.f32 0.0, %v612
      %v614 = vpop.f32.mrf.mxu0
      %v615 = vadd.f32 0.0, %v614
      %v616 = vpop.f32.mrf.mxu0
      %v617 = vpop.f32.mrf.mxu0
      %618 = vdwg.mxu0
      %619 = vmatprep.subr.bf16.mxu0 0
      %620 = vmatpush1.bf16.msra.mxu0 0
      %621 = vmatprep.subr.bf16.mxu0 0
      %622 = vmatpush1.bf16.msra.mxu0 0
      %623 = vmatprep.subr.bf16.mxu0 0
      %624 = vmatpush1.bf16.msra.mxu0 0
      %625 = vmatprep.subr.bf16.mxu0 0
      %626 = vmatpush1.bf16.msra.mxu0 0
      %627 = vmatprep.subr.bf16.mxu0 0
      %628 = vmatpush1.bf16.msra.mxu0 0
      %629 = vmatprep.subr.bf16.mxu0 0
      %630 = vmatpush1.bf16.msra.mxu0 0
      %631 = vmatprep.subr.bf16.mxu0 0
      %632 = vmatpush1.bf16.msra.mxu0 0
      %633 = vmatprep.subr.bf16.mxu0 %v576
      %634 = vmatpush1.bf16.msra.mxu0 %v573
      %635 = vmatprep.subr.bf16.mxu0 0
      %636 = vmatpush2.bf16.msra.mxu0 0
      %637 = vmatprep.subr.bf16.mxu0 0
      %638 = vmatpush2.bf16.msra.mxu0 0
      %639 = vmatprep.subr.bf16.mxu0 0
      %640 = vmatpush2.bf16.msra.mxu0 0
      %641 = vmatprep.subr.bf16.mxu0 0
      %642 = vmatpush2.bf16.msra.mxu0 0
      %643 = vmatprep.subr.bf16.mxu0 0
      %644 = vmatpush2.bf16.msra.mxu0 0
      %645 = vmatprep.subr.bf16.mxu0 0
      %646 = vmatpush2.bf16.msra.mxu0 0
      %647 = vmatprep.subr.bf16.mxu0 0
      %648 = vmatpush2.bf16.msra.mxu0 0
      %649 = vmatprep.subr.bf16.mxu0 0
      %650 = vmatpush2.bf16.msra.mxu0 0
      %651 = vmatprep.mubr.bf16.mxu0 0
      %652 = vmatmul.mubr.bf16.gmra.mxu0 %v564
      %v653 = vpop.f32.mrf.mxu0
      %v654 = vadd.f32 0.0, %v653
      %v655 = vpop.f32.mrf.mxu0
      %v656 = vadd.f32 0.0, %v655
      %v657 = vpop.f32.mrf.mxu0
      %v658 = vpop.f32.mrf.mxu0
      %659 = vdwg.mxu0
      %v660 = vadd.f32 %v545, %v613
      %v661 = vadd.f32 %v546, %v615
      %v662 = vadd.f32 %v547, %v654
      %v663 = vadd.f32 %v548, %v656
      %s664 = scalar_lea.vmem %s1, 16
      %v665 = vld [vmem:[%s664] sm:$0xf]
      %666 = vrot.lane.b32.xlu0 %v210, 86
      %v667 = vpop.permute.xlu0 %666
      %668 = vrot.lane.b32.xlu0 %v211, 86
      %v669 = vpop.permute.xlu0 %668
      %670 = vrot.lane.b32.xlu0 %v212, 86
      %v671 = vpop.permute.xlu0 %670
      %672 = vrot.lane.b32.xlu0 %v213, 86
      %v673 = vpop.permute.xlu0 %672
      %vm674 = vcmask 703488
      %v675 = vsel %vm674, %v667, %v669
      %v676 = vsel %vm674, %v669, %v671
      %v677 = vsel %vm674, %v671, %v673
      %v679 = vsel %vm226, %v665, 0
      %v682 = vsel %vm230, %v675, 0
      %v685 = vsel %vm230, %v676, 0
      %v688 = vsel %vm230, %v677, 0
      %v691 = vsel %vm230, %v673, 0
      %693 = vmatprep.subr.bf16.mxu0 0
      %694 = vmatpush1.bf16.msra.mxu0 0
      %695 = vmatprep.subr.bf16.mxu0 0
      %696 = vmatpush1.bf16.msra.mxu0 0
      %697 = vmatprep.subr.bf16.mxu0 0
      %698 = vmatpush1.bf16.msra.mxu0 0
      %699 = vmatprep.subr.bf16.mxu0 0
      %700 = vmatpush1.bf16.msra.mxu0 0
      %701 = vmatprep.subr.bf16.mxu0 0
      %702 = vmatpush1.bf16.msra.mxu0 0
      %703 = vmatprep.subr.bf16.mxu0 0
      %704 = vmatpush1.bf16.msra.mxu0 0
      %705 = vmatprep.subr.bf16.mxu0 0
      %706 = vmatpush1.bf16.msra.mxu0 0
      %707 = vmatprep.subr.bf16.mxu0 %v685
      %708 = vmatpush1.bf16.msra.mxu0 %v682
      %709 = vmatprep.subr.bf16.mxu0 0
      %710 = vmatpush2.bf16.msra.mxu0 0
      %711 = vmatprep.subr.bf16.mxu0 0
      %712 = vmatpush2.bf16.msra.mxu0 0
      %713 = vmatprep.subr.bf16.mxu0 0
      %714 = vmatpush2.bf16.msra.mxu0 0
      %715 = vmatprep.subr.bf16.mxu0 0
      %716 = vmatpush2.bf16.msra.mxu0 0
      %717 = vmatprep.subr.bf16.mxu0 0
      %718 = vmatpush2.bf16.msra.mxu0 0
      %719 = vmatprep.subr.bf16.mxu0 0
      %720 = vmatpush2.bf16.msra.mxu0 0
      %721 = vmatprep.subr.bf16.mxu0 0
      %722 = vmatpush2.bf16.msra.mxu0 0
      %723 = vmatprep.subr.bf16.mxu0 0
      %724 = vmatpush2.bf16.msra.mxu0 0
      %725 = vmatprep.mubr.bf16.mxu0 0
      %726 = vmatmul.mubr.bf16.gmra.mxu0 %v679
      %v727 = vpop.f32.mrf.mxu0
      %v728 = vadd.f32 0.0, %v727
      %v729 = vpop.f32.mrf.mxu0
      %v730 = vadd.f32 0.0, %v729
      %v731 = vpop.f32.mrf.mxu0
      %v732 = vpop.f32.mrf.mxu0
      %733 = vdwg.mxu0
      %734 = vmatprep.subr.bf16.mxu0 0
      %735 = vmatpush1.bf16.msra.mxu0 0
      %736 = vmatprep.subr.bf16.mxu0 0
      %737 = vmatpush1.bf16.msra.mxu0 0
      %738 = vmatprep.subr.bf16.mxu0 0
      %739 = vmatpush1.bf16.msra.mxu0 0
      %740 = vmatprep.subr.bf16.mxu0 0
      %741 = vmatpush1.bf16.msra.mxu0 0
      %742 = vmatprep.subr.bf16.mxu0 0
      %743 = vmatpush1.bf16.msra.mxu0 0
      %744 = vmatprep.subr.bf16.mxu0 0
      %745 = vmatpush1.bf16.msra.mxu0 0
      %746 = vmatprep.subr.bf16.mxu0 0
      %747 = vmatpush1.bf16.msra.mxu0 0
      %748 = vmatprep.subr.bf16.mxu0 %v691
      %749 = vmatpush1.bf16.msra.mxu0 %v688
      %750 = vmatprep.subr.bf16.mxu0 0
      %751 = vmatpush2.bf16.msra.mxu0 0
      %752 = vmatprep.subr.bf16.mxu0 0
      %753 = vmatpush2.bf16.msra.mxu0 0
      %754 = vmatprep.subr.bf16.mxu0 0
      %755 = vmatpush2.bf16.msra.mxu0 0
      %756 = vmatprep.subr.bf16.mxu0 0
      %757 = vmatpush2.bf16.msra.mxu0 0
      %758 = vmatprep.subr.bf16.mxu0 0
      %759 = vmatpush2.bf16.msra.mxu0 0
      %760 = vmatprep.subr.bf16.mxu0 0
      %761 = vmatpush2.bf16.msra.mxu0 0
      %762 = vmatprep.subr.bf16.mxu0 0
      %763 = vmatpush2.bf16.msra.mxu0 0
      %764 = vmatprep.subr.bf16.mxu0 0
      %765 = vmatpush2.bf16.msra.mxu0 0
      %766 = vmatprep.mubr.bf16.mxu0 0
      %767 = vmatmul.mubr.bf16.gmra.mxu0 %v679
      %v768 = vpop.f32.mrf.mxu0
      %v769 = vadd.f32 0.0, %v768
      %v770 = vpop.f32.mrf.mxu0
      %v771 = vadd.f32 0.0, %v770
      %v772 = vpop.f32.mrf.mxu0
      %v773 = vpop.f32.mrf.mxu0
      %774 = vdwg.mxu0
      %v775 = vadd.f32 %v660, %v728
      %v776 = vadd.f32 %v661, %v730
      %v777 = vadd.f32 %v662, %v769
      %v778 = vadd.f32 %v663, %v771
      %s779 = scalar_lea.vmem %s1, 20
      %v780 = vld [vmem:[%s779] sm:$0xf]
      %781 = vrot.lane.b32.xlu0 %v210, 85
      %v782 = vpop.permute.xlu0 %781
      %783 = vrot.lane.b32.xlu0 %v211, 85
      %v784 = vpop.permute.xlu0 %783
      %785 = vrot.lane.b32.xlu0 %v212, 85
      %v786 = vpop.permute.xlu0 %785
      %787 = vrot.lane.b32.xlu0 %v213, 85
      %v788 = vpop.permute.xlu0 %787
      %vm789 = vcmask 695296
      %v790 = vsel %vm789, %v782, %v784
      %v791 = vsel %vm789, %v784, %v786
      %v792 = vsel %vm789, %v786, %v788
      %v794 = vsel %vm226, %v780, 0
      %v797 = vsel %vm230, %v790, 0
      %v800 = vsel %vm230, %v791, 0
      %v803 = vsel %vm230, %v792, 0
      %v806 = vsel %vm230, %v788, 0
      %808 = vmatprep.subr.bf16.mxu0 0
      %809 = vmatpush1.bf16.msra.mxu0 0
      %810 = vmatprep.subr.bf16.mxu0 0
      %811 = vmatpush1.bf16.msra.mxu0 0
      %812 = vmatprep.subr.bf16.mxu0 0
      %813 = vmatpush1.bf16.msra.mxu0 0
      %814 = vmatprep.subr.bf16.mxu0 0
      %815 = vmatpush1.bf16.msra.mxu0 0
      %816 = vmatprep.subr.bf16.mxu0 0
      %817 = vmatpush1.bf16.msra.mxu0 0
      %818 = vmatprep.subr.bf16.mxu0 0
      %819 = vmatpush1.bf16.msra.mxu0 0
      %820 = vmatprep.subr.bf16.mxu0 0
      %821 = vmatpush1.bf16.msra.mxu0 0
      %822 = vmatprep.subr.bf16.mxu0 %v800
      %823 = vmatpush1.bf16.msra.mxu0 %v797
      %824 = vmatprep.subr.bf16.mxu0 0
      %825 = vmatpush2.bf16.msra.mxu0 0
      %826 = vmatprep.subr.bf16.mxu0 0
      %827 = vmatpush2.bf16.msra.mxu0 0
      %828 = vmatprep.subr.bf16.mxu0 0
      %829 = vmatpush2.bf16.msra.mxu0 0
      %830 = vmatprep.subr.bf16.mxu0 0
      %831 = vmatpush2.bf16.msra.mxu0 0
      %832 = vmatprep.subr.bf16.mxu0 0
      %833 = vmatpush2.bf16.msra.mxu0 0
      %834 = vmatprep.subr.bf16.mxu0 0
      %835 = vmatpush2.bf16.msra.mxu0 0
      %836 = vmatprep.subr.bf16.mxu0 0
      %837 = vmatpush2.bf16.msra.mxu0 0
      %838 = vmatprep.subr.bf16.mxu0 0
      %839 = vmatpush2.bf16.msra.mxu0 0
      %840 = vmatprep.mubr.bf16.mxu0 0
      %841 = vmatmul.mubr.bf16.gmra.mxu0 %v794
      %v842 = vpop.f32.mrf.mxu0
      %v843 = vadd.f32 0.0, %v842
      %v844 = vpop.f32.mrf.mxu0
      %v845 = vadd.f32 0.0, %v844
      %v846 = vpop.f32.mrf.mxu0
      %v847 = vpop.f32.mrf.mxu0
      %848 = vdwg.mxu0
      %849 = vmatprep.subr.bf16.mxu0 0
      %850 = vmatpush1.bf16.msra.mxu0 0
      %851 = vmatprep.subr.bf16.mxu0 0
      %852 = vmatpush1.bf16.msra.mxu0 0
      %853 = vmatprep.subr.bf16.mxu0 0
      %854 = vmatpush1.bf16.msra.mxu0 0
      %855 = vmatprep.subr.bf16.mxu0 0
      %856 = vmatpush1.bf16.msra.mxu0 0
      %857 = vmatprep.subr.bf16.mxu0 0
      %858 = vmatpush1.bf16.msra.mxu0 0
      %859 = vmatprep.subr.bf16.mxu0 0
      %860 = vmatpush1.bf16.msra.mxu0 0
      %861 = vmatprep.subr.bf16.mxu0 0
      %862 = vmatpush1.bf16.msra.mxu0 0
      %863 = vmatprep.subr.bf16.mxu0 %v806
      %864 = vmatpush1.bf16.msra.mxu0 %v803
      %865 = vmatprep.subr.bf16.mxu0 0
      %866 = vmatpush2.bf16.msra.mxu0 0
      %867 = vmatprep.subr.bf16.mxu0 0
      %868 = vmatpush2.bf16.msra.mxu0 0
      %869 = vmatprep.subr.bf16.mxu0 0
      %870 = vmatpush2.bf16.msra.mxu0 0
      %871 = vmatprep.subr.bf16.mxu0 0
      %872 = vmatpush2.bf16.msra.mxu0 0
      %873 = vmatprep.subr.bf16.mxu0 0
      %874 = vmatpush2.bf16.msra.mxu0 0
      %875 = vmatprep.subr.bf16.mxu0 0
      %876 = vmatpush2.bf16.msra.mxu0 0
      %877 = vmatprep.subr.bf16.mxu0 0
      %878 = vmatpush2.bf16.msra.mxu0 0
      %879 = vmatprep.subr.bf16.mxu0 0
      %880 = vmatpush2.bf16.msra.mxu0 0
      %881 = vmatprep.mubr.bf16.mxu0 0
      %882 = vmatmul.mubr.bf16.gmra.mxu0 %v794
      %v883 = vpop.f32.mrf.mxu0
      %v884 = vadd.f32 0.0, %v883
      %v885 = vpop.f32.mrf.mxu0
      %v886 = vadd.f32 0.0, %v885
      %v887 = vpop.f32.mrf.mxu0
      %v888 = vpop.f32.mrf.mxu0
      %889 = vdwg.mxu0
      %v890 = vadd.f32 %v775, %v843
      %v891 = vadd.f32 %v776, %v845
      %v892 = vadd.f32 %v777, %v884
      %v893 = vadd.f32 %v778, %v886
      %s894 = scalar_lea.vmem %s1, 24
      %v895 = vld [vmem:[%s894] sm:$0xf]
      %896 = vrot.lane.b32.xlu0 %v210, 67
      %v897 = vpop.permute.xlu0 %896
      %898 = vrot.lane.b32.xlu0 %v211, 67
      %v899 = vpop.permute.xlu0 %898
      %900 = vrot.lane.b32.xlu0 %v212, 67
      %v901 = vpop.permute.xlu0 %900
      %902 = vrot.lane.b32.xlu0 %v213, 67
      %v903 = vpop.permute.xlu0 %902
      %vm904 = vcmask 547840
      %v905 = vsel %vm904, %v897, %v899
      %v906 = vsel %vm904, %v899, %v901
      %v907 = vsel %vm904, %v901, %v903
      %v909 = vsel %vm226, %v895, 0
      %v912 = vsel %vm230, %v905, 0
      %v915 = vsel %vm230, %v906, 0
      %v918 = vsel %vm230, %v907, 0
      %v921 = vsel %vm230, %v903, 0
      %923 = vmatprep.subr.bf16.mxu0 0
      %924 = vmatpush1.bf16.msra.mxu0 0
      %925 = vmatprep.subr.bf16.mxu0 0
      %926 = vmatpush1.bf16.msra.mxu0 0
      %927 = vmatprep.subr.bf16.mxu0 0
      %928 = vmatpush1.bf16.msra.mxu0 0
      %929 = vmatprep.subr.bf16.mxu0 0
      %930 = vmatpush1.bf16.msra.mxu0 0
      %931 = vmatprep.subr.bf16.mxu0 0
      %932 = vmatpush1.bf16.msra.mxu0 0
      %933 = vmatprep.subr.bf16.mxu0 0
      %934 = vmatpush1.bf16.msra.mxu0 0
      %935 = vmatprep.subr.bf16.mxu0 0
      %936 = vmatpush1.bf16.msra.mxu0 0
      %937 = vmatprep.subr.bf16.mxu0 %v915
      %938 = vmatpush1.bf16.msra.mxu0 %v912
      %939 = vmatprep.subr.bf16.mxu0 0
      %940 = vmatpush2.bf16.msra.mxu0 0
      %941 = vmatprep.subr.bf16.mxu0 0
      %942 = vmatpush2.bf16.msra.mxu0 0
      %943 = vmatprep.subr.bf16.mxu0 0
      %944 = vmatpush2.bf16.msra.mxu0 0
      %945 = vmatprep.subr.bf16.mxu0 0
      %946 = vmatpush2.bf16.msra.mxu0 0
      %947 = vmatprep.subr.bf16.mxu0 0
      %948 = vmatpush2.bf16.msra.mxu0 0
      %949 = vmatprep.subr.bf16.mxu0 0
      %950 = vmatpush2.bf16.msra.mxu0 0
      %951 = vmatprep.subr.bf16.mxu0 0
      %952 = vmatpush2.bf16.msra.mxu0 0
      %953 = vmatprep.subr.bf16.mxu0 0
      %954 = vmatpush2.bf16.msra.mxu0 0
      %955 = vmatprep.mubr.bf16.mxu0 0
      %956 = vmatmul.mubr.bf16.gmra.mxu0 %v909
      %v957 = vpop.f32.mrf.mxu0
      %v958 = vadd.f32 0.0, %v957
      %v959 = vpop.f32.mrf.mxu0
      %v960 = vadd.f32 0.0, %v959
      %v961 = vpop.f32.mrf.mxu0
      %v962 = vpop.f32.mrf.mxu0
      %963 = vdwg.mxu0
      %964 = vmatprep.subr.bf16.mxu0 0
      %965 = vmatpush1.bf16.msra.mxu0 0
      %966 = vmatprep.subr.bf16.mxu0 0
      %967 = vmatpush1.bf16.msra.mxu0 0
      %968 = vmatprep.subr.bf16.mxu0 0
      %969 = vmatpush1.bf16.msra.mxu0 0
      %970 = vmatprep.subr.bf16.mxu0 0
      %971 = vmatpush1.bf16.msra.mxu0 0
      %972 = vmatprep.subr.bf16.mxu0 0
      %973 = vmatpush1.bf16.msra.mxu0 0
      %974 = vmatprep.subr.bf16.mxu0 0
      %975 = vmatpush1.bf16.msra.mxu0 0
      %976 = vmatprep.subr.bf16.mxu0 0
      %977 = vmatpush1.bf16.msra.mxu0 0
      %978 = vmatprep.subr.bf16.mxu0 %v921
      %979 = vmatpush1.bf16.msra.mxu0 %v918
      %980 = vmatprep.subr.bf16.mxu0 0
      %981 = vmatpush2.bf16.msra.mxu0 0
      %982 = vmatprep.subr.bf16.mxu0 0
      %983 = vmatpush2.bf16.msra.mxu0 0
      %984 = vmatprep.subr.bf16.mxu0 0
      %985 = vmatpush2.bf16.msra.mxu0 0
      %986 = vmatprep.subr.bf16.mxu0 0
      %987 = vmatpush2.bf16.msra.mxu0 0
      %988 = vmatprep.subr.bf16.mxu0 0
      %989 = vmatpush2.bf16.msra.mxu0 0
      %990 = vmatprep.subr.bf16.mxu0 0
      %991 = vmatpush2.bf16.msra.mxu0 0
      %992 = vmatprep.subr.bf16.mxu0 0
      %993 = vmatpush2.bf16.msra.mxu0 0
      %994 = vmatprep.subr.bf16.mxu0 0
      %995 = vmatpush2.bf16.msra.mxu0 0
      %996 = vmatprep.mubr.bf16.mxu0 0
      %997 = vmatmul.mubr.bf16.gmra.mxu0 %v909
      %v998 = vpop.f32.mrf.mxu0
      %v999 = vadd.f32 0.0, %v998
      %v1000 = vpop.f32.mrf.mxu0
      %v1001 = vadd.f32 0.0, %v1000
      %v1002 = vpop.f32.mrf.mxu0
      %v1003 = vpop.f32.mrf.mxu0
      %1004 = vdwg.mxu0
      %v1005 = vadd.f32 %v890, %v958
      %v1006 = vadd.f32 %v891, %v960
      %v1007 = vadd.f32 %v892, %v999
      %v1008 = vadd.f32 %v893, %v1001
      %s1009 = scalar_lea.vmem %s1, 28
      %v1010 = vld [vmem:[%s1009] sm:$0xf]
      %1011 = vrot.lane.b32.xlu0 %v210, 66
      %v1012 = vpop.permute.xlu0 %1011
      %1013 = vrot.lane.b32.xlu0 %v211, 66
      %v1014 = vpop.permute.xlu0 %1013
      %1015 = vrot.lane.b32.xlu0 %v212, 66
      %v1016 = vpop.permute.xlu0 %1015
      %1017 = vrot.lane.b32.xlu0 %v213, 66
      %v1018 = vpop.permute.xlu0 %1017
      %vm1019 = vcmask 539648
      %v1020 = vsel %vm1019, %v1012, %v1014
      %v1021 = vsel %vm1019, %v1014, %v1016
      %v1022 = vsel %vm1019, %v1016, %v1018
      %v1024 = vsel %vm226, %v1010, 0
      %v1027 = vsel %vm230, %v1020, 0
      %v1030 = vsel %vm230, %v1021, 0
      %v1033 = vsel %vm230, %v1022, 0
      %v1036 = vsel %vm230, %v1018, 0
      %1038 = vmatprep.subr.bf16.mxu0 0
      %1039 = vmatpush1.bf16.msra.mxu0 0
      %1040 = vmatprep.subr.bf16.mxu0 0
      %1041 = vmatpush1.bf16.msra.mxu0 0
      %1042 = vmatprep.subr.bf16.mxu0 0
      %1043 = vmatpush1.bf16.msra.mxu0 0
      %1044 = vmatprep.subr.bf16.mxu0 0
      %1045 = vmatpush1.bf16.msra.mxu0 0
      %1046 = vmatprep.subr.bf16.mxu0 0
      %1047 = vmatpush1.bf16.msra.mxu0 0
      %1048 = vmatprep.subr.bf16.mxu0 0
      %1049 = vmatpush1.bf16.msra.mxu0 0
      %1050 = vmatprep.subr.bf16.mxu0 0
      %1051 = vmatpush1.bf16.msra.mxu0 0
      %1052 = vmatprep.subr.bf16.mxu0 %v1030
      %1053 = vmatpush1.bf16.msra.mxu0 %v1027
      %1054 = vmatprep.subr.bf16.mxu0 0
      %1055 = vmatpush2.bf16.msra.mxu0 0
      %1056 = vmatprep.subr.bf16.mxu0 0
      %1057 = vmatpush2.bf16.msra.mxu0 0
      %1058 = vmatprep.subr.bf16.mxu0 0
      %1059 = vmatpush2.bf16.msra.mxu0 0
      %1060 = vmatprep.subr.bf16.mxu0 0
      %1061 = vmatpush2.bf16.msra.mxu0 0
      %1062 = vmatprep.subr.bf16.mxu0 0
      %1063 = vmatpush2.bf16.msra.mxu0 0
      %1064 = vmatprep.subr.bf16.mxu0 0
      %1065 = vmatpush2.bf16.msra.mxu0 0
      %1066 = vmatprep.subr.bf16.mxu0 0
      %1067 = vmatpush2.bf16.msra.mxu0 0
      %1068 = vmatprep.subr.bf16.mxu0 0
      %1069 = vmatpush2.bf16.msra.mxu0 0
      %1070 = vmatprep.mubr.bf16.mxu0 0
      %1071 = vmatmul.mubr.bf16.gmra.mxu0 %v1024
      %v1072 = vpop.f32.mrf.mxu0
      %v1073 = vadd.f32 0.0, %v1072
      %v1074 = vpop.f32.mrf.mxu0
      %v1075 = vadd.f32 0.0, %v1074
      %v1076 = vpop.f32.mrf.mxu0
      %v1077 = vpop.f32.mrf.mxu0
      %1078 = vdwg.mxu0
      %1079 = vmatprep.subr.bf16.mxu0 0
      %1080 = vmatpush1.bf16.msra.mxu0 0
      %1081 = vmatprep.subr.bf16.mxu0 0
      %1082 = vmatpush1.bf16.msra.mxu0 0
      %1083 = vmatprep.subr.bf16.mxu0 0
      %1084 = vmatpush1.bf16.msra.mxu0 0
      %1085 = vmatprep.subr.bf16.mxu0 0
      %1086 = vmatpush1.bf16.msra.mxu0 0
      %1087 = vmatprep.subr.bf16.mxu0 0
      %1088 = vmatpush1.bf16.msra.mxu0 0
      %1089 = vmatprep.subr.bf16.mxu0 0
      %1090 = vmatpush1.bf16.msra.mxu0 0
      %1091 = vmatprep.subr.bf16.mxu0 0
      %1092 = vmatpush1.bf16.msra.mxu0 0
      %1093 = vmatprep.subr.bf16.mxu0 %v1036
      %1094 = vmatpush1.bf16.msra.mxu0 %v1033
      %1095 = vmatprep.subr.bf16.mxu0 0
      %1096 = vmatpush2.bf16.msra.mxu0 0
      %1097 = vmatprep.subr.bf16.mxu0 0
      %1098 = vmatpush2.bf16.msra.mxu0 0
      %1099 = vmatprep.subr.bf16.mxu0 0
      %1100 = vmatpush2.bf16.msra.mxu0 0
      %1101 = vmatprep.subr.bf16.mxu0 0
      %1102 = vmatpush2.bf16.msra.mxu0 0
      %1103 = vmatprep.subr.bf16.mxu0 0
      %1104 = vmatpush2.bf16.msra.mxu0 0
      %1105 = vmatprep.subr.bf16.mxu0 0
      %1106 = vmatpush2.bf16.msra.mxu0 0
      %1107 = vmatprep.subr.bf16.mxu0 0
      %1108 = vmatpush2.bf16.msra.mxu0 0
      %1109 = vmatprep.subr.bf16.mxu0 0
      %1110 = vmatpush2.bf16.msra.mxu0 0
      %1111 = vmatprep.mubr.bf16.mxu0 0
      %1112 = vmatmul.mubr.bf16.gmra.mxu0 %v1024
      %v1113 = vpop.f32.mrf.mxu0
      %v1114 = vadd.f32 0.0, %v1113
      %v1115 = vpop.f32.mrf.mxu0
      %v1116 = vadd.f32 0.0, %v1115
      %v1117 = vpop.f32.mrf.mxu0
      %v1118 = vpop.f32.mrf.mxu0
      %1119 = vdwg.mxu0
      %v1120 = vadd.f32 %v1005, %v1073
      %v1121 = vadd.f32 %v1006, %v1075
      %v1122 = vadd.f32 %v1007, %v1114
      %v1123 = vadd.f32 %v1008, %v1116
      %s1124 = scalar_lea.vmem %s1, 32
      %v1125 = vld [vmem:[%s1124] sm:$0xf]
      %1126 = vrot.lane.b32.xlu0 %v210, 65
      %v1127 = vpop.permute.xlu0 %1126
      %1128 = vrot.lane.b32.xlu0 %v211, 65
      %v1129 = vpop.permute.xlu0 %1128
      %1130 = vrot.lane.b32.xlu0 %v212, 65
      %v1131 = vpop.permute.xlu0 %1130
      %1132 = vrot.lane.b32.xlu0 %v213, 65
      %v1133 = vpop.permute.xlu0 %1132
      %vm1134 = vcmask 531456
      %v1135 = vsel %vm1134, %v1127, %v1129
      %v1136 = vsel %vm1134, %v1129, %v1131
      %v1137 = vsel %vm1134, %v1131, %v1133
      %v1139 = vsel %vm226, %v1125, 0
      %v1142 = vsel %vm230, %v1135, 0
      %v1145 = vsel %vm230, %v1136, 0
      %v1148 = vsel %vm230, %v1137, 0
      %v1151 = vsel %vm230, %v1133, 0
      %1153 = vmatprep.subr.bf16.mxu0 0
      %1154 = vmatpush1.bf16.msra.mxu0 0
      %1155 = vmatprep.subr.bf16.mxu0 0
      %1156 = vmatpush1.bf16.msra.mxu0 0
      %1157 = vmatprep.subr.bf16.mxu0 0
      %1158 = vmatpush1.bf16.msra.mxu0 0
      %1159 = vmatprep.subr.bf16.mxu0 0
      %1160 = vmatpush1.bf16.msra.mxu0 0
      %1161 = vmatprep.subr.bf16.mxu0 0
      %1162 = vmatpush1.bf16.msra.mxu0 0
      %1163 = vmatprep.subr.bf16.mxu0 0
      %1164 = vmatpush1.bf16.msra.mxu0 0
      %1165 = vmatprep.subr.bf16.mxu0 0
      %1166 = vmatpush1.bf16.msra.mxu0 0
      %1167 = vmatprep.subr.bf16.mxu0 %v1145
      %1168 = vmatpush1.bf16.msra.mxu0 %v1142
      %1169 = vmatprep.subr.bf16.mxu0 0
      %1170 = vmatpush2.bf16.msra.mxu0 0
      %1171 = vmatprep.subr.bf16.mxu0 0
      %1172 = vmatpush2.bf16.msra.mxu0 0
      %1173 = vmatprep.subr.bf16.mxu0 0
      %1174 = vmatpush2.bf16.msra.mxu0 0
      %1175 = vmatprep.subr.bf16.mxu0 0
      %1176 = vmatpush2.bf16.msra.mxu0 0
      %1177 = vmatprep.subr.bf16.mxu0 0
      %1178 = vmatpush2.bf16.msra.mxu0 0
      %1179 = vmatprep.subr.bf16.mxu0 0
      %1180 = vmatpush2.bf16.msra.mxu0 0
      %1181 = vmatprep.subr.bf16.mxu0 0
      %1182 = vmatpush2.bf16.msra.mxu0 0
      %1183 = vmatprep.subr.bf16.mxu0 0
      %1184 = vmatpush2.bf16.msra.mxu0 0
      %1185 = vmatprep.mubr.bf16.mxu0 0
      %1186 = vmatmul.mubr.bf16.gmra.mxu0 %v1139
      %v1187 = vpop.f32.mrf.mxu0
      %v1188 = vadd.f32 0.0, %v1187
      %v1189 = vpop.f32.mrf.mxu0
      %v1190 = vadd.f32 0.0, %v1189
      %v1191 = vpop.f32.mrf.mxu0
      %v1192 = vpop.f32.mrf.mxu0
      %1193 = vdwg.mxu0
      %1194 = vmatprep.subr.bf16.mxu0 0
      %1195 = vmatpush1.bf16.msra.mxu0 0
      %1196 = vmatprep.subr.bf16.mxu0 0
      %1197 = vmatpush1.bf16.msra.mxu0 0
      %1198 = vmatprep.subr.bf16.mxu0 0
      %1199 = vmatpush1.bf16.msra.mxu0 0
      %1200 = vmatprep.subr.bf16.mxu0 0
      %1201 = vmatpush1.bf16.msra.mxu0 0
      %1202 = vmatprep.subr.bf16.mxu0 0
      %1203 = vmatpush1.bf16.msra.mxu0 0
      %1204 = vmatprep.subr.bf16.mxu0 0
      %1205 = vmatpush1.bf16.msra.mxu0 0
      %1206 = vmatprep.subr.bf16.mxu0 0
      %1207 = vmatpush1.bf16.msra.mxu0 0
      %1208 = vmatprep.subr.bf16.mxu0 %v1151
      %1209 = vmatpush1.bf16.msra.mxu0 %v1148
      %1210 = vmatprep.subr.bf16.mxu0 0
      %1211 = vmatpush2.bf16.msra.mxu0 0
      %1212 = vmatprep.subr.bf16.mxu0 0
      %1213 = vmatpush2.bf16.msra.mxu0 0
      %1214 = vmatprep.subr.bf16.mxu0 0
      %1215 = vmatpush2.bf16.msra.mxu0 0
      %1216 = vmatprep.subr.bf16.mxu0 0
      %1217 = vmatpush2.bf16.msra.mxu0 0
      %1218 = vmatprep.subr.bf16.mxu0 0
      %1219 = vmatpush2.bf16.msra.mxu0 0
      %1220 = vmatprep.subr.bf16.mxu0 0
      %1221 = vmatpush2.bf16.msra.mxu0 0
      %1222 = vmatprep.subr.bf16.mxu0 0
      %1223 = vmatpush2.bf16.msra.mxu0 0
      %1224 = vmatprep.subr.bf16.mxu0 0
      %1225 = vmatpush2.bf16.msra.mxu0 0
      %1226 = vmatprep.mubr.bf16.mxu0 0
      %1227 = vmatmul.mubr.bf16.gmra.mxu0 %v1139
      %v1228 = vpop.f32.mrf.mxu0
      %v1229 = vadd.f32 0.0, %v1228
      %v1230 = vpop.f32.mrf.mxu0
      %v1231 = vadd.f32 0.0, %v1230
      %v1232 = vpop.f32.mrf.mxu0
      %v1233 = vpop.f32.mrf.mxu0
      %1234 = vdwg.mxu0
      %v1235 = vadd.f32 %v1120, %v1188
      %v1236 = vadd.f32 %v1121, %v1190
      %v1237 = vadd.f32 %v1122, %v1229
      %v1238 = vadd.f32 %v1123, %v1231
      %s1239 = scalar_lea.vmem %s1, 36
      %v1240 = vld [vmem:[%s1239] sm:$0xf]
      %v1242 = vsel %vm226, %v1240, 0
      %v1245 = vsel %vm230, %v210, 0
      %v1248 = vsel %vm230, %v211, 0
      %v1251 = vsel %vm230, %v212, 0
      %v1254 = vsel %vm230, %v213, 0
      %1256 = vmatprep.subr.bf16.mxu0 0
      %1257 = vmatpush1.bf16.msra.mxu0 0
      %1258 = vmatprep.subr.bf16.mxu0 0
      %1259 = vmatpush1.bf16.msra.mxu0 0
      %1260 = vmatprep.subr.bf16.mxu0 0
      %1261 = vmatpush1.bf16.msra.mxu0 0
      %1262 = vmatprep.subr.bf16.mxu0 0
      %1263 = vmatpush1.bf16.msra.mxu0 0
      %1264 = vmatprep.subr.bf16.mxu0 0
      %1265 = vmatpush1.bf16.msra.mxu0 0
      %1266 = vmatprep.subr.bf16.mxu0 0
      %1267 = vmatpush1.bf16.msra.mxu0 0
      %1268 = vmatprep.subr.bf16.mxu0 0
      %1269 = vmatpush1.bf16.msra.mxu0 0
      %1270 = vmatprep.subr.bf16.mxu0 %v1248
      %1271 = vmatpush1.bf16.msra.mxu0 %v1245
      %1272 = vmatprep.subr.bf16.mxu0 0
      %1273 = vmatpush2.bf16.msra.mxu0 0
      %1274 = vmatprep.subr.bf16.mxu0 0
      %1275 = vmatpush2.bf16.msra.mxu0 0
      %1276 = vmatprep.subr.bf16.mxu0 0
      %1277 = vmatpush2.bf16.msra.mxu0 0
      %1278 = vmatprep.subr.bf16.mxu0 0
      %1279 = vmatpush2.bf16.msra.mxu0 0
      %1280 = vmatprep.subr.bf16.mxu0 0
      %1281 = vmatpush2.bf16.msra.mxu0 0
      %1282 = vmatprep.subr.bf16.mxu0 0
      %1283 = vmatpush2.bf16.msra.mxu0 0
      %1284 = vmatprep.subr.bf16.mxu0 0
      %1285 = vmatpush2.bf16.msra.mxu0 0
      %1286 = vmatprep.subr.bf16.mxu0 0
      %1287 = vmatpush2.bf16.msra.mxu0 0
      %1288 = vmatprep.mubr.bf16.mxu0 0
      %1289 = vmatmul.mubr.bf16.gmra.mxu0 %v1242
      %v1290 = vpop.f32.mrf.mxu0
      %v1291 = vadd.f32 0.0, %v1290
      %v1292 = vpop.f32.mrf.mxu0
      %v1293 = vadd.f32 0.0, %v1292
      %v1294 = vpop.f32.mrf.mxu0
      %v1295 = vpop.f32.mrf.mxu0
      %1296 = vdwg.mxu0
      %1297 = vmatprep.subr.bf16.mxu0 0
      %1298 = vmatpush1.bf16.msra.mxu0 0
      %1299 = vmatprep.subr.bf16.mxu0 0
      %1300 = vmatpush1.bf16.msra.mxu0 0
      %1301 = vmatprep.subr.bf16.mxu0 0
      %1302 = vmatpush1.bf16.msra.mxu0 0
      %1303 = vmatprep.subr.bf16.mxu0 0
      %1304 = vmatpush1.bf16.msra.mxu0 0
      %1305 = vmatprep.subr.bf16.mxu0 0
      %1306 = vmatpush1.bf16.msra.mxu0 0
      %1307 = vmatprep.subr.bf16.mxu0 0
      %1308 = vmatpush1.bf16.msra.mxu0 0
      %1309 = vmatprep.subr.bf16.mxu0 0
      %1310 = vmatpush1.bf16.msra.mxu0 0
      %1311 = vmatprep.subr.bf16.mxu0 %v1254
      %1312 = vmatpush1.bf16.msra.mxu0 %v1251
      %1313 = vmatprep.subr.bf16.mxu0 0
      %1314 = vmatpush2.bf16.msra.mxu0 0
      %1315 = vmatprep.subr.bf16.mxu0 0
      %1316 = vmatpush2.bf16.msra.mxu0 0
      %1317 = vmatprep.subr.bf16.mxu0 0
      %1318 = vmatpush2.bf16.msra.mxu0 0
      %1319 = vmatprep.subr.bf16.mxu0 0
      %1320 = vmatpush2.bf16.msra.mxu0 0
      %1321 = vmatprep.subr.bf16.mxu0 0
      %1322 = vmatpush2.bf16.msra.mxu0 0
      %1323 = vmatprep.subr.bf16.mxu0 0
      %1324 = vmatpush2.bf16.msra.mxu0 0
      %1325 = vmatprep.subr.bf16.mxu0 0
      %1326 = vmatpush2.bf16.msra.mxu0 0
      %1327 = vmatprep.subr.bf16.mxu0 0
      %1328 = vmatpush2.bf16.msra.mxu0 0
      %1329 = vmatprep.mubr.bf16.mxu0 0
      %1330 = vmatmul.mubr.bf16.gmra.mxu0 %v1242
      %v1331 = vpop.f32.mrf.mxu0
      %v1332 = vadd.f32 0.0, %v1331
      %v1333 = vpop.f32.mrf.mxu0
      %v1334 = vadd.f32 0.0, %v1333
      %v1335 = vpop.f32.mrf.mxu0
      %v1336 = vpop.f32.mrf.mxu0
      %1337 = vdwg.mxu0
      %v1338 = vadd.f32 %v1235, %v1291
      %v1339 = vadd.f32 %v1236, %v1293
      %v1340 = vadd.f32 %v1237, %v1332
      %v1341 = vadd.f32 %v1238, %v1334
      %s1342 = scalar_lea.vmem %s1, 40
      %v1343 = vld [vmem:[%s1342] sm:$0xf]
      %1344 = vrot.lane.b32.xlu0 %v210, 126
      %v1345 = vpop.permute.xlu0 %1344
      %1346 = vrot.lane.b32.xlu0 %v211, 126
      %v1347 = vpop.permute.xlu0 %1346
      %1348 = vrot.lane.b32.xlu0 %v212, 126
      %v1349 = vpop.permute.xlu0 %1348
      %1350 = vrot.lane.b32.xlu0 %v213, 126
      %v1351 = vpop.permute.xlu0 %1350
      %vm1352 = vcmask 1031168
      %v1353 = vsel %vm1352, %v1345, %v1347
      %v1354 = vsel %vm1352, %v1347, %v1349
      %v1355 = vsel %vm1352, %v1349, %v1351
      %v1357 = vsel %vm226, %v1343, 0
      %v1360 = vsel %vm230, %v1353, 0
      %v1363 = vsel %vm230, %v1354, 0
      %v1366 = vsel %vm230, %v1355, 0
      %v1369 = vsel %vm230, %v1351, 0
      %1371 = vmatprep.subr.bf16.mxu0 0
      %1372 = vmatpush1.bf16.msra.mxu0 0
      %1373 = vmatprep.subr.bf16.mxu0 0
      %1374 = vmatpush1.bf16.msra.mxu0 0
      %1375 = vmatprep.subr.bf16.mxu0 0
      %1376 = vmatpush1.bf16.msra.mxu0 0
      %1377 = vmatprep.subr.bf16.mxu0 0
      %1378 = vmatpush1.bf16.msra.mxu0 0
      %1379 = vmatprep.subr.bf16.mxu0 0
      %1380 = vmatpush1.bf16.msra.mxu0 0
      %1381 = vmatprep.subr.bf16.mxu0 0
      %1382 = vmatpush1.bf16.msra.mxu0 0
      %1383 = vmatprep.subr.bf16.mxu0 0
      %1384 = vmatpush1.bf16.msra.mxu0 0
      %1385 = vmatprep.subr.bf16.mxu0 %v1363
      %1386 = vmatpush1.bf16.msra.mxu0 %v1360
      %1387 = vmatprep.subr.bf16.mxu0 0
      %1388 = vmatpush2.bf16.msra.mxu0 0
      %1389 = vmatprep.subr.bf16.mxu0 0
      %1390 = vmatpush2.bf16.msra.mxu0 0
      %1391 = vmatprep.subr.bf16.mxu0 0
      %1392 = vmatpush2.bf16.msra.mxu0 0
      %1393 = vmatprep.subr.bf16.mxu0 0
      %1394 = vmatpush2.bf16.msra.mxu0 0
      %1395 = vmatprep.subr.bf16.mxu0 0
      %1396 = vmatpush2.bf16.msra.mxu0 0
      %1397 = vmatprep.subr.bf16.mxu0 0
      %1398 = vmatpush2.bf16.msra.mxu0 0
      %1399 = vmatprep.subr.bf16.mxu0 0
      %1400 = vmatpush2.bf16.msra.mxu0 0
      %1401 = vmatprep.subr.bf16.mxu0 0
      %1402 = vmatpush2.bf16.msra.mxu0 0
      %1403 = vmatprep.mubr.bf16.mxu0 0
      %1404 = vmatmul.mubr.bf16.gmra.mxu0 %v1357
      %v1405 = vpop.f32.mrf.mxu0
      %v1406 = vadd.f32 0.0, %v1405
      %v1407 = vpop.f32.mrf.mxu0
      %v1408 = vadd.f32 0.0, %v1407
      %v1409 = vpop.f32.mrf.mxu0
      %v1410 = vpop.f32.mrf.mxu0
      %1411 = vdwg.mxu0
      %1412 = vmatprep.subr.bf16.mxu0 0
      %1413 = vmatpush1.bf16.msra.mxu0 0
      %1414 = vmatprep.subr.bf16.mxu0 0
      %1415 = vmatpush1.bf16.msra.mxu0 0
      %1416 = vmatprep.subr.bf16.mxu0 0
      %1417 = vmatpush1.bf16.msra.mxu0 0
      %1418 = vmatprep.subr.bf16.mxu0 0
      %1419 = vmatpush1.bf16.msra.mxu0 0
      %1420 = vmatprep.subr.bf16.mxu0 0
      %1421 = vmatpush1.bf16.msra.mxu0 0
      %1422 = vmatprep.subr.bf16.mxu0 0
      %1423 = vmatpush1.bf16.msra.mxu0 0
      %1424 = vmatprep.subr.bf16.mxu0 0
      %1425 = vmatpush1.bf16.msra.mxu0 0
      %1426 = vmatprep.subr.bf16.mxu0 %v1369
      %1427 = vmatpush1.bf16.msra.mxu0 %v1366
      %1428 = vmatprep.subr.bf16.mxu0 0
      %1429 = vmatpush2.bf16.msra.mxu0 0
      %1430 = vmatprep.subr.bf16.mxu0 0
      %1431 = vmatpush2.bf16.msra.mxu0 0
      %1432 = vmatprep.subr.bf16.mxu0 0
      %1433 = vmatpush2.bf16.msra.mxu0 0
      %1434 = vmatprep.subr.bf16.mxu0 0
      %1435 = vmatpush2.bf16.msra.mxu0 0
      %1436 = vmatprep.subr.bf16.mxu0 0
      %1437 = vmatpush2.bf16.msra.mxu0 0
      %1438 = vmatprep.subr.bf16.mxu0 0
      %1439 = vmatpush2.bf16.msra.mxu0 0
      %1440 = vmatprep.subr.bf16.mxu0 0
      %1441 = vmatpush2.bf16.msra.mxu0 0
      %1442 = vmatprep.subr.bf16.mxu0 0
      %1443 = vmatpush2.bf16.msra.mxu0 0
      %1444 = vmatprep.mubr.bf16.mxu0 0
      %1445 = vmatmul.mubr.bf16.gmra.mxu0 %v1357
      %v1446 = vpop.f32.mrf.mxu0
      %v1447 = vadd.f32 0.0, %v1446
      %v1448 = vpop.f32.mrf.mxu0
      %v1449 = vadd.f32 0.0, %v1448
      %v1450 = vpop.f32.mrf.mxu0
      %v1451 = vpop.f32.mrf.mxu0
      %1452 = vdwg.mxu0
      %v1453 = vadd.f32 %v1338, %v1406
      %v1454 = vadd.f32 %v1339, %v1408
      %v1455 = vadd.f32 %v1340, %v1447
      %v1456 = vadd.f32 %v1341, %v1449
      %s1457 = scalar_lea.vmem %s1, 44
      %v1458 = vld [vmem:[%s1457] sm:$0xf]
      %1459 = vrot.lane.b32.xlu0 %v210, 124
      %v1460 = vpop.permute.xlu0 %1459
      %1461 = vrot.lane.b32.xlu0 %v211, 124
      %v1462 = vpop.permute.xlu0 %1461
      %1463 = vrot.lane.b32.xlu0 %v212, 124
      %v1464 = vpop.permute.xlu0 %1463
      %1465 = vrot.lane.b32.xlu0 %v213, 124
      %v1466 = vpop.permute.xlu0 %1465
      %vm1467 = vcmask 1014784
      %v1468 = vsel %vm1467, %v1460, %v1462
      %v1469 = vsel %vm1467, %v1462, %v1464
      %v1470 = vsel %vm1467, %v1464, %v1466
      %v1472 = vsel %vm226, %v1458, 0
      %v1475 = vsel %vm230, %v1468, 0
      %v1478 = vsel %vm230, %v1469, 0
      %v1481 = vsel %vm230, %v1470, 0
      %v1484 = vsel %vm230, %v1466, 0
      %1486 = vmatprep.subr.bf16.mxu0 0
      %1487 = vmatpush1.bf16.msra.mxu0 0
      %1488 = vmatprep.subr.bf16.mxu0 0
      %1489 = vmatpush1.bf16.msra.mxu0 0
      %1490 = vmatprep.subr.bf16.mxu0 0
      %1491 = vmatpush1.bf16.msra.mxu0 0
      %1492 = vmatprep.subr.bf16.mxu0 0
      %1493 = vmatpush1.bf16.msra.mxu0 0
      %1494 = vmatprep.subr.bf16.mxu0 0
      %1495 = vmatpush1.bf16.msra.mxu0 0
      %1496 = vmatprep.subr.bf16.mxu0 0
      %1497 = vmatpush1.bf16.msra.mxu0 0
      %1498 = vmatprep.subr.bf16.mxu0 0
      %1499 = vmatpush1.bf16.msra.mxu0 0
      %1500 = vmatprep.subr.bf16.mxu0 %v1478
      %1501 = vmatpush1.bf16.msra.mxu0 %v1475
      %1502 = vmatprep.subr.bf16.mxu0 0
      %1503 = vmatpush2.bf16.msra.mxu0 0
      %1504 = vmatprep.subr.bf16.mxu0 0
      %1505 = vmatpush2.bf16.msra.mxu0 0
      %1506 = vmatprep.subr.bf16.mxu0 0
      %1507 = vmatpush2.bf16.msra.mxu0 0
      %1508 = vmatprep.subr.bf16.mxu0 0
      %1509 = vmatpush2.bf16.msra.mxu0 0
      %1510 = vmatprep.subr.bf16.mxu0 0
      %1511 = vmatpush2.bf16.msra.mxu0 0
      %1512 = vmatprep.subr.bf16.mxu0 0
      %1513 = vmatpush2.bf16.msra.mxu0 0
      %1514 = vmatprep.subr.bf16.mxu0 0
      %1515 = vmatpush2.bf16.msra.mxu0 0
      %1516 = vmatprep.subr.bf16.mxu0 0
      %1517 = vmatpush2.bf16.msra.mxu0 0
      %1518 = vmatprep.mubr.bf16.mxu0 0
      %1519 = vmatmul.mubr.bf16.gmra.mxu0 %v1472
      %v1520 = vpop.f32.mrf.mxu0
      %v1521 = vadd.f32 0.0, %v1520
      %v1522 = vpop.f32.mrf.mxu0
      %v1523 = vadd.f32 0.0, %v1522
      %v1524 = vpop.f32.mrf.mxu0
      %v1525 = vpop.f32.mrf.mxu0
      %1526 = vdwg.mxu0
      %1527 = vmatprep.subr.bf16.mxu0 0
      %1528 = vmatpush1.bf16.msra.mxu0 0
      %1529 = vmatprep.subr.bf16.mxu0 0
      %1530 = vmatpush1.bf16.msra.mxu0 0
      %1531 = vmatprep.subr.bf16.mxu0 0
      %1532 = vmatpush1.bf16.msra.mxu0 0
      %1533 = vmatprep.subr.bf16.mxu0 0
      %1534 = vmatpush1.bf16.msra.mxu0 0
      %1535 = vmatprep.subr.bf16.mxu0 0
      %1536 = vmatpush1.bf16.msra.mxu0 0
      %1537 = vmatprep.subr.bf16.mxu0 0
      %1538 = vmatpush1.bf16.msra.mxu0 0
      %1539 = vmatprep.subr.bf16.mxu0 0
      %1540 = vmatpush1.bf16.msra.mxu0 0
      %1541 = vmatprep.subr.bf16.mxu0 %v1484
      %1542 = vmatpush1.bf16.msra.mxu0 %v1481
      %1543 = vmatprep.subr.bf16.mxu0 0
      %1544 = vmatpush2.bf16.msra.mxu0 0
      %1545 = vmatprep.subr.bf16.mxu0 0
      %1546 = vmatpush2.bf16.msra.mxu0 0
      %1547 = vmatprep.subr.bf16.mxu0 0
      %1548 = vmatpush2.bf16.msra.mxu0 0
      %1549 = vmatprep.subr.bf16.mxu0 0
      %1550 = vmatpush2.bf16.msra.mxu0 0
      %1551 = vmatprep.subr.bf16.mxu0 0
      %1552 = vmatpush2.bf16.msra.mxu0 0
      %1553 = vmatprep.subr.bf16.mxu0 0
      %1554 = vmatpush2.bf16.msra.mxu0 0
      %1555 = vmatprep.subr.bf16.mxu0 0
      %1556 = vmatpush2.bf16.msra.mxu0 0
      %1557 = vmatprep.subr.bf16.mxu0 0
      %1558 = vmatpush2.bf16.msra.mxu0 0
      %1559 = vmatprep.mubr.bf16.mxu0 0
      %1560 = vmatmul.mubr.bf16.gmra.mxu0 %v1472
      %v1561 = vpop.f32.mrf.mxu0
      %v1562 = vadd.f32 0.0, %v1561
      %v1563 = vpop.f32.mrf.mxu0
      %v1564 = vadd.f32 0.0, %v1563
      %v1565 = vpop.f32.mrf.mxu0
      %v1566 = vpop.f32.mrf.mxu0
      %1567 = vdwg.mxu0
      %v1568 = vadd.f32 %v1453, %v1521
      %v1569 = vadd.f32 %v1454, %v1523
      %v1570 = vadd.f32 %v1455, %v1562
      %v1571 = vadd.f32 %v1456, %v1564
      %s1572 = scalar_lea.vmem %s1, 48
      %v1573 = vld [vmem:[%s1572] sm:$0xf]
      %1574 = vrot.lane.b32.xlu0 %v210, 88
      %v1575 = vpop.permute.xlu0 %1574
      %1576 = vrot.lane.b32.xlu0 %v211, 88
      %v1577 = vpop.permute.xlu0 %1576
      %1578 = vrot.lane.b32.xlu0 %v212, 88
      %v1579 = vpop.permute.xlu0 %1578
      %1580 = vrot.lane.b32.xlu0 %v213, 88
      %v1581 = vpop.permute.xlu0 %1580
      %vm1582 = vcmask 719872
      %v1583 = vsel %vm1582, %v1575, %v1577
      %v1584 = vsel %vm1582, %v1577, %v1579
      %v1585 = vsel %vm1582, %v1579, %v1581
      %v1587 = vsel %vm226, %v1573, 0
      %v1590 = vsel %vm230, %v1583, 0
      %v1593 = vsel %vm230, %v1584, 0
      %v1596 = vsel %vm230, %v1585, 0
      %v1599 = vsel %vm230, %v1581, 0
      %1601 = vmatprep.subr.bf16.mxu0 0
      %1602 = vmatpush1.bf16.msra.mxu0 0
      %1603 = vmatprep.subr.bf16.mxu0 0
      %1604 = vmatpush1.bf16.msra.mxu0 0
      %1605 = vmatprep.subr.bf16.mxu0 0
      %1606 = vmatpush1.bf16.msra.mxu0 0
      %1607 = vmatprep.subr.bf16.mxu0 0
      %1608 = vmatpush1.bf16.msra.mxu0 0
      %1609 = vmatprep.subr.bf16.mxu0 0
      %1610 = vmatpush1.bf16.msra.mxu0 0
      %1611 = vmatprep.subr.bf16.mxu0 0
      %1612 = vmatpush1.bf16.msra.mxu0 0
      %1613 = vmatprep.subr.bf16.mxu0 0
      %1614 = vmatpush1.bf16.msra.mxu0 0
      %1615 = vmatprep.subr.bf16.mxu0 %v1593
      %1616 = vmatpush1.bf16.msra.mxu0 %v1590
      %1617 = vmatprep.subr.bf16.mxu0 0
      %1618 = vmatpush2.bf16.msra.mxu0 0
      %1619 = vmatprep.subr.bf16.mxu0 0
      %1620 = vmatpush2.bf16.msra.mxu0 0
      %1621 = vmatprep.subr.bf16.mxu0 0
      %1622 = vmatpush2.bf16.msra.mxu0 0
      %1623 = vmatprep.subr.bf16.mxu0 0
      %1624 = vmatpush2.bf16.msra.mxu0 0
      %1625 = vmatprep.subr.bf16.mxu0 0
      %1626 = vmatpush2.bf16.msra.mxu0 0
      %1627 = vmatprep.subr.bf16.mxu0 0
      %1628 = vmatpush2.bf16.msra.mxu0 0
      %1629 = vmatprep.subr.bf16.mxu0 0
      %1630 = vmatpush2.bf16.msra.mxu0 0
      %1631 = vmatprep.subr.bf16.mxu0 0
      %1632 = vmatpush2.bf16.msra.mxu0 0
      %1633 = vmatprep.mubr.bf16.mxu0 0
      %1634 = vmatmul.mubr.bf16.gmra.mxu0 %v1587
      %v1635 = vpop.f32.mrf.mxu0
      %v1636 = vadd.f32 0.0, %v1635
      %v1637 = vpop.f32.mrf.mxu0
      %v1638 = vadd.f32 0.0, %v1637
      %v1639 = vpop.f32.mrf.mxu0
      %v1640 = vpop.f32.mrf.mxu0
      %1641 = vdwg.mxu0
      %1642 = vmatprep.subr.bf16.mxu0 0
      %1643 = vmatpush1.bf16.msra.mxu0 0
      %1644 = vmatprep.subr.bf16.mxu0 0
      %1645 = vmatpush1.bf16.msra.mxu0 0
      %1646 = vmatprep.subr.bf16.mxu0 0
      %1647 = vmatpush1.bf16.msra.mxu0 0
      %1648 = vmatprep.subr.bf16.mxu0 0
      %1649 = vmatpush1.bf16.msra.mxu0 0
      %1650 = vmatprep.subr.bf16.mxu0 0
      %1651 = vmatpush1.bf16.msra.mxu0 0
      %1652 = vmatprep.subr.bf16.mxu0 0
      %1653 = vmatpush1.bf16.msra.mxu0 0
      %1654 = vmatprep.subr.bf16.mxu0 0
      %1655 = vmatpush1.bf16.msra.mxu0 0
      %1656 = vmatprep.subr.bf16.mxu0 %v1599
      %1657 = vmatpush1.bf16.msra.mxu0 %v1596
      %1658 = vmatprep.subr.bf16.mxu0 0
      %1659 = vmatpush2.bf16.msra.mxu0 0
      %1660 = vmatprep.subr.bf16.mxu0 0
      %1661 = vmatpush2.bf16.msra.mxu0 0
      %1662 = vmatprep.subr.bf16.mxu0 0
      %1663 = vmatpush2.bf16.msra.mxu0 0
      %1664 = vmatprep.subr.bf16.mxu0 0
      %1665 = vmatpush2.bf16.msra.mxu0 0
      %1666 = vmatprep.subr.bf16.mxu0 0
      %1667 = vmatpush2.bf16.msra.mxu0 0
      %1668 = vmatprep.subr.bf16.mxu0 0
      %1669 = vmatpush2.bf16.msra.mxu0 0
      %1670 = vmatprep.subr.bf16.mxu0 0
      %1671 = vmatpush2.bf16.msra.mxu0 0
      %1672 = vmatprep.subr.bf16.mxu0 0
      %1673 = vmatpush2.bf16.msra.mxu0 0
      %1674 = vmatprep.mubr.bf16.mxu0 0
      %1675 = vmatmul.mubr.bf16.gmra.mxu0 %v1587
      %v1676 = vpop.f32.mrf.mxu0
      %v1677 = vadd.f32 0.0, %v1676
      %v1678 = vpop.f32.mrf.mxu0
      %v1679 = vadd.f32 0.0, %v1678
      %v1680 = vpop.f32.mrf.mxu0
      %v1681 = vpop.f32.mrf.mxu0
      %1682 = vdwg.mxu0
      %v1683 = vadd.f32 %v1568, %v1636
      %v1684 = vadd.f32 %v1569, %v1638
      %v1685 = vadd.f32 %v1570, %v1677
      %v1686 = vadd.f32 %v1571, %v1679
      %s1687 = scalar_lea.vmem %s1, 52
      %v1688 = vld [vmem:[%s1687] sm:$0xf]
      %v1690 = vsel %vm226, %v1688, 0
      %1692 = vmatprep.subr.bf16.mxu0 0
      %1693 = vmatpush1.bf16.msra.mxu0 0
      %1694 = vmatprep.subr.bf16.mxu0 0
      %1695 = vmatpush1.bf16.msra.mxu0 0
      %1696 = vmatprep.subr.bf16.mxu0 0
      %1697 = vmatpush1.bf16.msra.mxu0 0
      %1698 = vmatprep.subr.bf16.mxu0 0
      %1699 = vmatpush1.bf16.msra.mxu0 0
      %1700 = vmatprep.subr.bf16.mxu0 0
      %1701 = vmatpush1.bf16.msra.mxu0 0
      %1702 = vmatprep.subr.bf16.mxu0 0
      %1703 = vmatpush1.bf16.msra.mxu0 0
      %1704 = vmatprep.subr.bf16.mxu0 0
      %1705 = vmatpush1.bf16.msra.mxu0 0
      %1706 = vmatprep.subr.bf16.mxu0 %v685
      %1707 = vmatpush1.bf16.msra.mxu0 %v682
      %1708 = vmatprep.subr.bf16.mxu0 0
      %1709 = vmatpush2.bf16.msra.mxu0 0
      %1710 = vmatprep.subr.bf16.mxu0 0
      %1711 = vmatpush2.bf16.msra.mxu0 0
      %1712 = vmatprep.subr.bf16.mxu0 0
      %1713 = vmatpush2.bf16.msra.mxu0 0
      %1714 = vmatprep.subr.bf16.mxu0 0
      %1715 = vmatpush2.bf16.msra.mxu0 0
      %1716 = vmatprep.subr.bf16.mxu0 0
      %1717 = vmatpush2.bf16.msra.mxu0 0
      %1718 = vmatprep.subr.bf16.mxu0 0
      %1719 = vmatpush2.bf16.msra.mxu0 0
      %1720 = vmatprep.subr.bf16.mxu0 0
      %1721 = vmatpush2.bf16.msra.mxu0 0
      %1722 = vmatprep.subr.bf16.mxu0 0
      %1723 = vmatpush2.bf16.msra.mxu0 0
      %1724 = vmatprep.mubr.bf16.mxu0 0
      %1725 = vmatmul.mubr.bf16.gmra.mxu0 %v1690
      %v1726 = vpop.f32.mrf.mxu0
      %v1727 = vadd.f32 0.0, %v1726
      %v1728 = vpop.f32.mrf.mxu0
      %v1729 = vadd.f32 0.0, %v1728
      %v1730 = vpop.f32.mrf.mxu0
      %v1731 = vpop.f32.mrf.mxu0
      %1732 = vdwg.mxu0
      %1733 = vmatprep.subr.bf16.mxu0 0
      %1734 = vmatpush1.bf16.msra.mxu0 0
      %1735 = vmatprep.subr.bf16.mxu0 0
      %1736 = vmatpush1.bf16.msra.mxu0 0
      %1737 = vmatprep.subr.bf16.mxu0 0
      %1738 = vmatpush1.bf16.msra.mxu0 0
      %1739 = vmatprep.subr.bf16.mxu0 0
      %1740 = vmatpush1.bf16.msra.mxu0 0
      %1741 = vmatprep.subr.bf16.mxu0 0
      %1742 = vmatpush1.bf16.msra.mxu0 0
      %1743 = vmatprep.subr.bf16.mxu0 0
      %1744 = vmatpush1.bf16.msra.mxu0 0
      %1745 = vmatprep.subr.bf16.mxu0 0
      %1746 = vmatpush1.bf16.msra.mxu0 0
      %1747 = vmatprep.subr.bf16.mxu0 %v691
      %1748 = vmatpush1.bf16.msra.mxu0 %v688
      %1749 = vmatprep.subr.bf16.mxu0 0
      %1750 = vmatpush2.bf16.msra.mxu0 0
      %1751 = vmatprep.subr.bf16.mxu0 0
      %1752 = vmatpush2.bf16.msra.mxu0 0
      %1753 = vmatprep.subr.bf16.mxu0 0
      %1754 = vmatpush2.bf16.msra.mxu0 0
      %1755 = vmatprep.subr.bf16.mxu0 0
      %1756 = vmatpush2.bf16.msra.mxu0 0
      %1757 = vmatprep.subr.bf16.mxu0 0
      %1758 = vmatpush2.bf16.msra.mxu0 0
      %1759 = vmatprep.subr.bf16.mxu0 0
      %1760 = vmatpush2.bf16.msra.mxu0 0
      %1761 = vmatprep.subr.bf16.mxu0 0
      %1762 = vmatpush2.bf16.msra.mxu0 0
      %1763 = vmatprep.subr.bf16.mxu0 0
      %1764 = vmatpush2.bf16.msra.mxu0 0
      %1765 = vmatprep.mubr.bf16.mxu0 0
      %1766 = vmatmul.mubr.bf16.gmra.mxu0 %v1690
      %v1767 = vpop.f32.mrf.mxu0
      %v1768 = vadd.f32 0.0, %v1767
      %v1769 = vpop.f32.mrf.mxu0
      %v1770 = vadd.f32 0.0, %v1769
      %v1771 = vpop.f32.mrf.mxu0
      %v1772 = vpop.f32.mrf.mxu0
      %1773 = vdwg.mxu0
      %v1774 = vadd.f32 %v1683, %v1727
      %v1775 = vadd.f32 %v1684, %v1729
      %v1776 = vadd.f32 %v1685, %v1768
      %v1777 = vadd.f32 %v1686, %v1770
      %s1778 = scalar_lea.vmem %s1, 56
      %v1779 = vld [vmem:[%s1778] sm:$0xf]
      %1780 = vrot.lane.b32.xlu0 %v210, 84
      %v1781 = vpop.permute.xlu0 %1780
      %1782 = vrot.lane.b32.xlu0 %v211, 84
      %v1783 = vpop.permute.xlu0 %1782
      %1784 = vrot.lane.b32.xlu0 %v212, 84
      %v1785 = vpop.permute.xlu0 %1784
      %1786 = vrot.lane.b32.xlu0 %v213, 84
      %v1787 = vpop.permute.xlu0 %1786
      %vm1788 = vcmask 687104
      %v1789 = vsel %vm1788, %v1781, %v1783
      %v1790 = vsel %vm1788, %v1783, %v1785
      %v1791 = vsel %vm1788, %v1785, %v1787
      %v1793 = vsel %vm226, %v1779, 0
      %v1796 = vsel %vm230, %v1789, 0
      %v1799 = vsel %vm230, %v1790, 0
      %v1802 = vsel %vm230, %v1791, 0
      %v1805 = vsel %vm230, %v1787, 0
      %1807 = vmatprep.subr.bf16.mxu0 0
      %1808 = vmatpush1.bf16.msra.mxu0 0
      %1809 = vmatprep.subr.bf16.mxu0 0
      %1810 = vmatpush1.bf16.msra.mxu0 0
      %1811 = vmatprep.subr.bf16.mxu0 0
      %1812 = vmatpush1.bf16.msra.mxu0 0
      %1813 = vmatprep.subr.bf16.mxu0 0
      %1814 = vmatpush1.bf16.msra.mxu0 0
      %1815 = vmatprep.subr.bf16.mxu0 0
      %1816 = vmatpush1.bf16.msra.mxu0 0
      %1817 = vmatprep.subr.bf16.mxu0 0
      %1818 = vmatpush1.bf16.msra.mxu0 0
      %1819 = vmatprep.subr.bf16.mxu0 0
      %1820 = vmatpush1.bf16.msra.mxu0 0
      %1821 = vmatprep.subr.bf16.mxu0 %v1799
      %1822 = vmatpush1.bf16.msra.mxu0 %v1796
      %1823 = vmatprep.subr.bf16.mxu0 0
      %1824 = vmatpush2.bf16.msra.mxu0 0
      %1825 = vmatprep.subr.bf16.mxu0 0
      %1826 = vmatpush2.bf16.msra.mxu0 0
      %1827 = vmatprep.subr.bf16.mxu0 0
      %1828 = vmatpush2.bf16.msra.mxu0 0
      %1829 = vmatprep.subr.bf16.mxu0 0
      %1830 = vmatpush2.bf16.msra.mxu0 0
      %1831 = vmatprep.subr.bf16.mxu0 0
      %1832 = vmatpush2.bf16.msra.mxu0 0
      %1833 = vmatprep.subr.bf16.mxu0 0
      %1834 = vmatpush2.bf16.msra.mxu0 0
      %1835 = vmatprep.subr.bf16.mxu0 0
      %1836 = vmatpush2.bf16.msra.mxu0 0
      %1837 = vmatprep.subr.bf16.mxu0 0
      %1838 = vmatpush2.bf16.msra.mxu0 0
      %1839 = vmatprep.mubr.bf16.mxu0 0
      %1840 = vmatmul.mubr.bf16.gmra.mxu0 %v1793
      %v1841 = vpop.f32.mrf.mxu0
      %v1842 = vadd.f32 0.0, %v1841
      %v1843 = vpop.f32.mrf.mxu0
      %v1844 = vadd.f32 0.0, %v1843
      %v1845 = vpop.f32.mrf.mxu0
      %v1846 = vpop.f32.mrf.mxu0
      %1847 = vdwg.mxu0
      %1848 = vmatprep.subr.bf16.mxu0 0
      %1849 = vmatpush1.bf16.msra.mxu0 0
      %1850 = vmatprep.subr.bf16.mxu0 0
      %1851 = vmatpush1.bf16.msra.mxu0 0
      %1852 = vmatprep.subr.bf16.mxu0 0
      %1853 = vmatpush1.bf16.msra.mxu0 0
      %1854 = vmatprep.subr.bf16.mxu0 0
      %1855 = vmatpush1.bf16.msra.mxu0 0
      %1856 = vmatprep.subr.bf16.mxu0 0
      %1857 = vmatpush1.bf16.msra.mxu0 0
      %1858 = vmatprep.subr.bf16.mxu0 0
      %1859 = vmatpush1.bf16.msra.mxu0 0
      %1860 = vmatprep.subr.bf16.mxu0 0
      %1861 = vmatpush1.bf16.msra.mxu0 0
      %1862 = vmatprep.subr.bf16.mxu0 %v1805
      %1863 = vmatpush1.bf16.msra.mxu0 %v1802
      %1864 = vmatprep.subr.bf16.mxu0 0
      %1865 = vmatpush2.bf16.msra.mxu0 0
      %1866 = vmatprep.subr.bf16.mxu0 0
      %1867 = vmatpush2.bf16.msra.mxu0 0
      %1868 = vmatprep.subr.bf16.mxu0 0
      %1869 = vmatpush2.bf16.msra.mxu0 0
      %1870 = vmatprep.subr.bf16.mxu0 0
      %1871 = vmatpush2.bf16.msra.mxu0 0
      %1872 = vmatprep.subr.bf16.mxu0 0
      %1873 = vmatpush2.bf16.msra.mxu0 0
      %1874 = vmatprep.subr.bf16.mxu0 0
      %1875 = vmatpush2.bf16.msra.mxu0 0
      %1876 = vmatprep.subr.bf16.mxu0 0
      %1877 = vmatpush2.bf16.msra.mxu0 0
      %1878 = vmatprep.subr.bf16.mxu0 0
      %1879 = vmatpush2.bf16.msra.mxu0 0
      %1880 = vmatprep.mubr.bf16.mxu0 0
      %1881 = vmatmul.mubr.bf16.gmra.mxu0 %v1793
      %v1882 = vpop.f32.mrf.mxu0
      %v1883 = vadd.f32 0.0, %v1882
      %v1884 = vpop.f32.mrf.mxu0
      %v1885 = vadd.f32 0.0, %v1884
      %v1886 = vpop.f32.mrf.mxu0
      %v1887 = vpop.f32.mrf.mxu0
      %1888 = vdwg.mxu0
      %v1889 = vadd.f32 %v1774, %v1842
      %v1890 = vadd.f32 %v1775, %v1844
      %v1891 = vadd.f32 %v1776, %v1883
      %v1892 = vadd.f32 %v1777, %v1885
      %s1893 = scalar_lea.vmem %s1, 60
      %v1894 = vld [vmem:[%s1893] sm:$0xf]
      %1895 = vrot.lane.b32.xlu0 %v210, 48
      %v1896 = vpop.permute.xlu0 %1895
      %1897 = vrot.lane.b32.xlu0 %v211, 48
      %v1898 = vpop.permute.xlu0 %1897
      %1899 = vrot.lane.b32.xlu0 %v212, 48
      %v1900 = vpop.permute.xlu0 %1899
      %1901 = vrot.lane.b32.xlu0 %v213, 48
      %v1902 = vpop.permute.xlu0 %1901
      %vm1903 = vcmask 392192
      %v1904 = vsel %vm1903, %v1896, %v1898
      %v1905 = vsel %vm1903, %v1898, %v1900
      %v1906 = vsel %vm1903, %v1900, %v1902
      %v1908 = vsel %vm226, %v1894, 0
      %v1911 = vsel %vm230, %v1904, 0
      %v1914 = vsel %vm230, %v1905, 0
      %v1917 = vsel %vm230, %v1906, 0
      %v1920 = vsel %vm230, %v1902, 0
      %1922 = vmatprep.subr.bf16.mxu0 0
      %1923 = vmatpush1.bf16.msra.mxu0 0
      %1924 = vmatprep.subr.bf16.mxu0 0
      %1925 = vmatpush1.bf16.msra.mxu0 0
      %1926 = vmatprep.subr.bf16.mxu0 0
      %1927 = vmatpush1.bf16.msra.mxu0 0
      %1928 = vmatprep.subr.bf16.mxu0 0
      %1929 = vmatpush1.bf16.msra.mxu0 0
      %1930 = vmatprep.subr.bf16.mxu0 0
      %1931 = vmatpush1.bf16.msra.mxu0 0
      %1932 = vmatprep.subr.bf16.mxu0 0
      %1933 = vmatpush1.bf16.msra.mxu0 0
      %1934 = vmatprep.subr.bf16.mxu0 0
      %1935 = vmatpush1.bf16.msra.mxu0 0
      %1936 = vmatprep.subr.bf16.mxu0 %v1914
      %1937 = vmatpush1.bf16.msra.mxu0 %v1911
      %1938 = vmatprep.subr.bf16.mxu0 0
      %1939 = vmatpush2.bf16.msra.mxu0 0
      %1940 = vmatprep.subr.bf16.mxu0 0
      %1941 = vmatpush2.bf16.msra.mxu0 0
      %1942 = vmatprep.subr.bf16.mxu0 0
      %1943 = vmatpush2.bf16.msra.mxu0 0
      %1944 = vmatprep.subr.bf16.mxu0 0
      %1945 = vmatpush2.bf16.msra.mxu0 0
      %1946 = vmatprep.subr.bf16.mxu0 0
      %1947 = vmatpush2.bf16.msra.mxu0 0
      %1948 = vmatprep.subr.bf16.mxu0 0
      %1949 = vmatpush2.bf16.msra.mxu0 0
      %1950 = vmatprep.subr.bf16.mxu0 0
      %1951 = vmatpush2.bf16.msra.mxu0 0
      %1952 = vmatprep.subr.bf16.mxu0 0
      %1953 = vmatpush2.bf16.msra.mxu0 0
      %1954 = vmatprep.mubr.bf16.mxu0 0
      %1955 = vmatmul.mubr.bf16.gmra.mxu0 %v1908
      %v1956 = vpop.f32.mrf.mxu0
      %v1957 = vadd.f32 0.0, %v1956
      %v1958 = vpop.f32.mrf.mxu0
      %v1959 = vadd.f32 0.0, %v1958
      %v1960 = vpop.f32.mrf.mxu0
      %v1961 = vpop.f32.mrf.mxu0
      %1962 = vdwg.mxu0
      %1963 = vmatprep.subr.bf16.mxu0 0
      %1964 = vmatpush1.bf16.msra.mxu0 0
      %1965 = vmatprep.subr.bf16.mxu0 0
      %1966 = vmatpush1.bf16.msra.mxu0 0
      %1967 = vmatprep.subr.bf16.mxu0 0
      %1968 = vmatpush1.bf16.msra.mxu0 0
      %1969 = vmatprep.subr.bf16.mxu0 0
      %1970 = vmatpush1.bf16.msra.mxu0 0
      %1971 = vmatprep.subr.bf16.mxu0 0
      %1972 = vmatpush1.bf16.msra.mxu0 0
      %1973 = vmatprep.subr.bf16.mxu0 0
      %1974 = vmatpush1.bf16.msra.mxu0 0
      %1975 = vmatprep.subr.bf16.mxu0 0
      %1976 = vmatpush1.bf16.msra.mxu0 0
      %1977 = vmatprep.subr.bf16.mxu0 %v1920
      %1978 = vmatpush1.bf16.msra.mxu0 %v1917
      %1979 = vmatprep.subr.bf16.mxu0 0
      %1980 = vmatpush2.bf16.msra.mxu0 0
      %1981 = vmatprep.subr.bf16.mxu0 0
      %1982 = vmatpush2.bf16.msra.mxu0 0
      %1983 = vmatprep.subr.bf16.mxu0 0
      %1984 = vmatpush2.bf16.msra.mxu0 0
      %1985 = vmatprep.subr.bf16.mxu0 0
      %1986 = vmatpush2.bf16.msra.mxu0 0
      %1987 = vmatprep.subr.bf16.mxu0 0
      %1988 = vmatpush2.bf16.msra.mxu0 0
      %1989 = vmatprep.subr.bf16.mxu0 0
      %1990 = vmatpush2.bf16.msra.mxu0 0
      %1991 = vmatprep.subr.bf16.mxu0 0
      %1992 = vmatpush2.bf16.msra.mxu0 0
      %1993 = vmatprep.subr.bf16.mxu0 0
      %1994 = vmatpush2.bf16.msra.mxu0 0
      %1995 = vmatprep.mubr.bf16.mxu0 0
      %1996 = vmatmul.mubr.bf16.gmra.mxu0 %v1908
      %v1997 = vpop.f32.mrf.mxu0
      %v1998 = vadd.f32 0.0, %v1997
      %v1999 = vpop.f32.mrf.mxu0
      %v2000 = vadd.f32 0.0, %v1999
      %v2001 = vpop.f32.mrf.mxu0
      %v2002 = vpop.f32.mrf.mxu0
      %2003 = vdwg.mxu0
      %v2004 = vadd.f32 %v1889, %v1957
      %v2005 = vadd.f32 %v1890, %v1959
      %v2006 = vadd.f32 %v1891, %v1998
      %v2007 = vadd.f32 %v1892, %v2000
      %s2008 = scalar_lea.vmem %s1, 64
      %v2009 = vld [vmem:[%s2008] sm:$0xf]
      %2010 = vrot.lane.b32.xlu0 %v210, 46
      %v2011 = vpop.permute.xlu0 %2010
      %2012 = vrot.lane.b32.xlu0 %v211, 46
      %v2013 = vpop.permute.xlu0 %2012
      %2014 = vrot.lane.b32.xlu0 %v212, 46
      %v2015 = vpop.permute.xlu0 %2014
      %2016 = vrot.lane.b32.xlu0 %v213, 46
      %v2017 = vpop.permute.xlu0 %2016
      %vm2018 = vcmask 375808
      %v2019 = vsel %vm2018, %v2011, %v2013
      %v2020 = vsel %vm2018, %v2013, %v2015
      %v2021 = vsel %vm2018, %v2015, %v2017
      %v2023 = vsel %vm226, %v2009, 0
      %v2026 = vsel %vm230, %v2019, 0
      %v2029 = vsel %vm230, %v2020, 0
      %v2032 = vsel %vm230, %v2021, 0
      %v2035 = vsel %vm230, %v2017, 0
      %2037 = vmatprep.subr.bf16.mxu0 0
      %2038 = vmatpush1.bf16.msra.mxu0 0
      %2039 = vmatprep.subr.bf16.mxu0 0
      %2040 = vmatpush1.bf16.msra.mxu0 0
      %2041 = vmatprep.subr.bf16.mxu0 0
      %2042 = vmatpush1.bf16.msra.mxu0 0
      %2043 = vmatprep.subr.bf16.mxu0 0
      %2044 = vmatpush1.bf16.msra.mxu0 0
      %2045 = vmatprep.subr.bf16.mxu0 0
      %2046 = vmatpush1.bf16.msra.mxu0 0
      %2047 = vmatprep.subr.bf16.mxu0 0
      %2048 = vmatpush1.bf16.msra.mxu0 0
      %2049 = vmatprep.subr.bf16.mxu0 0
      %2050 = vmatpush1.bf16.msra.mxu0 0
      %2051 = vmatprep.subr.bf16.mxu0 %v2029
      %2052 = vmatpush1.bf16.msra.mxu0 %v2026
      %2053 = vmatprep.subr.bf16.mxu0 0
      %2054 = vmatpush2.bf16.msra.mxu0 0
      %2055 = vmatprep.subr.bf16.mxu0 0
      %2056 = vmatpush2.bf16.msra.mxu0 0
      %2057 = vmatprep.subr.bf16.mxu0 0
      %2058 = vmatpush2.bf16.msra.mxu0 0
      %2059 = vmatprep.subr.bf16.mxu0 0
      %2060 = vmatpush2.bf16.msra.mxu0 0
      %2061 = vmatprep.subr.bf16.mxu0 0
      %2062 = vmatpush2.bf16.msra.mxu0 0
      %2063 = vmatprep.subr.bf16.mxu0 0
      %2064 = vmatpush2.bf16.msra.mxu0 0
      %2065 = vmatprep.subr.bf16.mxu0 0
      %2066 = vmatpush2.bf16.msra.mxu0 0
      %2067 = vmatprep.subr.bf16.mxu0 0
      %2068 = vmatpush2.bf16.msra.mxu0 0
      %2069 = vmatprep.mubr.bf16.mxu0 0
      %2070 = vmatmul.mubr.bf16.gmra.mxu0 %v2023
      %v2071 = vpop.f32.mrf.mxu0
      %v2072 = vadd.f32 0.0, %v2071
      %v2073 = vpop.f32.mrf.mxu0
      %v2074 = vadd.f32 0.0, %v2073
      %v2075 = vpop.f32.mrf.mxu0
      %v2076 = vpop.f32.mrf.mxu0
      %2077 = vdwg.mxu0
      %2078 = vmatprep.subr.bf16.mxu0 0
      %2079 = vmatpush1.bf16.msra.mxu0 0
      %2080 = vmatprep.subr.bf16.mxu0 0
      %2081 = vmatpush1.bf16.msra.mxu0 0
      %2082 = vmatprep.subr.bf16.mxu0 0
      %2083 = vmatpush1.bf16.msra.mxu0 0
      %2084 = vmatprep.subr.bf16.mxu0 0
      %2085 = vmatpush1.bf16.msra.mxu0 0
      %2086 = vmatprep.subr.bf16.mxu0 0
      %2087 = vmatpush1.bf16.msra.mxu0 0
      %2088 = vmatprep.subr.bf16.mxu0 0
      %2089 = vmatpush1.bf16.msra.mxu0 0
      %2090 = vmatprep.subr.bf16.mxu0 0
      %2091 = vmatpush1.bf16.msra.mxu0 0
      %2092 = vmatprep.subr.bf16.mxu0 %v2035
      %2093 = vmatpush1.bf16.msra.mxu0 %v2032
      %2094 = vmatprep.subr.bf16.mxu0 0
      %2095 = vmatpush2.bf16.msra.mxu0 0
      %2096 = vmatprep.subr.bf16.mxu0 0
      %2097 = vmatpush2.bf16.msra.mxu0 0
      %2098 = vmatprep.subr.bf16.mxu0 0
      %2099 = vmatpush2.bf16.msra.mxu0 0
      %2100 = vmatprep.subr.bf16.mxu0 0
      %2101 = vmatpush2.bf16.msra.mxu0 0
      %2102 = vmatprep.subr.bf16.mxu0 0
      %2103 = vmatpush2.bf16.msra.mxu0 0
      %2104 = vmatprep.subr.bf16.mxu0 0
      %2105 = vmatpush2.bf16.msra.mxu0 0
      %2106 = vmatprep.subr.bf16.mxu0 0
      %2107 = vmatpush2.bf16.msra.mxu0 0
      %2108 = vmatprep.subr.bf16.mxu0 0
      %2109 = vmatpush2.bf16.msra.mxu0 0
      %2110 = vmatprep.mubr.bf16.mxu0 0
      %2111 = vmatmul.mubr.bf16.gmra.mxu0 %v2023
      %v2112 = vpop.f32.mrf.mxu0
      %v2113 = vadd.f32 0.0, %v2112
      %v2114 = vpop.f32.mrf.mxu0
      %v2115 = vadd.f32 0.0, %v2114
      %v2116 = vpop.f32.mrf.mxu0
      %v2117 = vpop.f32.mrf.mxu0
      %2118 = vdwg.mxu0
      %v2119 = vadd.f32 %v2004, %v2072
      %v2120 = vadd.f32 %v2005, %v2074
      %v2121 = vadd.f32 %v2006, %v2113
      %v2122 = vadd.f32 %v2007, %v2115
      %s2123 = scalar_lea.vmem %s1, 68
      %v2124 = vld [vmem:[%s2123] sm:$0xf]
      %2125 = vrot.lane.b32.xlu0 %v210, 44
      %v2126 = vpop.permute.xlu0 %2125
      %2127 = vrot.lane.b32.xlu0 %v211, 44
      %v2128 = vpop.permute.xlu0 %2127
      %2129 = vrot.lane.b32.xlu0 %v212, 44
      %v2130 = vpop.permute.xlu0 %2129
      %2131 = vrot.lane.b32.xlu0 %v213, 44
      %v2132 = vpop.permute.xlu0 %2131
      %vm2133 = vcmask 359424
      %v2134 = vsel %vm2133, %v2126, %v2128
      %v2135 = vsel %vm2133, %v2128, %v2130
      %v2136 = vsel %vm2133, %v2130, %v2132
      %v2138 = vsel %vm226, %v2124, 0
      %v2141 = vsel %vm230, %v2134, 0
      %v2144 = vsel %vm230, %v2135, 0
      %v2147 = vsel %vm230, %v2136, 0
      %v2150 = vsel %vm230, %v2132, 0
      %2152 = vmatprep.subr.bf16.mxu0 0
      %2153 = vmatpush1.bf16.msra.mxu0 0
      %2154 = vmatprep.subr.bf16.mxu0 0
      %2155 = vmatpush1.bf16.msra.mxu0 0
      %2156 = vmatprep.subr.bf16.mxu0 0
      %2157 = vmatpush1.bf16.msra.mxu0 0
      %2158 = vmatprep.subr.bf16.mxu0 0
      %2159 = vmatpush1.bf16.msra.mxu0 0
      %2160 = vmatprep.subr.bf16.mxu0 0
      %2161 = vmatpush1.bf16.msra.mxu0 0
      %2162 = vmatprep.subr.bf16.mxu0 0
      %2163 = vmatpush1.bf16.msra.mxu0 0
      %2164 = vmatprep.subr.bf16.mxu0 0
      %2165 = vmatpush1.bf16.msra.mxu0 0
      %2166 = vmatprep.subr.bf16.mxu0 %v2144
      %2167 = vmatpush1.bf16.msra.mxu0 %v2141
      %2168 = vmatprep.subr.bf16.mxu0 0
      %2169 = vmatpush2.bf16.msra.mxu0 0
      %2170 = vmatprep.subr.bf16.mxu0 0
      %2171 = vmatpush2.bf16.msra.mxu0 0
      %2172 = vmatprep.subr.bf16.mxu0 0
      %2173 = vmatpush2.bf16.msra.mxu0 0
      %2174 = vmatprep.subr.bf16.mxu0 0
      %2175 = vmatpush2.bf16.msra.mxu0 0
      %2176 = vmatprep.subr.bf16.mxu0 0
      %2177 = vmatpush2.bf16.msra.mxu0 0
      %2178 = vmatprep.subr.bf16.mxu0 0
      %2179 = vmatpush2.bf16.msra.mxu0 0
      %2180 = vmatprep.subr.bf16.mxu0 0
      %2181 = vmatpush2.bf16.msra.mxu0 0
      %2182 = vmatprep.subr.bf16.mxu0 0
      %2183 = vmatpush2.bf16.msra.mxu0 0
      %2184 = vmatprep.mubr.bf16.mxu0 0
      %2185 = vmatmul.mubr.bf16.gmra.mxu0 %v2138
      %v2186 = vpop.f32.mrf.mxu0
      %v2187 = vadd.f32 0.0, %v2186
      %v2188 = vpop.f32.mrf.mxu0
      %v2189 = vadd.f32 0.0, %v2188
      %v2190 = vpop.f32.mrf.mxu0
      %v2191 = vpop.f32.mrf.mxu0
      %2192 = vdwg.mxu0
      %2193 = vmatprep.subr.bf16.mxu0 0
      %2194 = vmatpush1.bf16.msra.mxu0 0
      %2195 = vmatprep.subr.bf16.mxu0 0
      %2196 = vmatpush1.bf16.msra.mxu0 0
      %2197 = vmatprep.subr.bf16.mxu0 0
      %2198 = vmatpush1.bf16.msra.mxu0 0
      %2199 = vmatprep.subr.bf16.mxu0 0
      %2200 = vmatpush1.bf16.msra.mxu0 0
      %2201 = vmatprep.subr.bf16.mxu0 0
      %2202 = vmatpush1.bf16.msra.mxu0 0
      %2203 = vmatprep.subr.bf16.mxu0 0
      %2204 = vmatpush1.bf16.msra.mxu0 0
      %2205 = vmatprep.subr.bf16.mxu0 0
      %2206 = vmatpush1.bf16.msra.mxu0 0
      %2207 = vmatprep.subr.bf16.mxu0 %v2150
      %2208 = vmatpush1.bf16.msra.mxu0 %v2147
      %2209 = vmatprep.subr.bf16.mxu0 0
      %2210 = vmatpush2.bf16.msra.mxu0 0
      %2211 = vmatprep.subr.bf16.mxu0 0
      %2212 = vmatpush2.bf16.msra.mxu0 0
      %2213 = vmatprep.subr.bf16.mxu0 0
      %2214 = vmatpush2.bf16.msra.mxu0 0
      %2215 = vmatprep.subr.bf16.mxu0 0
      %2216 = vmatpush2.bf16.msra.mxu0 0
      %2217 = vmatprep.subr.bf16.mxu0 0
      %2218 = vmatpush2.bf16.msra.mxu0 0
      %2219 = vmatprep.subr.bf16.mxu0 0
      %2220 = vmatpush2.bf16.msra.mxu0 0
      %2221 = vmatprep.subr.bf16.mxu0 0
      %2222 = vmatpush2.bf16.msra.mxu0 0
      %2223 = vmatprep.subr.bf16.mxu0 0
      %2224 = vmatpush2.bf16.msra.mxu0 0
      %2225 = vmatprep.mubr.bf16.mxu0 0
      %2226 = vmatmul.mubr.bf16.gmra.mxu0 %v2138
      %v2227 = vpop.f32.mrf.mxu0
      %v2228 = vadd.f32 0.0, %v2227
      %v2229 = vpop.f32.mrf.mxu0
      %v2230 = vadd.f32 0.0, %v2229
      %v2231 = vpop.f32.mrf.mxu0
      %v2232 = vpop.f32.mrf.mxu0
      %2233 = vdwg.mxu0
      %v2234 = vadd.f32 %v2119, %v2187
      %v2235 = vadd.f32 %v2120, %v2189
      %v2236 = vadd.f32 %v2121, %v2228
      %v2237 = vadd.f32 %v2122, %v2230
      %v2238 = vld [vmem:[%s2] sm:$0xff]
      %2240 = vset.pattern.permute.xlu0 0
      %2241 = vperm.xlu0 %2240, %v2238
      %v2242 = vpop.permute.xlu0 %2241
      %v2244 = vadd.f32 %v2234, %v2242
      %v2245 = vadd.f32 %v2235, %v2242
      %v2246 = vadd.f32 %v2236, %v2242
      %v2247 = vadd.f32 %v2237, %v2242
      %v2248 = vmax.f32 %v2244, 0.0
      %v2249 = vmax.f32 %v2245, 0.0
      %v2250 = vmax.f32 %v2246, 0.0
      %v2251 = vmax.f32 %v2247, 0.0
      %v2252 = vld [vmem:[%s3] sm:$0xf]
      %v2254 = vlaneseq
      %v2255 = vshrl.u32 %v2254, 7
      %v2256 = vsub.s32 0, %v2255
      %v2257 = vrot.slane %v2252, %v2256
      %v2258 = vlaneseq
      %v2259 = vshrl.u32 %v2258, 7
      %v2260 = vsub.s32 1, %v2259
      %v2261 = vrot.slane %v2252, %v2260
      %v2262 = vlaneseq
      %v2263 = vshrl.u32 %v2262, 7
      %v2264 = vsub.s32 2, %v2263
      %v2265 = vrot.slane %v2252, %v2264
      %v2266 = vlaneseq
      %v2267 = vshrl.u32 %v2266, 7
      %v2268 = vsub.s32 3, %v2267
      %v2269 = vrot.slane %v2252, %v2268
      %v2274 = vmul.f32 %v2248, %v2257
      %v2275 = vmul.f32 %v2249, %v2261
      %v2276 = vmul.f32 %v2250, %v2265
      %v2277 = vmul.f32 %v2251, %v2269
      %2278 = vst [vmem:[%s197] sm:$0xff] 0
      %2279 = vst [vmem:[%s197 + $0x8] sm:$0xff] 0
      %v2280 = vpack.c.bf16 %v2274, %v2274
      %v2281 = vpack.c.bf16 %v2275, %v2275
      %v2282 = vpack.c.bf16 %v2276, %v2276
      %v2283 = vpack.c.bf16 %v2277, %v2277
      %v2288 = vunpack.c.l.b16 %v2280
      %v2289 = vunpack.c.l.b16 %v2281
      %v2290 = vunpack.c.l.b16 %v2282
      %v2291 = vunpack.c.l.b16 %v2283
      %v2292 = vpack.c.b16 %v2289, %v2288
      %v2293 = vpack.c.b16 %v2291, %v2290
      %2294 = vrot.lane.b32.xlu0 %v2292, 42
      %v2295 = vpop.permute.xlu0 %2294
      %2296 = vrot.lane.b32.xlu0 %v2293, 42
      %v2297 = vpop.permute.xlu0 %2296
      %v2298 = vrot.slane %v2295, 4
      %v2299 = vrot.slane %v2297, 4
      %vm2300 = vcmask 343040
      %v2301 = vsel %vm2300, %v2298, %v2295
      %vm2302 = vcmask 1043456
      %v2303 = vsel %vm2302, %v2298, %v2299
      %v2304 = vsel %vm2300, %v2303, %v2297
      %vm2307 = vcmask 1043792
      %vm2308 = vcmask 1047556
      %vm2309 = vmor %vm2308, %vm2307
      %2310 = vst.msk [vmem:[%s197] sm:$0xff] %vm2309, %v2301
      %vm2311 = vcmask 474116
      %vm2312 = vmor %vm2311, %vm230
      %2313 = vst.msk [vmem:[%s197 + $0x8] sm:$0xff] %vm2312, %v2304
      %p2314 = scmp.lt.s32.totalorder %s15, 1
      %s2315 = scalar_select %p2314, %s15, 1
      %s2316 = smul.addr %s2315, 4
      %s2317 = smul.addr %s2316, 4
      %s2318 = scalar_lea.vmem %s4, %s2317
      // Predicated region
      $region37: #{ccl_forward.6} parent=35 // pred_check
        %p2319 = pneg %p122
      $region38: #{ccl_forward.6} parent=35 // pred_check_branch
        %2321 = sbr.rel (%p2319) target = $region40
      $region39: #{ccl_forward.6} parent=35 // pred_region
        _
      $region40: #{ccl_forward.6} parent=35 // pred_fallthru
        _
    $region36: #{ccl_forward.6} parent=5 // pred_fallthru
      _
    %p2322 = scmp.le.s32.totalorder 2, %s10
    // Predicated region
    $region41: #{ccl_forward.6} parent=5 // pred_check
      %p2323 = pneg %p2322
    $region42: #{ccl_forward.6} parent=5 // pred_check_branch
      %2325 = sbr.rel (%p2323) target = $region44
    $region43: #{ccl_forward.6} parent=5 // pred_region
      %s2326 = ssub.s32 %s10, 2
      // Predicated region
      $region45: #{ccl_forward.6} parent=43 // pred_check
        %p2327 = pneg %p128
      $region46: #{ccl_forward.6} parent=43 // pred_check_branch
        %2329 = sbr.rel (%p2327) target = $region48
      $region47: #{ccl_forward.6} parent=43 // pred_region
        %p2330 = scmp.lt.s32.totalorder %s16, 1
        %s2331 = scalar_select %p2330, %s16, 1
        %s2332 = smul.addr %s2331, 4
        %s2333 = smul.addr %s2332, 4
        %s2334 = scalar_lea.vmem %s4, %s2333
      $region48: #{ccl_forward.6} parent=43 // pred_fallthru
        _
    $region44: #{ccl_forward.6} parent=5 // pred_fallthru
      _
  $region6: #{ccl_forward.6} parent=0 // loop_footer
    %s14 = sadd.s32 1, %s10
  $region7: #{ccl_forward.6} parent=0 // loop_footer_branch
    %9 = sbr.rel target = $region3
  $region8: #{ccl_forward.6} parent=0 // loop_exit
    _

// kernel: ccl_forward.9
$region0: #{ccl_forward.9}
  #allocation0 [shape = 'u32[]', space=smem, size = 0x4, offset = 0x4, fixed_abs, tag = 'smem constant byte address 0x4 - core index']
  #allocation1 [shape = 'u32[144,128]{1,0:T(1,128)}', space=vmem, size = 0x12000, scoped, tag = 'internal scratch']
  %s0 = inlined_call_operand.vmem [shape: bf16[2,8,512], index: 0, kind: input, shape index: {}]
  %s1 = inlined_call_operand.vmem [shape: bf16[2,8,512], index: 1, kind: input, shape index: {}]
  %s2 = inlined_call_operand.vmem [shape: bf16[2,8,512], index: 2, kind: input, shape index: {}]
  %s3 = inlined_call_operand.vmem [shape: bf16[18,8,8], index: 3, kind: input, shape index: {}]
  %s4 = inlined_call_operand.vmem [shape: f32[8,1], index: 4, kind: input, shape index: {}]
  %s5 = inlined_call_operand.vmem [shape: f32[1,400], index: 5, kind: input, shape index: {}]
  %s6 = inlined_call_operand.vmem [shape: bf16[4,8,8], index: 6, kind: input, shape index: {}]
  %s7 = inlined_call_operand.vmem [shape: f32[8,1], index: 7, kind: input, shape index: {}]
  %s8 = inlined_call_operand.vmem [shape: f32[2,8,400], index: 8, kind: output, shape index: {}]
  %s9 = sld [smem:[#allocation0]]
  $region65: #{ccl_forward.9} parent=0
    _
  %s11 = ssub.s32 1, %s9
  %s12 = scalar_select 0, %s11, %s9
  loop: start=0, step=1, limit=4
  $region2: #{ccl_forward.9} parent=0 // loop_pre_header
    _
  $region3: #{ccl_forward.9} parent=0 // loop_header
    %s14 = sphi 0, %s18
    %p15 = scmp.ge.s32.totalorder %s14, 4
    %s24 = sphi 0, %s26
    %s27 = sphi 0, %s24
    %s28 = sphi 0, %s27
    %s44 = sphi 0, %s28
    %s50 = sphi 0, %s52
    %s53 = sphi 0, %s50
    %s54 = sphi 0, %s53
    %s70 = sphi 0, %s54
    %s76 = sphi 0, %s78
    %s79 = sphi 0, %s76
    %s80 = sphi 0, %s79
    %s96 = sphi 0, %s80
    %s100 = sphi 0, %s100
    %s102 = sphi 0, %s100
    %s103 = sphi 0, %s102
    %s117 = sphi 0, %s103
    %s121 = sphi 0, %s121
    %s123 = sphi 0, %s121
    %s124 = sphi 0, %s123
    %s138 = sphi 0, %s124
    %s142 = sphi 0, %s142
    %s144 = sphi 0, %s142
    %s145 = sphi 0, %s144
    %s159 = sphi 0, %s145
    %s163 = sphi 0, %s163
    %s165 = sphi 0, %s163
    %s166 = sphi 0, %s165
    %s180 = sphi 0, %s166
    %s184 = sphi 0, %s184
    %s186 = sphi 0, %s184
    %s187 = sphi 0, %s186
    %s201 = sphi 0, %s187
    %s207 = sphi 0, %s209
    %s210 = sphi 0, %s207
    %s211 = sphi 0, %s210
    %s227 = sphi 0, %s211
  $region4: #{ccl_forward.9} parent=0 // loop_header_branch
    %17 = sbr.rel (%p15) target = $region8
  $region5: #{ccl_forward.9} parent=0 // loop_body
    %s19 = ssub.s32 %s14, 1
    %s20 = ssub.s32 %s14, 2
    %s21 = sadd.s32 %s14, 1
    %s22 = ssub.s32 %s14, %s21
    %p23 = scmp.eq.s32.totalorder %s22, 0
    %s25 = sadd.s32 %s24, 1
    %s26 = scalar_select %p23, %s24, %s25
    %p29 = pneg %p23
    %p30 = scmp.eq.s32.totalorder %s14, 1
    %p31 = por %p29, %p30
    %p32 = scmp.ne.s32.totalorder %s24, %s27
    %p33 = scmp.eq.s32.totalorder %s14, 0
    %p34 = por %p32, %p33
    %p35 = scmp.ne.s32.totalorder %s24, %s27
    %p36 = scmp.eq.s32.totalorder %s19, 1
    %p37 = por %p35, %p36
    %p38 = scmp.ne.s32.totalorder %s27, %s28
    %p39 = scmp.eq.s32.totalorder %s19, 0
    %p40 = por %p38, %p39
    %p41 = scmp.ne.s32.totalorder %s27, %s28
    %p42 = scmp.eq.s32.totalorder %s20, 1
    %p43 = por %p41, %p42
    %p45 = scmp.ne.s32.totalorder %s28, %s44
    %p46 = scmp.eq.s32.totalorder %s20, 0
    %p47 = por %p45, %p46
    %s48 = ssub.s32 %s14, %s21
    %p49 = scmp.eq.s32.totalorder %s48, 0
    %s51 = sadd.s32 %s50, 1
    %s52 = scalar_select %p49, %s50, %s51
    %p55 = pneg %p49
    %p56 = scmp.eq.s32.totalorder %s14, 1
    %p57 = por %p55, %p56
    %p58 = scmp.ne.s32.totalorder %s50, %s53
    %p59 = scmp.eq.s32.totalorder %s14, 0
    %p60 = por %p58, %p59
    %p61 = scmp.ne.s32.totalorder %s50, %s53
    %p62 = scmp.eq.s32.totalorder %s19, 1
    %p63 = por %p61, %p62
    %p64 = scmp.ne.s32.totalorder %s53, %s54
    %p65 = scmp.eq.s32.totalorder %s19, 0
    %p66 = por %p64, %p65
    %p67 = scmp.ne.s32.totalorder %s53, %s54
    %p68 = scmp.eq.s32.totalorder %s20, 1
    %p69 = por %p67, %p68
    %p71 = scmp.ne.s32.totalorder %s54, %s70
    %p72 = scmp.eq.s32.totalorder %s20, 0
    %p73 = por %p71, %p72
    %s74 = ssub.s32 %s14, %s21
    %p75 = scmp.eq.s32.totalorder %s74, 0
    %s77 = sadd.s32 %s76, 1
    %s78 = scalar_select %p75, %s76, %s77
    %p81 = pneg %p75
    %p82 = scmp.eq.s32.totalorder %s14, 1
    %p83 = por %p81, %p82
    %p84 = scmp.ne.s32.totalorder %s76, %s79
    %p85 = scmp.eq.s32.totalorder %s14, 0
    %p86 = por %p84, %p85
    %p87 = scmp.ne.s32.totalorder %s76, %s79
    %p88 = scmp.eq.s32.totalorder %s19, 1
    %p89 = por %p87, %p88
    %p90 = scmp.ne.s32.totalorder %s79, %s80
    %p91 = scmp.eq.s32.totalorder %s19, 0
    %p92 = por %p90, %p91
    %p93 = scmp.ne.s32.totalorder %s79, %s80
    %p94 = scmp.eq.s32.totalorder %s20, 1
    %p95 = por %p93, %p94
    %p97 = scmp.ne.s32.totalorder %s80, %s96
    %p98 = scmp.eq.s32.totalorder %s20, 0
    %p99 = por %p97, %p98
    %s101 = sadd.s32 %s100, 1
    %p104 = scmp.eq.s32.totalorder %s14, 1
    %p105 = scmp.ne.s32.totalorder %s100, %s102
    %p106 = scmp.eq.s32.totalorder %s14, 0
    %p107 = por %p105, %p106
    %p108 = scmp.ne.s32.totalorder %s100, %s102
    %p109 = scmp.eq.s32.totalorder %s19, 1
    %p110 = por %p108, %p109
    %p111 = scmp.ne.s32.totalorder %s102, %s103
    %p112 = scmp.eq.s32.totalorder %s19, 0
    %p113 = por %p111, %p112
    %p114 = scmp.ne.s32.totalorder %s102, %s103
    %p115 = scmp.eq.s32.totalorder %s20, 1
    %p116 = por %p114, %p115
    %p118 = scmp.ne.s32.totalorder %s103, %s117
    %p119 = scmp.eq.s32.totalorder %s20, 0
    %p120 = por %p118, %p119
    %s122 = sadd.s32 %s121, 1
    %p125 = scmp.eq.s32.totalorder %s14, 1
    %p126 = scmp.ne.s32.totalorder %s121, %s123
    %p127 = scmp.eq.s32.totalorder %s14, 0
    %p128 = por %p126, %p127
    %p129 = scmp.ne.s32.totalorder %s121, %s123
    %p130 = scmp.eq.s32.totalorder %s19, 1
    %p131 = por %p129, %p130
    %p132 = scmp.ne.s32.totalorder %s123, %s124
    %p133 = scmp.eq.s32.totalorder %s19, 0
    %p134 = por %p132, %p133
    %p135 = scmp.ne.s32.totalorder %s123, %s124
    %p136 = scmp.eq.s32.totalorder %s20, 1
    %p137 = por %p135, %p136
    %p139 = scmp.ne.s32.totalorder %s124, %s138
    %p140 = scmp.eq.s32.totalorder %s20, 0
    %p141 = por %p139, %p140
    %s143 = sadd.s32 %s142, 1
    %p146 = scmp.eq.s32.totalorder %s14, 1
    %p147 = scmp.ne.s32.totalorder %s142, %s144
    %p148 = scmp.eq.s32.totalorder %s14, 0
    %p149 = por %p147, %p148
    %p150 = scmp.ne.s32.totalorder %s142, %s144
    %p151 = scmp.eq.s32.totalorder %s19, 1
    %p152 = por %p150, %p151
    %p153 = scmp.ne.s32.totalorder %s144, %s145
    %p154 = scmp.eq.s32.totalorder %s19, 0
    %p155 = por %p153, %p154
    %p156 = scmp.ne.s32.totalorder %s144, %s145
    %p157 = scmp.eq.s32.totalorder %s20, 1
    %p158 = por %p156, %p157
    %p160 = scmp.ne.s32.totalorder %s145, %s159
    %p161 = scmp.eq.s32.totalorder %s20, 0
    %p162 = por %p160, %p161
    %s164 = sadd.s32 %s163, 1
    %p167 = scmp.eq.s32.totalorder %s14, 1
    %p168 = scmp.ne.s32.totalorder %s163, %s165
    %p169 = scmp.eq.s32.totalorder %s14, 0
    %p170 = por %p168, %p169
    %p171 = scmp.ne.s32.totalorder %s163, %s165
    %p172 = scmp.eq.s32.totalorder %s19, 1
    %p173 = por %p171, %p172
    %p174 = scmp.ne.s32.totalorder %s165, %s166
    %p175 = scmp.eq.s32.totalorder %s19, 0
    %p176 = por %p174, %p175
    %p177 = scmp.ne.s32.totalorder %s165, %s166
    %p178 = scmp.eq.s32.totalorder %s20, 1
    %p179 = por %p177, %p178
    %p181 = scmp.ne.s32.totalorder %s166, %s180
    %p182 = scmp.eq.s32.totalorder %s20, 0
    %p183 = por %p181, %p182
    %s185 = sadd.s32 %s184, 1
    %p188 = scmp.eq.s32.totalorder %s14, 1
    %p189 = scmp.ne.s32.totalorder %s184, %s186
    %p190 = scmp.eq.s32.totalorder %s14, 0
    %p191 = por %p189, %p190
    %p192 = scmp.ne.s32.totalorder %s184, %s186
    %p193 = scmp.eq.s32.totalorder %s19, 1
    %p194 = por %p192, %p193
    %p195 = scmp.ne.s32.totalorder %s186, %s187
    %p196 = scmp.eq.s32.totalorder %s19, 0
    %p197 = por %p195, %p196
    %p198 = scmp.ne.s32.totalorder %s186, %s187
    %p199 = scmp.eq.s32.totalorder %s20, 1
    %p200 = por %p198, %p199
    %p202 = scmp.ne.s32.totalorder %s187, %s201
    %p203 = scmp.eq.s32.totalorder %s20, 0
    %p204 = por %p202, %p203
    %s205 = ssub.s32 %s14, %s21
    %p206 = scmp.eq.s32.totalorder %s205, 0
    %s208 = sadd.s32 %s207, 1
    %s209 = scalar_select %p206, %s207, %s208
    %p212 = pneg %p206
    %p213 = scmp.eq.s32.totalorder %s14, 1
    %p214 = por %p212, %p213
    %p215 = scmp.ne.s32.totalorder %s207, %s210
    %p216 = scmp.eq.s32.totalorder %s14, 0
    %p217 = por %p215, %p216
    %p218 = scmp.ne.s32.totalorder %s207, %s210
    %p219 = scmp.eq.s32.totalorder %s19, 1
    %p220 = por %p218, %p219
    %p221 = scmp.ne.s32.totalorder %s210, %s211
    %p222 = scmp.eq.s32.totalorder %s19, 0
    %p223 = por %p221, %p222
    %p224 = scmp.ne.s32.totalorder %s210, %s211
    %p225 = scmp.eq.s32.totalorder %s20, 1
    %p226 = por %p224, %p225
    %p228 = scmp.ne.s32.totalorder %s211, %s227
    %p229 = scmp.eq.s32.totalorder %s20, 0
    %p230 = por %p228, %p229
    %p231 = scmp.le.s32.totalorder 1, %s14
    %p232 = scmp.lt.s32.totalorder %s14, 3
    %p233 = pnand %p231, %p232
    %p234 = pneg %p233
    // Predicated region
    $region9: #{ccl_forward.9} parent=5 // pred_check
      _
    $region10: #{ccl_forward.9} parent=5 // pred_check_branch
      %236 = sbr.rel (%p233) target = $region12
    $region11: #{ccl_forward.9} parent=5 // pred_region
      %s237 = ssub.s32 %s14, 1
      // Predicated region
      $region13: #{ccl_forward.9} parent=11 // pred_check
        %p238 = pneg %p113
      $region14: #{ccl_forward.9} parent=11 // pred_check_branch
        %240 = sbr.rel (%p238) target = $region16
      $region15: #{ccl_forward.9} parent=11 // pred_region
        _
      $region16: #{ccl_forward.9} parent=11 // pred_fallthru
        _
      // Predicated region
      $region17: #{ccl_forward.9} parent=11 // pred_check
        %p241 = pneg %p134
      $region18: #{ccl_forward.9} parent=11 // pred_check_branch
        %243 = sbr.rel (%p241) target = $region20
      $region19: #{ccl_forward.9} parent=11 // pred_region
        _
      $region20: #{ccl_forward.9} parent=11 // pred_fallthru
        _
      // Predicated region
      $region21: #{ccl_forward.9} parent=11 // pred_check
        %p244 = pneg %p155
      $region22: #{ccl_forward.9} parent=11 // pred_check_branch
        %246 = sbr.rel (%p244) target = $region24
      $region23: #{ccl_forward.9} parent=11 // pred_region
        _
      $region24: #{ccl_forward.9} parent=11 // pred_fallthru
        _
      // Predicated region
      $region25: #{ccl_forward.9} parent=11 // pred_check
        %p247 = pneg %p176
      $region26: #{ccl_forward.9} parent=11 // pred_check_branch
        %249 = sbr.rel (%p247) target = $region28
      $region27: #{ccl_forward.9} parent=11 // pred_region
        _
      $region28: #{ccl_forward.9} parent=11 // pred_fallthru
        _
      // Predicated region
      $region29: #{ccl_forward.9} parent=11 // pred_check
        %p250 = pneg %p197
      $region30: #{ccl_forward.9} parent=11 // pred_check_branch
        %252 = sbr.rel (%p250) target = $region32
      $region31: #{ccl_forward.9} parent=11 // pred_region
        _
      $region32: #{ccl_forward.9} parent=11 // pred_fallthru
        _
    $region12: #{ccl_forward.9} parent=5 // pred_fallthru
      _
    %p253 = scmp.lt.s32.totalorder %s14, 2
    // Predicated region
    $region33: #{ccl_forward.9} parent=5 // pred_check
      %p254 = pneg %p253
    $region34: #{ccl_forward.9} parent=5 // pred_check_branch
      %256 = sbr.rel (%p254) target = $region36
    $region35: #{ccl_forward.9} parent=5 // pred_region
      // Predicated region
      $region37: #{ccl_forward.9} parent=35 // pred_check
        %p257 = pneg %p34
      $region38: #{ccl_forward.9} parent=35 // pred_check_branch
        %259 = sbr.rel (%p257) target = $region40
      $region39: #{ccl_forward.9} parent=35 // pred_region
        %p260 = scmp.lt.s32.totalorder %s14, 1
        %s261 = scalar_select %p260, %s14, 1
        %s262 = smul.addr %s261, 4
        %s263 = smul.addr %s262, 4
        %s264 = scalar_lea.vmem %s0, %s263
      $region40: #{ccl_forward.9} parent=35 // pred_fallthru
        _
      // Predicated region
      $region41: #{ccl_forward.9} parent=35 // pred_check
        %p265 = pneg %p60
      $region42: #{ccl_forward.9} parent=35 // pred_check_branch
        %267 = sbr.rel (%p265) target = $region44
      $region43: #{ccl_forward.9} parent=35 // pred_region
        %p268 = scmp.lt.s32.totalorder %s14, 1
        %s269 = scalar_select %p268, %s14, 1
        %s270 = smul.addr %s269, 4
        %s271 = smul.addr %s270, 4
        %s272 = scalar_lea.vmem %s1, %s271
      $region44: #{ccl_forward.9} parent=35 // pred_fallthru
        _
      // Predicated region
      $region45: #{ccl_forward.9} parent=35 // pred_check
        %p273 = pneg %p86
      $region46: #{ccl_forward.9} parent=35 // pred_check_branch
        %275 = sbr.rel (%p273) target = $region48
      $region47: #{ccl_forward.9} parent=35 // pred_region
        %p276 = scmp.lt.s32.totalorder %s14, 1
        %s277 = scalar_select %p276, %s14, 1
        %s278 = smul.addr %s277, 4
        %s279 = smul.addr %s278, 4
        %s280 = scalar_lea.vmem %s2, %s279
      $region48: #{ccl_forward.9} parent=35 // pred_fallthru
        _
    $region36: #{ccl_forward.9} parent=5 // pred_fallthru
      _
    %p281 = scmp.le.s32.totalorder 1, %s14
    %p282 = scmp.lt.s32.totalorder %s14, 3
    %p283 = pnand %p281, %p282
    %p284 = pneg %p283
    // Predicated region
    $region49: #{ccl_forward.9} parent=5 // pred_check
      _
    $region50: #{ccl_forward.9} parent=5 // pred_check_branch
      %286 = sbr.rel (%p283) target = $region52
    $region51: #{ccl_forward.9} parent=5 // pred_region
      %s287 = ssub.s32 %s14, 1
      %p288 = scmp.lt.s32.totalorder %s19, 1
      %s289 = scalar_select %p288, %s19, 1
      %s290 = smul.addr %s289, 4
      %s291 = smul.addr %s290, 4
      %s292 = scalar_lea.vmem %s0, %s291
      %p293 = pneg %p40
      %p294 = pneg %p37
      %p295 = scmp.lt.s32.totalorder %s19, 1
      %s296 = scalar_select %p295, %s19, 1
      %s297 = smul.addr %s296, 4
      %s298 = smul.addr %s297, 4
      %s299 = scalar_lea.vmem %s1, %s298
      %p300 = pneg %p66
      %p301 = pneg %p63
      %p302 = scmp.lt.s32.totalorder %s19, 1
      %s303 = scalar_select %p302, %s19, 1
      %s304 = smul.addr %s303, 4
      %s305 = smul.addr %s304, 4
      %s306 = scalar_lea.vmem %s2, %s305
      %p307 = pneg %p92
      %p308 = pneg %p89
      %p309 = pneg %p113
      %p310 = pneg %p110
      %p311 = pneg %p134
      %p312 = pneg %p131
      %p313 = pneg %p155
      %p314 = pneg %p152
      %p315 = pneg %p176
      %p316 = pneg %p173
      %p317 = pneg %p197
      %p318 = pneg %p194
      %p319 = pneg %p223
      %p320 = pneg %p220
      %p321 = scmp.lt.s32.totalorder %s19, 1
      %s322 = scalar_select %p321, %s19, 1
      %s323 = smul.addr %s322, 4
      %s324 = smul.addr %s323, 8
      %s325 = scalar_lea.vmem %s8, %s324
      %p326 = scmp.lt.s32.totalorder %s19, 1
      %s327 = scalar_select %p326, %s19, 1
      %s328 = smul.addr %s327, 4
      %s329 = smul.addr %s328, 4
      %s330 = scalar_lea.vmem %s0, %s329
      %p331 = scmp.lt.s32.totalorder %s19, 1
      %s332 = scalar_select %p331, %s19, 1
      %s333 = smul.addr %s332, 4
      %s334 = smul.addr %s333, 4
      %s335 = scalar_lea.vmem %s1, %s334
      %p336 = scmp.lt.s32.totalorder %s19, 1
      %s337 = scalar_select %p336, %s19, 1
      %s338 = smul.addr %s337, 4
      %s339 = smul.addr %s338, 4
      %s340 = scalar_lea.vmem %s2, %s339
      %p341 = scmp.lt.s32.totalorder %s19, 1
      %s342 = scalar_select %p341, %s19, 1
      %s343 = smul.addr %s342, 4
      %s344 = smul.addr %s343, 8
      %s345 = scalar_lea.vmem %s8, %s344
      %v347 = vld [vmem:[%s330] sm:$0xff]
      %v348 = vld [vmem:[%s330 + $0x8] sm:$0xff]
      %v349 = vld [vmem:[%s3] sm:$0xf]
      %s350 = scalar_lea.vmem %s3, 4
      %v351 = vld [vmem:[%s350] sm:$0xf]
      %v354 = vunpack.c.l.b16 %v347
      %v355 = vunpack.c.h.b16 %v347
      %v356 = vunpack.c.l.b16 %v348
      %v357 = vunpack.c.h.b16 %v348
      %v358 = vpack.c.b16 %v354, %v354
      %v359 = vpack.c.b16 %v355, %v355
      %v360 = vpack.c.b16 %v356, %v356
      %v361 = vpack.c.b16 %v357, %v357
      %362 = vrot.lane.b32.xlu0 %v358, 106
      %v363 = vpop.permute.xlu0 %362
      %364 = vrot.lane.b32.xlu0 %v359, 106
      %v365 = vpop.permute.xlu0 %364
      %366 = vrot.lane.b32.xlu0 %v360, 106
      %v367 = vpop.permute.xlu0 %366
      %368 = vrot.lane.b32.xlu0 %v361, 106
      %v369 = vpop.permute.xlu0 %368
      %vm370 = vcmask 867328
      %v371 = vsel %vm370, %v363, %v365
      %v372 = vsel %vm370, %v365, %v367
      %v373 = vsel %vm370, %v367, %v369
      %vm374 = vcmask 64512
      %v376 = vsel %vm374, %v351, 0
      %vm378 = vcmask 1043456
      %v380 = vsel %vm378, %v371, 0
      %v383 = vsel %vm378, %v372, 0
      %v386 = vsel %vm378, %v373, 0
      %v389 = vsel %vm378, %v369, 0
      %391 = vmatprep.subr.bf16.mxu0 0
      %392 = vmatpush1.bf16.msra.mxu0 0
      %393 = vmatprep.subr.bf16.mxu0 0
      %394 = vmatpush1.bf16.msra.mxu0 0
      %395 = vmatprep.subr.bf16.mxu0 0
      %396 = vmatpush1.bf16.msra.mxu0 0
      %397 = vmatprep.subr.bf16.mxu0 0
      %398 = vmatpush1.bf16.msra.mxu0 0
      %399 = vmatprep.subr.bf16.mxu0 0
      %400 = vmatpush1.bf16.msra.mxu0 0
      %401 = vmatprep.subr.bf16.mxu0 0
      %402 = vmatpush1.bf16.msra.mxu0 0
      %403 = vmatprep.subr.bf16.mxu0 0
      %404 = vmatpush1.bf16.msra.mxu0 0
      %405 = vmatprep.subr.bf16.mxu0 %v383
      %406 = vmatpush1.bf16.msra.mxu0 %v380
      %407 = vmatprep.subr.bf16.mxu0 0
      %408 = vmatpush2.bf16.msra.mxu0 0
      %409 = vmatprep.subr.bf16.mxu0 0
      %410 = vmatpush2.bf16.msra.mxu0 0
      %411 = vmatprep.subr.bf16.mxu0 0
      %412 = vmatpush2.bf16.msra.mxu0 0
      %413 = vmatprep.subr.bf16.mxu0 0
      %414 = vmatpush2.bf16.msra.mxu0 0
      %415 = vmatprep.subr.bf16.mxu0 0
      %416 = vmatpush2.bf16.msra.mxu0 0
      %417 = vmatprep.subr.bf16.mxu0 0
      %418 = vmatpush2.bf16.msra.mxu0 0
      %419 = vmatprep.subr.bf16.mxu0 0
      %420 = vmatpush2.bf16.msra.mxu0 0
      %421 = vmatprep.subr.bf16.mxu0 0
      %422 = vmatpush2.bf16.msra.mxu0 0
      %423 = vmatprep.mubr.bf16.mxu0 0
      %424 = vmatmul.mubr.bf16.gmra.mxu0 %v376
      %v425 = vpop.f32.mrf.mxu0
      %v426 = vadd.f32 0.0, %v425
      %v427 = vpop.f32.mrf.mxu0
      %v428 = vadd.f32 0.0, %v427
      %v429 = vpop.f32.mrf.mxu0
      %v430 = vpop.f32.mrf.mxu0
      %431 = vdwg.mxu0
      %432 = vmatprep.subr.bf16.mxu0 0
      %433 = vmatpush1.bf16.msra.mxu0 0
      %434 = vmatprep.subr.bf16.mxu0 0
      %435 = vmatpush1.bf16.msra.mxu0 0
      %436 = vmatprep.subr.bf16.mxu0 0
      %437 = vmatpush1.bf16.msra.mxu0 0
      %438 = vmatprep.subr.bf16.mxu0 0
      %439 = vmatpush1.bf16.msra.mxu0 0
      %440 = vmatprep.subr.bf16.mxu0 0
      %441 = vmatpush1.bf16.msra.mxu0 0
      %442 = vmatprep.subr.bf16.mxu0 0
      %443 = vmatpush1.bf16.msra.mxu0 0
      %444 = vmatprep.subr.bf16.mxu0 0
      %445 = vmatpush1.bf16.msra.mxu0 0
      %446 = vmatprep.subr.bf16.mxu0 %v389
      %447 = vmatpush1.bf16.msra.mxu0 %v386
      %448 = vmatprep.subr.bf16.mxu0 0
      %449 = vmatpush2.bf16.msra.mxu0 0
      %450 = vmatprep.subr.bf16.mxu0 0
      %451 = vmatpush2.bf16.msra.mxu0 0
      %452 = vmatprep.subr.bf16.mxu0 0
      %453 = vmatpush2.bf16.msra.mxu0 0
      %454 = vmatprep.subr.bf16.mxu0 0
      %455 = vmatpush2.bf16.msra.mxu0 0
      %456 = vmatprep.subr.bf16.mxu0 0
      %457 = vmatpush2.bf16.msra.mxu0 0
      %458 = vmatprep.subr.bf16.mxu0 0
      %459 = vmatpush2.bf16.msra.mxu0 0
      %460 = vmatprep.subr.bf16.mxu0 0
      %461 = vmatpush2.bf16.msra.mxu0 0
      %462 = vmatprep.subr.bf16.mxu0 0
      %463 = vmatpush2.bf16.msra.mxu0 0
      %464 = vmatprep.mubr.bf16.mxu0 0
      %465 = vmatmul.mubr.bf16.gmra.mxu0 %v376
      %v466 = vpop.f32.mrf.mxu0
      %v467 = vadd.f32 0.0, %v466
      %v468 = vpop.f32.mrf.mxu0
      %v469 = vadd.f32 0.0, %v468
      %v470 = vpop.f32.mrf.mxu0
      %v471 = vpop.f32.mrf.mxu0
      %472 = vdwg.mxu0
      %473 = vrot.lane.b32.xlu0 %v358, 107
      %v474 = vpop.permute.xlu0 %473
      %475 = vrot.lane.b32.xlu0 %v359, 107
      %v476 = vpop.permute.xlu0 %475
      %477 = vrot.lane.b32.xlu0 %v360, 107
      %v478 = vpop.permute.xlu0 %477
      %479 = vrot.lane.b32.xlu0 %v361, 107
      %v480 = vpop.permute.xlu0 %479
      %vm481 = vcmask 875520
      %v482 = vsel %vm481, %v474, %v476
      %v483 = vsel %vm481, %v476, %v478
      %v484 = vsel %vm481, %v478, %v480
      %v486 = vsel %vm374, %v349, 0
      %v489 = vsel %vm378, %v482, 0
      %v492 = vsel %vm378, %v483, 0
      %v495 = vsel %vm378, %v484, 0
      %v498 = vsel %vm378, %v480, 0
      %500 = vmatprep.subr.bf16.mxu0 0
      %501 = vmatpush1.bf16.msra.mxu0 0
      %502 = vmatprep.subr.bf16.mxu0 0
      %503 = vmatpush1.bf16.msra.mxu0 0
      %504 = vmatprep.subr.bf16.mxu0 0
      %505 = vmatpush1.bf16.msra.mxu0 0
      %506 = vmatprep.subr.bf16.mxu0 0
      %507 = vmatpush1.bf16.msra.mxu0 0
      %508 = vmatprep.subr.bf16.mxu0 0
      %509 = vmatpush1.bf16.msra.mxu0 0
      %510 = vmatprep.subr.bf16.mxu0 0
      %511 = vmatpush1.bf16.msra.mxu0 0
      %512 = vmatprep.subr.bf16.mxu0 0
      %513 = vmatpush1.bf16.msra.mxu0 0
      %514 = vmatprep.subr.bf16.mxu0 %v492
      %515 = vmatpush1.bf16.msra.mxu0 %v489
      %516 = vmatprep.subr.bf16.mxu0 0
      %517 = vmatpush2.bf16.msra.mxu0 0
      %518 = vmatprep.subr.bf16.mxu0 0
      %519 = vmatpush2.bf16.msra.mxu0 0
      %520 = vmatprep.subr.bf16.mxu0 0
      %521 = vmatpush2.bf16.msra.mxu0 0
      %522 = vmatprep.subr.bf16.mxu0 0
      %523 = vmatpush2.bf16.msra.mxu0 0
      %524 = vmatprep.subr.bf16.mxu0 0
      %525 = vmatpush2.bf16.msra.mxu0 0
      %526 = vmatprep.subr.bf16.mxu0 0
      %527 = vmatpush2.bf16.msra.mxu0 0
      %528 = vmatprep.subr.bf16.mxu0 0
      %529 = vmatpush2.bf16.msra.mxu0 0
      %530 = vmatprep.subr.bf16.mxu0 0
      %531 = vmatpush2.bf16.msra.mxu0 0
      %532 = vmatprep.mubr.bf16.mxu0 0
      %533 = vmatmul.mubr.bf16.gmra.mxu0 %v486
      %v534 = vpop.f32.mrf.mxu0
      %v535 = vadd.f32 %v426, %v534
      %v536 = vpop.f32.mrf.mxu0
      %v537 = vadd.f32 %v428, %v536
      %v538 = vpop.f32.mrf.mxu0
      %v539 = vpop.f32.mrf.mxu0
      %540 = vdwg.mxu0
      %541 = vmatprep.subr.bf16.mxu0 0
      %542 = vmatpush1.bf16.msra.mxu0 0
      %543 = vmatprep.subr.bf16.mxu0 0
      %544 = vmatpush1.bf16.msra.mxu0 0
      %545 = vmatprep.subr.bf16.mxu0 0
      %546 = vmatpush1.bf16.msra.mxu0 0
      %547 = vmatprep.subr.bf16.mxu0 0
      %548 = vmatpush1.bf16.msra.mxu0 0
      %549 = vmatprep.subr.bf16.mxu0 0
      %550 = vmatpush1.bf16.msra.mxu0 0
      %551 = vmatprep.subr.bf16.mxu0 0
      %552 = vmatpush1.bf16.msra.mxu0 0
      %553 = vmatprep.subr.bf16.mxu0 0
      %554 = vmatpush1.bf16.msra.mxu0 0
      %555 = vmatprep.subr.bf16.mxu0 %v498
      %556 = vmatpush1.bf16.msra.mxu0 %v495
      %557 = vmatprep.subr.bf16.mxu0 0
      %558 = vmatpush2.bf16.msra.mxu0 0
      %559 = vmatprep.subr.bf16.mxu0 0
      %560 = vmatpush2.bf16.msra.mxu0 0
      %561 = vmatprep.subr.bf16.mxu0 0
      %562 = vmatpush2.bf16.msra.mxu0 0
      %563 = vmatprep.subr.bf16.mxu0 0
      %564 = vmatpush2.bf16.msra.mxu0 0
      %565 = vmatprep.subr.bf16.mxu0 0
      %566 = vmatpush2.bf16.msra.mxu0 0
      %567 = vmatprep.subr.bf16.mxu0 0
      %568 = vmatpush2.bf16.msra.mxu0 0
      %569 = vmatprep.subr.bf16.mxu0 0
      %570 = vmatpush2.bf16.msra.mxu0 0
      %571 = vmatprep.subr.bf16.mxu0 0
      %572 = vmatpush2.bf16.msra.mxu0 0
      %573 = vmatprep.mubr.bf16.mxu0 0
      %574 = vmatmul.mubr.bf16.gmra.mxu0 %v486
      %v575 = vpop.f32.mrf.mxu0
      %v576 = vadd.f32 %v467, %v575
      %v577 = vpop.f32.mrf.mxu0
      %v578 = vadd.f32 %v469, %v577
      %v579 = vpop.f32.mrf.mxu0
      %v580 = vpop.f32.mrf.mxu0
      %581 = vdwg.mxu0
      %s582 = scalar_lea.vmem %s3, 8
      %v583 = vld [vmem:[%s582] sm:$0xf]
      %584 = vrot.lane.b32.xlu0 %v358, 105
      %v585 = vpop.permute.xlu0 %584
      %586 = vrot.lane.b32.xlu0 %v359, 105
      %v587 = vpop.permute.xlu0 %586
      %588 = vrot.lane.b32.xlu0 %v360, 105
      %v589 = vpop.permute.xlu0 %588
      %590 = vrot.lane.b32.xlu0 %v361, 105
      %v591 = vpop.permute.xlu0 %590
      %vm592 = vcmask 859136
      %v593 = vsel %vm592, %v585, %v587
      %v594 = vsel %vm592, %v587, %v589
      %v595 = vsel %vm592, %v589, %v591
      %v597 = vsel %vm374, %v583, 0
      %v600 = vsel %vm378, %v593, 0
      %v603 = vsel %vm378, %v594, 0
      %v606 = vsel %vm378, %v595, 0
      %v609 = vsel %vm378, %v591, 0
      %611 = vmatprep.subr.bf16.mxu0 0
      %612 = vmatpush1.bf16.msra.mxu0 0
      %613 = vmatprep.subr.bf16.mxu0 0
      %614 = vmatpush1.bf16.msra.mxu0 0
      %615 = vmatprep.subr.bf16.mxu0 0
      %616 = vmatpush1.bf16.msra.mxu0 0
      %617 = vmatprep.subr.bf16.mxu0 0
      %618 = vmatpush1.bf16.msra.mxu0 0
      %619 = vmatprep.subr.bf16.mxu0 0
      %620 = vmatpush1.bf16.msra.mxu0 0
      %621 = vmatprep.subr.bf16.mxu0 0
      %622 = vmatpush1.bf16.msra.mxu0 0
      %623 = vmatprep.subr.bf16.mxu0 0
      %624 = vmatpush1.bf16.msra.mxu0 0
      %625 = vmatprep.subr.bf16.mxu0 %v603
      %626 = vmatpush1.bf16.msra.mxu0 %v600
      %627 = vmatprep.subr.bf16.mxu0 0
      %628 = vmatpush2.bf16.msra.mxu0 0
      %629 = vmatprep.subr.bf16.mxu0 0
      %630 = vmatpush2.bf16.msra.mxu0 0
      %631 = vmatprep.subr.bf16.mxu0 0
      %632 = vmatpush2.bf16.msra.mxu0 0
      %633 = vmatprep.subr.bf16.mxu0 0
      %634 = vmatpush2.bf16.msra.mxu0 0
      %635 = vmatprep.subr.bf16.mxu0 0
      %636 = vmatpush2.bf16.msra.mxu0 0
      %637 = vmatprep.subr.bf16.mxu0 0
      %638 = vmatpush2.bf16.msra.mxu0 0
      %639 = vmatprep.subr.bf16.mxu0 0
      %640 = vmatpush2.bf16.msra.mxu0 0
      %641 = vmatprep.subr.bf16.mxu0 0
      %642 = vmatpush2.bf16.msra.mxu0 0
      %643 = vmatprep.mubr.bf16.mxu0 0
      %644 = vmatmul.mubr.bf16.gmra.mxu0 %v597
      %v645 = vpop.f32.mrf.mxu0
      %v646 = vadd.f32 0.0, %v645
      %v647 = vpop.f32.mrf.mxu0
      %v648 = vadd.f32 0.0, %v647
      %v649 = vpop.f32.mrf.mxu0
      %v650 = vpop.f32.mrf.mxu0
      %651 = vdwg.mxu0
      %652 = vmatprep.subr.bf16.mxu0 0
      %653 = vmatpush1.bf16.msra.mxu0 0
      %654 = vmatprep.subr.bf16.mxu0 0
      %655 = vmatpush1.bf16.msra.mxu0 0
      %656 = vmatprep.subr.bf16.mxu0 0
      %657 = vmatpush1.bf16.msra.mxu0 0
      %658 = vmatprep.subr.bf16.mxu0 0
      %659 = vmatpush1.bf16.msra.mxu0 0
      %660 = vmatprep.subr.bf16.mxu0 0
      %661 = vmatpush1.bf16.msra.mxu0 0
      %662 = vmatprep.subr.bf16.mxu0 0
      %663 = vmatpush1.bf16.msra.mxu0 0
      %664 = vmatprep.subr.bf16.mxu0 0
      %665 = vmatpush1.bf16.msra.mxu0 0
      %666 = vmatprep.subr.bf16.mxu0 %v609
      %667 = vmatpush1.bf16.msra.mxu0 %v606
      %668 = vmatprep.subr.bf16.mxu0 0
      %669 = vmatpush2.bf16.msra.mxu0 0
      %670 = vmatprep.subr.bf16.mxu0 0
      %671 = vmatpush2.bf16.msra.mxu0 0
      %672 = vmatprep.subr.bf16.mxu0 0
      %673 = vmatpush2.bf16.msra.mxu0 0
      %674 = vmatprep.subr.bf16.mxu0 0
      %675 = vmatpush2.bf16.msra.mxu0 0
      %676 = vmatprep.subr.bf16.mxu0 0
      %677 = vmatpush2.bf16.msra.mxu0 0
      %678 = vmatprep.subr.bf16.mxu0 0
      %679 = vmatpush2.bf16.msra.mxu0 0
      %680 = vmatprep.subr.bf16.mxu0 0
      %681 = vmatpush2.bf16.msra.mxu0 0
      %682 = vmatprep.subr.bf16.mxu0 0
      %683 = vmatpush2.bf16.msra.mxu0 0
      %684 = vmatprep.mubr.bf16.mxu0 0
      %685 = vmatmul.mubr.bf16.gmra.mxu0 %v597
      %v686 = vpop.f32.mrf.mxu0
      %v687 = vadd.f32 0.0, %v686
      %v688 = vpop.f32.mrf.mxu0
      %v689 = vadd.f32 0.0, %v688
      %v690 = vpop.f32.mrf.mxu0
      %v691 = vpop.f32.mrf.mxu0
      %692 = vdwg.mxu0
      %v693 = vadd.f32 %v535, %v646
      %v694 = vadd.f32 %v537, %v648
      %v695 = vadd.f32 %v576, %v687
      %v696 = vadd.f32 %v578, %v689
      %s697 = scalar_lea.vmem %s3, 12
      %v698 = vld [vmem:[%s697] sm:$0xf]
      %699 = vrot.lane.b32.xlu0 %v358, 87
      %v700 = vpop.permute.xlu0 %699
      %701 = vrot.lane.b32.xlu0 %v359, 87
      %v702 = vpop.permute.xlu0 %701
      %703 = vrot.lane.b32.xlu0 %v360, 87
      %v704 = vpop.permute.xlu0 %703
      %705 = vrot.lane.b32.xlu0 %v361, 87
      %v706 = vpop.permute.xlu0 %705
      %vm707 = vcmask 711680
      %v708 = vsel %vm707, %v700, %v702
      %v709 = vsel %vm707, %v702, %v704
      %v710 = vsel %vm707, %v704, %v706
      %v712 = vsel %vm374, %v698, 0
      %v715 = vsel %vm378, %v708, 0
      %v718 = vsel %vm378, %v709, 0
      %v721 = vsel %vm378, %v710, 0
      %v724 = vsel %vm378, %v706, 0
      %726 = vmatprep.subr.bf16.mxu0 0
      %727 = vmatpush1.bf16.msra.mxu0 0
      %728 = vmatprep.subr.bf16.mxu0 0
      %729 = vmatpush1.bf16.msra.mxu0 0
      %730 = vmatprep.subr.bf16.mxu0 0
      %731 = vmatpush1.bf16.msra.mxu0 0
      %732 = vmatprep.subr.bf16.mxu0 0
      %733 = vmatpush1.bf16.msra.mxu0 0
      %734 = vmatprep.subr.bf16.mxu0 0
      %735 = vmatpush1.bf16.msra.mxu0 0
      %736 = vmatprep.subr.bf16.mxu0 0
      %737 = vmatpush1.bf16.msra.mxu0 0
      %738 = vmatprep.subr.bf16.mxu0 0
      %739 = vmatpush1.bf16.msra.mxu0 0
      %740 = vmatprep.subr.bf16.mxu0 %v718
      %741 = vmatpush1.bf16.msra.mxu0 %v715
      %742 = vmatprep.subr.bf16.mxu0 0
      %743 = vmatpush2.bf16.msra.mxu0 0
      %744 = vmatprep.subr.bf16.mxu0 0
      %745 = vmatpush2.bf16.msra.mxu0 0
      %746 = vmatprep.subr.bf16.mxu0 0
      %747 = vmatpush2.bf16.msra.mxu0 0
      %748 = vmatprep.subr.bf16.mxu0 0
      %749 = vmatpush2.bf16.msra.mxu0 0
      %750 = vmatprep.subr.bf16.mxu0 0
      %751 = vmatpush2.bf16.msra.mxu0 0
      %752 = vmatprep.subr.bf16.mxu0 0
      %753 = vmatpush2.bf16.msra.mxu0 0
      %754 = vmatprep.subr.bf16.mxu0 0
      %755 = vmatpush2.bf16.msra.mxu0 0
      %756 = vmatprep.subr.bf16.mxu0 0
      %757 = vmatpush2.bf16.msra.mxu0 0
      %758 = vmatprep.mubr.bf16.mxu0 0
      %759 = vmatmul.mubr.bf16.gmra.mxu0 %v712
      %v760 = vpop.f32.mrf.mxu0
      %v761 = vadd.f32 0.0, %v760
      %v762 = vpop.f32.mrf.mxu0
      %v763 = vadd.f32 0.0, %v762
      %v764 = vpop.f32.mrf.mxu0
      %v765 = vpop.f32.mrf.mxu0
      %766 = vdwg.mxu0
      %767 = vmatprep.subr.bf16.mxu0 0
      %768 = vmatpush1.bf16.msra.mxu0 0
      %769 = vmatprep.subr.bf16.mxu0 0
      %770 = vmatpush1.bf16.msra.mxu0 0
      %771 = vmatprep.subr.bf16.mxu0 0
      %772 = vmatpush1.bf16.msra.mxu0 0
      %773 = vmatprep.subr.bf16.mxu0 0
      %774 = vmatpush1.bf16.msra.mxu0 0
      %775 = vmatprep.subr.bf16.mxu0 0
      %776 = vmatpush1.bf16.msra.mxu0 0
      %777 = vmatprep.subr.bf16.mxu0 0
      %778 = vmatpush1.bf16.msra.mxu0 0
      %779 = vmatprep.subr.bf16.mxu0 0
      %780 = vmatpush1.bf16.msra.mxu0 0
      %781 = vmatprep.subr.bf16.mxu0 %v724
      %782 = vmatpush1.bf16.msra.mxu0 %v721
      %783 = vmatprep.subr.bf16.mxu0 0
      %784 = vmatpush2.bf16.msra.mxu0 0
      %785 = vmatprep.subr.bf16.mxu0 0
      %786 = vmatpush2.bf16.msra.mxu0 0
      %787 = vmatprep.subr.bf16.mxu0 0
      %788 = vmatpush2.bf16.msra.mxu0 0
      %789 = vmatprep.subr.bf16.mxu0 0
      %790 = vmatpush2.bf16.msra.mxu0 0
      %791 = vmatprep.subr.bf16.mxu0 0
      %792 = vmatpush2.bf16.msra.mxu0 0
      %793 = vmatprep.subr.bf16.mxu0 0
      %794 = vmatpush2.bf16.msra.mxu0 0
      %795 = vmatprep.subr.bf16.mxu0 0
      %796 = vmatpush2.bf16.msra.mxu0 0
      %797 = vmatprep.subr.bf16.mxu0 0
      %798 = vmatpush2.bf16.msra.mxu0 0
      %799 = vmatprep.mubr.bf16.mxu0 0
      %800 = vmatmul.mubr.bf16.gmra.mxu0 %v712
      %v801 = vpop.f32.mrf.mxu0
      %v802 = vadd.f32 0.0, %v801
      %v803 = vpop.f32.mrf.mxu0
      %v804 = vadd.f32 0.0, %v803
      %v805 = vpop.f32.mrf.mxu0
      %v806 = vpop.f32.mrf.mxu0
      %807 = vdwg.mxu0
      %v808 = vadd.f32 %v693, %v761
      %v809 = vadd.f32 %v694, %v763
      %v810 = vadd.f32 %v695, %v802
      %v811 = vadd.f32 %v696, %v804
      %s812 = scalar_lea.vmem %s3, 16
      %v813 = vld [vmem:[%s812] sm:$0xf]
      %814 = vrot.lane.b32.xlu0 %v358, 86
      %v815 = vpop.permute.xlu0 %814
      %816 = vrot.lane.b32.xlu0 %v359, 86
      %v817 = vpop.permute.xlu0 %816
      %818 = vrot.lane.b32.xlu0 %v360, 86
      %v819 = vpop.permute.xlu0 %818
      %820 = vrot.lane.b32.xlu0 %v361, 86
      %v821 = vpop.permute.xlu0 %820
      %vm822 = vcmask 703488
      %v823 = vsel %vm822, %v815, %v817
      %v824 = vsel %vm822, %v817, %v819
      %v825 = vsel %vm822, %v819, %v821
      %v827 = vsel %vm374, %v813, 0
      %v830 = vsel %vm378, %v823, 0
      %v833 = vsel %vm378, %v824, 0
      %v836 = vsel %vm378, %v825, 0
      %v839 = vsel %vm378, %v821, 0
      %841 = vmatprep.subr.bf16.mxu0 0
      %842 = vmatpush1.bf16.msra.mxu0 0
      %843 = vmatprep.subr.bf16.mxu0 0
      %844 = vmatpush1.bf16.msra.mxu0 0
      %845 = vmatprep.subr.bf16.mxu0 0
      %846 = vmatpush1.bf16.msra.mxu0 0
      %847 = vmatprep.subr.bf16.mxu0 0
      %848 = vmatpush1.bf16.msra.mxu0 0
      %849 = vmatprep.subr.bf16.mxu0 0
      %850 = vmatpush1.bf16.msra.mxu0 0
      %851 = vmatprep.subr.bf16.mxu0 0
      %852 = vmatpush1.bf16.msra.mxu0 0
      %853 = vmatprep.subr.bf16.mxu0 0
      %854 = vmatpush1.bf16.msra.mxu0 0
      %855 = vmatprep.subr.bf16.mxu0 %v833
      %856 = vmatpush1.bf16.msra.mxu0 %v830
      %857 = vmatprep.subr.bf16.mxu0 0
      %858 = vmatpush2.bf16.msra.mxu0 0
      %859 = vmatprep.subr.bf16.mxu0 0
      %860 = vmatpush2.bf16.msra.mxu0 0
      %861 = vmatprep.subr.bf16.mxu0 0
      %862 = vmatpush2.bf16.msra.mxu0 0
      %863 = vmatprep.subr.bf16.mxu0 0
      %864 = vmatpush2.bf16.msra.mxu0 0
      %865 = vmatprep.subr.bf16.mxu0 0
      %866 = vmatpush2.bf16.msra.mxu0 0
      %867 = vmatprep.subr.bf16.mxu0 0
      %868 = vmatpush2.bf16.msra.mxu0 0
      %869 = vmatprep.subr.bf16.mxu0 0
      %870 = vmatpush2.bf16.msra.mxu0 0
      %871 = vmatprep.subr.bf16.mxu0 0
      %872 = vmatpush2.bf16.msra.mxu0 0
      %873 = vmatprep.mubr.bf16.mxu0 0
      %874 = vmatmul.mubr.bf16.gmra.mxu0 %v827
      %v875 = vpop.f32.mrf.mxu0
      %v876 = vadd.f32 0.0, %v875
      %v877 = vpop.f32.mrf.mxu0
      %v878 = vadd.f32 0.0, %v877
      %v879 = vpop.f32.mrf.mxu0
      %v880 = vpop.f32.mrf.mxu0
      %881 = vdwg.mxu0
      %882 = vmatprep.subr.bf16.mxu0 0
      %883 = vmatpush1.bf16.msra.mxu0 0
      %884 = vmatprep.subr.bf16.mxu0 0
      %885 = vmatpush1.bf16.msra.mxu0 0
      %886 = vmatprep.subr.bf16.mxu0 0
      %887 = vmatpush1.bf16.msra.mxu0 0
      %888 = vmatprep.subr.bf16.mxu0 0
      %889 = vmatpush1.bf16.msra.mxu0 0
      %890 = vmatprep.subr.bf16.mxu0 0
      %891 = vmatpush1.bf16.msra.mxu0 0
      %892 = vmatprep.subr.bf16.mxu0 0
      %893 = vmatpush1.bf16.msra.mxu0 0
      %894 = vmatprep.subr.bf16.mxu0 0
      %895 = vmatpush1.bf16.msra.mxu0 0
      %896 = vmatprep.subr.bf16.mxu0 %v839
      %897 = vmatpush1.bf16.msra.mxu0 %v836
      %898 = vmatprep.subr.bf16.mxu0 0
      %899 = vmatpush2.bf16.msra.mxu0 0
      %900 = vmatprep.subr.bf16.mxu0 0
      %901 = vmatpush2.bf16.msra.mxu0 0
      %902 = vmatprep.subr.bf16.mxu0 0
      %903 = vmatpush2.bf16.msra.mxu0 0
      %904 = vmatprep.subr.bf16.mxu0 0
      %905 = vmatpush2.bf16.msra.mxu0 0
      %906 = vmatprep.subr.bf16.mxu0 0
      %907 = vmatpush2.bf16.msra.mxu0 0
      %908 = vmatprep.subr.bf16.mxu0 0
      %909 = vmatpush2.bf16.msra.mxu0 0
      %910 = vmatprep.subr.bf16.mxu0 0
      %911 = vmatpush2.bf16.msra.mxu0 0
      %912 = vmatprep.subr.bf16.mxu0 0
      %913 = vmatpush2.bf16.msra.mxu0 0
      %914 = vmatprep.mubr.bf16.mxu0 0
      %915 = vmatmul.mubr.bf16.gmra.mxu0 %v827
      %v916 = vpop.f32.mrf.mxu0
      %v917 = vadd.f32 0.0, %v916
      %v918 = vpop.f32.mrf.mxu0
      %v919 = vadd.f32 0.0, %v918
      %v920 = vpop.f32.mrf.mxu0
      %v921 = vpop.f32.mrf.mxu0
      %922 = vdwg.mxu0
      %v923 = vadd.f32 %v808, %v876
      %v924 = vadd.f32 %v809, %v878
      %v925 = vadd.f32 %v810, %v917
      %v926 = vadd.f32 %v811, %v919
      %s927 = scalar_lea.vmem %s3, 20
      %v928 = vld [vmem:[%s927] sm:$0xf]
      %929 = vrot.lane.b32.xlu0 %v358, 85
      %v930 = vpop.permute.xlu0 %929
      %931 = vrot.lane.b32.xlu0 %v359, 85
      %v932 = vpop.permute.xlu0 %931
      %933 = vrot.lane.b32.xlu0 %v360, 85
      %v934 = vpop.permute.xlu0 %933
      %935 = vrot.lane.b32.xlu0 %v361, 85
      %v936 = vpop.permute.xlu0 %935
      %vm937 = vcmask 695296
      %v938 = vsel %vm937, %v930, %v932
      %v939 = vsel %vm937, %v932, %v934
      %v940 = vsel %vm937, %v934, %v936
      %v942 = vsel %vm374, %v928, 0
      %v945 = vsel %vm378, %v938, 0
      %v948 = vsel %vm378, %v939, 0
      %v951 = vsel %vm378, %v940, 0
      %v954 = vsel %vm378, %v936, 0
      %956 = vmatprep.subr.bf16.mxu0 0
      %957 = vmatpush1.bf16.msra.mxu0 0
      %958 = vmatprep.subr.bf16.mxu0 0
      %959 = vmatpush1.bf16.msra.mxu0 0
      %960 = vmatprep.subr.bf16.mxu0 0
      %961 = vmatpush1.bf16.msra.mxu0 0
      %962 = vmatprep.subr.bf16.mxu0 0
      %963 = vmatpush1.bf16.msra.mxu0 0
      %964 = vmatprep.subr.bf16.mxu0 0
      %965 = vmatpush1.bf16.msra.mxu0 0
      %966 = vmatprep.subr.bf16.mxu0 0
      %967 = vmatpush1.bf16.msra.mxu0 0
      %968 = vmatprep.subr.bf16.mxu0 0
      %969 = vmatpush1.bf16.msra.mxu0 0
      %970 = vmatprep.subr.bf16.mxu0 %v948
      %971 = vmatpush1.bf16.msra.mxu0 %v945
      %972 = vmatprep.subr.bf16.mxu0 0
      %973 = vmatpush2.bf16.msra.mxu0 0
      %974 = vmatprep.subr.bf16.mxu0 0
      %975 = vmatpush2.bf16.msra.mxu0 0
      %976 = vmatprep.subr.bf16.mxu0 0
      %977 = vmatpush2.bf16.msra.mxu0 0
      %978 = vmatprep.subr.bf16.mxu0 0
      %979 = vmatpush2.bf16.msra.mxu0 0
      %980 = vmatprep.subr.bf16.mxu0 0
      %981 = vmatpush2.bf16.msra.mxu0 0
      %982 = vmatprep.subr.bf16.mxu0 0
      %983 = vmatpush2.bf16.msra.mxu0 0
      %984 = vmatprep.subr.bf16.mxu0 0
      %985 = vmatpush2.bf16.msra.mxu0 0
      %986 = vmatprep.subr.bf16.mxu0 0
      %987 = vmatpush2.bf16.msra.mxu0 0
      %988 = vmatprep.mubr.bf16.mxu0 0
      %989 = vmatmul.mubr.bf16.gmra.mxu0 %v942
      %v990 = vpop.f32.mrf.mxu0
      %v991 = vadd.f32 0.0, %v990
      %v992 = vpop.f32.mrf.mxu0
      %v993 = vadd.f32 0.0, %v992
      %v994 = vpop.f32.mrf.mxu0
      %v995 = vpop.f32.mrf.mxu0
      %996 = vdwg.mxu0
      %997 = vmatprep.subr.bf16.mxu0 0
      %998 = vmatpush1.bf16.msra.mxu0 0
      %999 = vmatprep.subr.bf16.mxu0 0
      %1000 = vmatpush1.bf16.msra.mxu0 0
      %1001 = vmatprep.subr.bf16.mxu0 0
      %1002 = vmatpush1.bf16.msra.mxu0 0
      %1003 = vmatprep.subr.bf16.mxu0 0
      %1004 = vmatpush1.bf16.msra.mxu0 0
      %1005 = vmatprep.subr.bf16.mxu0 0
      %1006 = vmatpush1.bf16.msra.mxu0 0
      %1007 = vmatprep.subr.bf16.mxu0 0
      %1008 = vmatpush1.bf16.msra.mxu0 0
      %1009 = vmatprep.subr.bf16.mxu0 0
      %1010 = vmatpush1.bf16.msra.mxu0 0
      %1011 = vmatprep.subr.bf16.mxu0 %v954
      %1012 = vmatpush1.bf16.msra.mxu0 %v951
      %1013 = vmatprep.subr.bf16.mxu0 0
      %1014 = vmatpush2.bf16.msra.mxu0 0
      %1015 = vmatprep.subr.bf16.mxu0 0
      %1016 = vmatpush2.bf16.msra.mxu0 0
      %1017 = vmatprep.subr.bf16.mxu0 0
      %1018 = vmatpush2.bf16.msra.mxu0 0
      %1019 = vmatprep.subr.bf16.mxu0 0
      %1020 = vmatpush2.bf16.msra.mxu0 0
      %1021 = vmatprep.subr.bf16.mxu0 0
      %1022 = vmatpush2.bf16.msra.mxu0 0
      %1023 = vmatprep.subr.bf16.mxu0 0
      %1024 = vmatpush2.bf16.msra.mxu0 0
      %1025 = vmatprep.subr.bf16.mxu0 0
      %1026 = vmatpush2.bf16.msra.mxu0 0
      %1027 = vmatprep.subr.bf16.mxu0 0
      %1028 = vmatpush2.bf16.msra.mxu0 0
      %1029 = vmatprep.mubr.bf16.mxu0 0
      %1030 = vmatmul.mubr.bf16.gmra.mxu0 %v942
      %v1031 = vpop.f32.mrf.mxu0
      %v1032 = vadd.f32 0.0, %v1031
      %v1033 = vpop.f32.mrf.mxu0
      %v1034 = vadd.f32 0.0, %v1033
      %v1035 = vpop.f32.mrf.mxu0
      %v1036 = vpop.f32.mrf.mxu0
      %1037 = vdwg.mxu0
      %v1038 = vadd.f32 %v923, %v991
      %v1039 = vadd.f32 %v924, %v993
      %v1040 = vadd.f32 %v925, %v1032
      %v1041 = vadd.f32 %v926, %v1034
      %s1042 = scalar_lea.vmem %s3, 24
      %v1043 = vld [vmem:[%s1042] sm:$0xf]
      %1044 = vrot.lane.b32.xlu0 %v358, 67
      %v1045 = vpop.permute.xlu0 %1044
      %1046 = vrot.lane.b32.xlu0 %v359, 67
      %v1047 = vpop.permute.xlu0 %1046
      %1048 = vrot.lane.b32.xlu0 %v360, 67
      %v1049 = vpop.permute.xlu0 %1048
      %1050 = vrot.lane.b32.xlu0 %v361, 67
      %v1051 = vpop.permute.xlu0 %1050
      %vm1052 = vcmask 547840
      %v1053 = vsel %vm1052, %v1045, %v1047
      %v1054 = vsel %vm1052, %v1047, %v1049
      %v1055 = vsel %vm1052, %v1049, %v1051
      %v1057 = vsel %vm374, %v1043, 0
      %v1060 = vsel %vm378, %v1053, 0
      %v1063 = vsel %vm378, %v1054, 0
      %v1066 = vsel %vm378, %v1055, 0
      %v1069 = vsel %vm378, %v1051, 0
      %1071 = vmatprep.subr.bf16.mxu0 0
      %1072 = vmatpush1.bf16.msra.mxu0 0
      %1073 = vmatprep.subr.bf16.mxu0 0
      %1074 = vmatpush1.bf16.msra.mxu0 0
      %1075 = vmatprep.subr.bf16.mxu0 0
      %1076 = vmatpush1.bf16.msra.mxu0 0
      %1077 = vmatprep.subr.bf16.mxu0 0
      %1078 = vmatpush1.bf16.msra.mxu0 0
      %1079 = vmatprep.subr.bf16.mxu0 0
      %1080 = vmatpush1.bf16.msra.mxu0 0
      %1081 = vmatprep.subr.bf16.mxu0 0
      %1082 = vmatpush1.bf16.msra.mxu0 0
      %1083 = vmatprep.subr.bf16.mxu0 0
      %1084 = vmatpush1.bf16.msra.mxu0 0
      %1085 = vmatprep.subr.bf16.mxu0 %v1063
      %1086 = vmatpush1.bf16.msra.mxu0 %v1060
      %1087 = vmatprep.subr.bf16.mxu0 0
      %1088 = vmatpush2.bf16.msra.mxu0 0
      %1089 = vmatprep.subr.bf16.mxu0 0
      %1090 = vmatpush2.bf16.msra.mxu0 0
      %1091 = vmatprep.subr.bf16.mxu0 0
      %1092 = vmatpush2.bf16.msra.mxu0 0
      %1093 = vmatprep.subr.bf16.mxu0 0
      %1094 = vmatpush2.bf16.msra.mxu0 0
      %1095 = vmatprep.subr.bf16.mxu0 0
      %1096 = vmatpush2.bf16.msra.mxu0 0
      %1097 = vmatprep.subr.bf16.mxu0 0
      %1098 = vmatpush2.bf16.msra.mxu0 0
      %1099 = vmatprep.subr.bf16.mxu0 0
      %1100 = vmatpush2.bf16.msra.mxu0 0
      %1101 = vmatprep.subr.bf16.mxu0 0
      %1102 = vmatpush2.bf16.msra.mxu0 0
      %1103 = vmatprep.mubr.bf16.mxu0 0
      %1104 = vmatmul.mubr.bf16.gmra.mxu0 %v1057
      %v1105 = vpop.f32.mrf.mxu0
      %v1106 = vadd.f32 0.0, %v1105
      %v1107 = vpop.f32.mrf.mxu0
      %v1108 = vadd.f32 0.0, %v1107
      %v1109 = vpop.f32.mrf.mxu0
      %v1110 = vpop.f32.mrf.mxu0
      %1111 = vdwg.mxu0
      %1112 = vmatprep.subr.bf16.mxu0 0
      %1113 = vmatpush1.bf16.msra.mxu0 0
      %1114 = vmatprep.subr.bf16.mxu0 0
      %1115 = vmatpush1.bf16.msra.mxu0 0
      %1116 = vmatprep.subr.bf16.mxu0 0
      %1117 = vmatpush1.bf16.msra.mxu0 0
      %1118 = vmatprep.subr.bf16.mxu0 0
      %1119 = vmatpush1.bf16.msra.mxu0 0
      %1120 = vmatprep.subr.bf16.mxu0 0
      %1121 = vmatpush1.bf16.msra.mxu0 0
      %1122 = vmatprep.subr.bf16.mxu0 0
      %1123 = vmatpush1.bf16.msra.mxu0 0
      %1124 = vmatprep.subr.bf16.mxu0 0
      %1125 = vmatpush1.bf16.msra.mxu0 0
      %1126 = vmatprep.subr.bf16.mxu0 %v1069
      %1127 = vmatpush1.bf16.msra.mxu0 %v1066
      %1128 = vmatprep.subr.bf16.mxu0 0
      %1129 = vmatpush2.bf16.msra.mxu0 0
      %1130 = vmatprep.subr.bf16.mxu0 0
      %1131 = vmatpush2.bf16.msra.mxu0 0
      %1132 = vmatprep.subr.bf16.mxu0 0
      %1133 = vmatpush2.bf16.msra.mxu0 0
      %1134 = vmatprep.subr.bf16.mxu0 0
      %1135 = vmatpush2.bf16.msra.mxu0 0
      %1136 = vmatprep.subr.bf16.mxu0 0
      %1137 = vmatpush2.bf16.msra.mxu0 0
      %1138 = vmatprep.subr.bf16.mxu0 0
      %1139 = vmatpush2.bf16.msra.mxu0 0
      %1140 = vmatprep.subr.bf16.mxu0 0
      %1141 = vmatpush2.bf16.msra.mxu0 0
      %1142 = vmatprep.subr.bf16.mxu0 0
      %1143 = vmatpush2.bf16.msra.mxu0 0
      %1144 = vmatprep.mubr.bf16.mxu0 0
      %1145 = vmatmul.mubr.bf16.gmra.mxu0 %v1057
      %v1146 = vpop.f32.mrf.mxu0
      %v1147 = vadd.f32 0.0, %v1146
      %v1148 = vpop.f32.mrf.mxu0
      %v1149 = vadd.f32 0.0, %v1148
      %v1150 = vpop.f32.mrf.mxu0
      %v1151 = vpop.f32.mrf.mxu0
      %1152 = vdwg.mxu0
      %v1153 = vadd.f32 %v1038, %v1106
      %v1154 = vadd.f32 %v1039, %v1108
      %v1155 = vadd.f32 %v1040, %v1147
      %v1156 = vadd.f32 %v1041, %v1149
      %s1157 = scalar_lea.vmem %s3, 28
      %v1158 = vld [vmem:[%s1157] sm:$0xf]
      %1159 = vrot.lane.b32.xlu0 %v358, 66
      %v1160 = vpop.permute.xlu0 %1159
      %1161 = vrot.lane.b32.xlu0 %v359, 66
      %v1162 = vpop.permute.xlu0 %1161
      %1163 = vrot.lane.b32.xlu0 %v360, 66
      %v1164 = vpop.permute.xlu0 %1163
      %1165 = vrot.lane.b32.xlu0 %v361, 66
      %v1166 = vpop.permute.xlu0 %1165
      %vm1167 = vcmask 539648
      %v1168 = vsel %vm1167, %v1160, %v1162
      %v1169 = vsel %vm1167, %v1162, %v1164
      %v1170 = vsel %vm1167, %v1164, %v1166
      %v1172 = vsel %vm374, %v1158, 0
      %v1175 = vsel %vm378, %v1168, 0
      %v1178 = vsel %vm378, %v1169, 0
      %v1181 = vsel %vm378, %v1170, 0
      %v1184 = vsel %vm378, %v1166, 0
      %1186 = vmatprep.subr.bf16.mxu0 0
      %1187 = vmatpush1.bf16.msra.mxu0 0
      %1188 = vmatprep.subr.bf16.mxu0 0
      %1189 = vmatpush1.bf16.msra.mxu0 0
      %1190 = vmatprep.subr.bf16.mxu0 0
      %1191 = vmatpush1.bf16.msra.mxu0 0
      %1192 = vmatprep.subr.bf16.mxu0 0
      %1193 = vmatpush1.bf16.msra.mxu0 0
      %1194 = vmatprep.subr.bf16.mxu0 0
      %1195 = vmatpush1.bf16.msra.mxu0 0
      %1196 = vmatprep.subr.bf16.mxu0 0
      %1197 = vmatpush1.bf16.msra.mxu0 0
      %1198 = vmatprep.subr.bf16.mxu0 0
      %1199 = vmatpush1.bf16.msra.mxu0 0
      %1200 = vmatprep.subr.bf16.mxu0 %v1178
      %1201 = vmatpush1.bf16.msra.mxu0 %v1175
      %1202 = vmatprep.subr.bf16.mxu0 0
      %1203 = vmatpush2.bf16.msra.mxu0 0
      %1204 = vmatprep.subr.bf16.mxu0 0
      %1205 = vmatpush2.bf16.msra.mxu0 0
      %1206 = vmatprep.subr.bf16.mxu0 0
      %1207 = vmatpush2.bf16.msra.mxu0 0
      %1208 = vmatprep.subr.bf16.mxu0 0
      %1209 = vmatpush2.bf16.msra.mxu0 0
      %1210 = vmatprep.subr.bf16.mxu0 0
      %1211 = vmatpush2.bf16.msra.mxu0 0
      %1212 = vmatprep.subr.bf16.mxu0 0
      %1213 = vmatpush2.bf16.msra.mxu0 0
      %1214 = vmatprep.subr.bf16.mxu0 0
      %1215 = vmatpush2.bf16.msra.mxu0 0
      %1216 = vmatprep.subr.bf16.mxu0 0
      %1217 = vmatpush2.bf16.msra.mxu0 0
      %1218 = vmatprep.mubr.bf16.mxu0 0
      %1219 = vmatmul.mubr.bf16.gmra.mxu0 %v1172
      %v1220 = vpop.f32.mrf.mxu0
      %v1221 = vadd.f32 0.0, %v1220
      %v1222 = vpop.f32.mrf.mxu0
      %v1223 = vadd.f32 0.0, %v1222
      %v1224 = vpop.f32.mrf.mxu0
      %v1225 = vpop.f32.mrf.mxu0
      %1226 = vdwg.mxu0
      %1227 = vmatprep.subr.bf16.mxu0 0
      %1228 = vmatpush1.bf16.msra.mxu0 0
      %1229 = vmatprep.subr.bf16.mxu0 0
      %1230 = vmatpush1.bf16.msra.mxu0 0
      %1231 = vmatprep.subr.bf16.mxu0 0
      %1232 = vmatpush1.bf16.msra.mxu0 0
      %1233 = vmatprep.subr.bf16.mxu0 0
      %1234 = vmatpush1.bf16.msra.mxu0 0
      %1235 = vmatprep.subr.bf16.mxu0 0
      %1236 = vmatpush1.bf16.msra.mxu0 0
      %1237 = vmatprep.subr.bf16.mxu0 0
      %1238 = vmatpush1.bf16.msra.mxu0 0
      %1239 = vmatprep.subr.bf16.mxu0 0
      %1240 = vmatpush1.bf16.msra.mxu0 0
      %1241 = vmatprep.subr.bf16.mxu0 %v1184
      %1242 = vmatpush1.bf16.msra.mxu0 %v1181
      %1243 = vmatprep.subr.bf16.mxu0 0
      %1244 = vmatpush2.bf16.msra.mxu0 0
      %1245 = vmatprep.subr.bf16.mxu0 0
      %1246 = vmatpush2.bf16.msra.mxu0 0
      %1247 = vmatprep.subr.bf16.mxu0 0
      %1248 = vmatpush2.bf16.msra.mxu0 0
      %1249 = vmatprep.subr.bf16.mxu0 0
      %1250 = vmatpush2.bf16.msra.mxu0 0
      %1251 = vmatprep.subr.bf16.mxu0 0
      %1252 = vmatpush2.bf16.msra.mxu0 0
      %1253 = vmatprep.subr.bf16.mxu0 0
      %1254 = vmatpush2.bf16.msra.mxu0 0
      %1255 = vmatprep.subr.bf16.mxu0 0
      %1256 = vmatpush2.bf16.msra.mxu0 0
      %1257 = vmatprep.subr.bf16.mxu0 0
      %1258 = vmatpush2.bf16.msra.mxu0 0
      %1259 = vmatprep.mubr.bf16.mxu0 0
      %1260 = vmatmul.mubr.bf16.gmra.mxu0 %v1172
      %v1261 = vpop.f32.mrf.mxu0
      %v1262 = vadd.f32 0.0, %v1261
      %v1263 = vpop.f32.mrf.mxu0
      %v1264 = vadd.f32 0.0, %v1263
      %v1265 = vpop.f32.mrf.mxu0
      %v1266 = vpop.f32.mrf.mxu0
      %1267 = vdwg.mxu0
      %v1268 = vadd.f32 %v1153, %v1221
      %v1269 = vadd.f32 %v1154, %v1223
      %v1270 = vadd.f32 %v1155, %v1262
      %v1271 = vadd.f32 %v1156, %v1264
      %s1272 = scalar_lea.vmem %s3, 32
      %v1273 = vld [vmem:[%s1272] sm:$0xf]
      %1274 = vrot.lane.b32.xlu0 %v358, 65
      %v1275 = vpop.permute.xlu0 %1274
      %1276 = vrot.lane.b32.xlu0 %v359, 65
      %v1277 = vpop.permute.xlu0 %1276
      %1278 = vrot.lane.b32.xlu0 %v360, 65
      %v1279 = vpop.permute.xlu0 %1278
      %1280 = vrot.lane.b32.xlu0 %v361, 65
      %v1281 = vpop.permute.xlu0 %1280
      %vm1282 = vcmask 531456
      %v1283 = vsel %vm1282, %v1275, %v1277
      %v1284 = vsel %vm1282, %v1277, %v1279
      %v1285 = vsel %vm1282, %v1279, %v1281
      %v1287 = vsel %vm374, %v1273, 0
      %v1290 = vsel %vm378, %v1283, 0
      %v1293 = vsel %vm378, %v1284, 0
      %v1296 = vsel %vm378, %v1285, 0
      %v1299 = vsel %vm378, %v1281, 0
      %1301 = vmatprep.subr.bf16.mxu0 0
      %1302 = vmatpush1.bf16.msra.mxu0 0
      %1303 = vmatprep.subr.bf16.mxu0 0
      %1304 = vmatpush1.bf16.msra.mxu0 0
      %1305 = vmatprep.subr.bf16.mxu0 0
      %1306 = vmatpush1.bf16.msra.mxu0 0
      %1307 = vmatprep.subr.bf16.mxu0 0
      %1308 = vmatpush1.bf16.msra.mxu0 0
      %1309 = vmatprep.subr.bf16.mxu0 0
      %1310 = vmatpush1.bf16.msra.mxu0 0
      %1311 = vmatprep.subr.bf16.mxu0 0
      %1312 = vmatpush1.bf16.msra.mxu0 0
      %1313 = vmatprep.subr.bf16.mxu0 0
      %1314 = vmatpush1.bf16.msra.mxu0 0
      %1315 = vmatprep.subr.bf16.mxu0 %v1293
      %1316 = vmatpush1.bf16.msra.mxu0 %v1290
      %1317 = vmatprep.subr.bf16.mxu0 0
      %1318 = vmatpush2.bf16.msra.mxu0 0
      %1319 = vmatprep.subr.bf16.mxu0 0
      %1320 = vmatpush2.bf16.msra.mxu0 0
      %1321 = vmatprep.subr.bf16.mxu0 0
      %1322 = vmatpush2.bf16.msra.mxu0 0
      %1323 = vmatprep.subr.bf16.mxu0 0
      %1324 = vmatpush2.bf16.msra.mxu0 0
      %1325 = vmatprep.subr.bf16.mxu0 0
      %1326 = vmatpush2.bf16.msra.mxu0 0
      %1327 = vmatprep.subr.bf16.mxu0 0
      %1328 = vmatpush2.bf16.msra.mxu0 0
      %1329 = vmatprep.subr.bf16.mxu0 0
      %1330 = vmatpush2.bf16.msra.mxu0 0
      %1331 = vmatprep.subr.bf16.mxu0 0
      %1332 = vmatpush2.bf16.msra.mxu0 0
      %1333 = vmatprep.mubr.bf16.mxu0 0
      %1334 = vmatmul.mubr.bf16.gmra.mxu0 %v1287
      %v1335 = vpop.f32.mrf.mxu0
      %v1336 = vadd.f32 0.0, %v1335
      %v1337 = vpop.f32.mrf.mxu0
      %v1338 = vadd.f32 0.0, %v1337
      %v1339 = vpop.f32.mrf.mxu0
      %v1340 = vpop.f32.mrf.mxu0
      %1341 = vdwg.mxu0
      %1342 = vmatprep.subr.bf16.mxu0 0
      %1343 = vmatpush1.bf16.msra.mxu0 0
      %1344 = vmatprep.subr.bf16.mxu0 0
      %1345 = vmatpush1.bf16.msra.mxu0 0
      %1346 = vmatprep.subr.bf16.mxu0 0
      %1347 = vmatpush1.bf16.msra.mxu0 0
      %1348 = vmatprep.subr.bf16.mxu0 0
      %1349 = vmatpush1.bf16.msra.mxu0 0
      %1350 = vmatprep.subr.bf16.mxu0 0
      %1351 = vmatpush1.bf16.msra.mxu0 0
      %1352 = vmatprep.subr.bf16.mxu0 0
      %1353 = vmatpush1.bf16.msra.mxu0 0
      %1354 = vmatprep.subr.bf16.mxu0 0
      %1355 = vmatpush1.bf16.msra.mxu0 0
      %1356 = vmatprep.subr.bf16.mxu0 %v1299
      %1357 = vmatpush1.bf16.msra.mxu0 %v1296
      %1358 = vmatprep.subr.bf16.mxu0 0
      %1359 = vmatpush2.bf16.msra.mxu0 0
      %1360 = vmatprep.subr.bf16.mxu0 0
      %1361 = vmatpush2.bf16.msra.mxu0 0
      %1362 = vmatprep.subr.bf16.mxu0 0
      %1363 = vmatpush2.bf16.msra.mxu0 0
      %1364 = vmatprep.subr.bf16.mxu0 0
      %1365 = vmatpush2.bf16.msra.mxu0 0
      %1366 = vmatprep.subr.bf16.mxu0 0
      %1367 = vmatpush2.bf16.msra.mxu0 0
      %1368 = vmatprep.subr.bf16.mxu0 0
      %1369 = vmatpush2.bf16.msra.mxu0 0
      %1370 = vmatprep.subr.bf16.mxu0 0
      %1371 = vmatpush2.bf16.msra.mxu0 0
      %1372 = vmatprep.subr.bf16.mxu0 0
      %1373 = vmatpush2.bf16.msra.mxu0 0
      %1374 = vmatprep.mubr.bf16.mxu0 0
      %1375 = vmatmul.mubr.bf16.gmra.mxu0 %v1287
      %v1376 = vpop.f32.mrf.mxu0
      %v1377 = vadd.f32 0.0, %v1376
      %v1378 = vpop.f32.mrf.mxu0
      %v1379 = vadd.f32 0.0, %v1378
      %v1380 = vpop.f32.mrf.mxu0
      %v1381 = vpop.f32.mrf.mxu0
      %1382 = vdwg.mxu0
      %v1383 = vadd.f32 %v1268, %v1336
      %v1384 = vadd.f32 %v1269, %v1338
      %v1385 = vadd.f32 %v1270, %v1377
      %v1386 = vadd.f32 %v1271, %v1379
      %s1387 = scalar_lea.vmem %s3, 36
      %v1388 = vld [vmem:[%s1387] sm:$0xf]
      %v1390 = vsel %vm374, %v1388, 0
      %v1393 = vsel %vm378, %v358, 0
      %v1396 = vsel %vm378, %v359, 0
      %v1399 = vsel %vm378, %v360, 0
      %v1402 = vsel %vm378, %v361, 0
      %1404 = vmatprep.subr.bf16.mxu0 0
      %1405 = vmatpush1.bf16.msra.mxu0 0
      %1406 = vmatprep.subr.bf16.mxu0 0
      %1407 = vmatpush1.bf16.msra.mxu0 0
      %1408 = vmatprep.subr.bf16.mxu0 0
      %1409 = vmatpush1.bf16.msra.mxu0 0
      %1410 = vmatprep.subr.bf16.mxu0 0
      %1411 = vmatpush1.bf16.msra.mxu0 0
      %1412 = vmatprep.subr.bf16.mxu0 0
      %1413 = vmatpush1.bf16.msra.mxu0 0
      %1414 = vmatprep.subr.bf16.mxu0 0
      %1415 = vmatpush1.bf16.msra.mxu0 0
      %1416 = vmatprep.subr.bf16.mxu0 0
      %1417 = vmatpush1.bf16.msra.mxu0 0
      %1418 = vmatprep.subr.bf16.mxu0 %v1396
      %1419 = vmatpush1.bf16.msra.mxu0 %v1393
      %1420 = vmatprep.subr.bf16.mxu0 0
      %1421 = vmatpush2.bf16.msra.mxu0 0
      %1422 = vmatprep.subr.bf16.mxu0 0
      %1423 = vmatpush2.bf16.msra.mxu0 0
      %1424 = vmatprep.subr.bf16.mxu0 0
      %1425 = vmatpush2.bf16.msra.mxu0 0
      %1426 = vmatprep.subr.bf16.mxu0 0
      %1427 = vmatpush2.bf16.msra.mxu0 0
      %1428 = vmatprep.subr.bf16.mxu0 0
      %1429 = vmatpush2.bf16.msra.mxu0 0
      %1430 = vmatprep.subr.bf16.mxu0 0
      %1431 = vmatpush2.bf16.msra.mxu0 0
      %1432 = vmatprep.subr.bf16.mxu0 0
      %1433 = vmatpush2.bf16.msra.mxu0 0
      %1434 = vmatprep.subr.bf16.mxu0 0
      %1435 = vmatpush2.bf16.msra.mxu0 0
      %1436 = vmatprep.mubr.bf16.mxu0 0
      %1437 = vmatmul.mubr.bf16.gmra.mxu0 %v1390
      %v1438 = vpop.f32.mrf.mxu0
      %v1439 = vadd.f32 0.0, %v1438
      %v1440 = vpop.f32.mrf.mxu0
      %v1441 = vadd.f32 0.0, %v1440
      %v1442 = vpop.f32.mrf.mxu0
      %v1443 = vpop.f32.mrf.mxu0
      %1444 = vdwg.mxu0
      %1445 = vmatprep.subr.bf16.mxu0 0
      %1446 = vmatpush1.bf16.msra.mxu0 0
      %1447 = vmatprep.subr.bf16.mxu0 0
      %1448 = vmatpush1.bf16.msra.mxu0 0
      %1449 = vmatprep.subr.bf16.mxu0 0
      %1450 = vmatpush1.bf16.msra.mxu0 0
      %1451 = vmatprep.subr.bf16.mxu0 0
      %1452 = vmatpush1.bf16.msra.mxu0 0
      %1453 = vmatprep.subr.bf16.mxu0 0
      %1454 = vmatpush1.bf16.msra.mxu0 0
      %1455 = vmatprep.subr.bf16.mxu0 0
      %1456 = vmatpush1.bf16.msra.mxu0 0
      %1457 = vmatprep.subr.bf16.mxu0 0
      %1458 = vmatpush1.bf16.msra.mxu0 0
      %1459 = vmatprep.subr.bf16.mxu0 %v1402
      %1460 = vmatpush1.bf16.msra.mxu0 %v1399
      %1461 = vmatprep.subr.bf16.mxu0 0
      %1462 = vmatpush2.bf16.msra.mxu0 0
      %1463 = vmatprep.subr.bf16.mxu0 0
      %1464 = vmatpush2.bf16.msra.mxu0 0
      %1465 = vmatprep.subr.bf16.mxu0 0
      %1466 = vmatpush2.bf16.msra.mxu0 0
      %1467 = vmatprep.subr.bf16.mxu0 0
      %1468 = vmatpush2.bf16.msra.mxu0 0
      %1469 = vmatprep.subr.bf16.mxu0 0
      %1470 = vmatpush2.bf16.msra.mxu0 0
      %1471 = vmatprep.subr.bf16.mxu0 0
      %1472 = vmatpush2.bf16.msra.mxu0 0
      %1473 = vmatprep.subr.bf16.mxu0 0
      %1474 = vmatpush2.bf16.msra.mxu0 0
      %1475 = vmatprep.subr.bf16.mxu0 0
      %1476 = vmatpush2.bf16.msra.mxu0 0
      %1477 = vmatprep.mubr.bf16.mxu0 0
      %1478 = vmatmul.mubr.bf16.gmra.mxu0 %v1390
      %v1479 = vpop.f32.mrf.mxu0
      %v1480 = vadd.f32 0.0, %v1479
      %v1481 = vpop.f32.mrf.mxu0
      %v1482 = vadd.f32 0.0, %v1481
      %v1483 = vpop.f32.mrf.mxu0
      %v1484 = vpop.f32.mrf.mxu0
      %1485 = vdwg.mxu0
      %v1486 = vadd.f32 %v1383, %v1439
      %v1487 = vadd.f32 %v1384, %v1441
      %v1488 = vadd.f32 %v1385, %v1480
      %v1489 = vadd.f32 %v1386, %v1482
      %s1490 = scalar_lea.vmem %s3, 40
      %v1491 = vld [vmem:[%s1490] sm:$0xf]
      %1492 = vrot.lane.b32.xlu0 %v358, 126
      %v1493 = vpop.permute.xlu0 %1492
      %1494 = vrot.lane.b32.xlu0 %v359, 126
      %v1495 = vpop.permute.xlu0 %1494
      %1496 = vrot.lane.b32.xlu0 %v360, 126
      %v1497 = vpop.permute.xlu0 %1496
      %1498 = vrot.lane.b32.xlu0 %v361, 126
      %v1499 = vpop.permute.xlu0 %1498
      %vm1500 = vcmask 1031168
      %v1501 = vsel %vm1500, %v1493, %v1495
      %v1502 = vsel %vm1500, %v1495, %v1497
      %v1503 = vsel %vm1500, %v1497, %v1499
      %v1505 = vsel %vm374, %v1491, 0
      %v1508 = vsel %vm378, %v1501, 0
      %v1511 = vsel %vm378, %v1502, 0
      %v1514 = vsel %vm378, %v1503, 0
      %v1517 = vsel %vm378, %v1499, 0
      %1519 = vmatprep.subr.bf16.mxu0 0
      %1520 = vmatpush1.bf16.msra.mxu0 0
      %1521 = vmatprep.subr.bf16.mxu0 0
      %1522 = vmatpush1.bf16.msra.mxu0 0
      %1523 = vmatprep.subr.bf16.mxu0 0
      %1524 = vmatpush1.bf16.msra.mxu0 0
      %1525 = vmatprep.subr.bf16.mxu0 0
      %1526 = vmatpush1.bf16.msra.mxu0 0
      %1527 = vmatprep.subr.bf16.mxu0 0
      %1528 = vmatpush1.bf16.msra.mxu0 0
      %1529 = vmatprep.subr.bf16.mxu0 0
      %1530 = vmatpush1.bf16.msra.mxu0 0
      %1531 = vmatprep.subr.bf16.mxu0 0
      %1532 = vmatpush1.bf16.msra.mxu0 0
      %1533 = vmatprep.subr.bf16.mxu0 %v1511
      %1534 = vmatpush1.bf16.msra.mxu0 %v1508
      %1535 = vmatprep.subr.bf16.mxu0 0
      %1536 = vmatpush2.bf16.msra.mxu0 0
      %1537 = vmatprep.subr.bf16.mxu0 0
      %1538 = vmatpush2.bf16.msra.mxu0 0
      %1539 = vmatprep.subr.bf16.mxu0 0
      %1540 = vmatpush2.bf16.msra.mxu0 0
      %1541 = vmatprep.subr.bf16.mxu0 0
      %1542 = vmatpush2.bf16.msra.mxu0 0
      %1543 = vmatprep.subr.bf16.mxu0 0
      %1544 = vmatpush2.bf16.msra.mxu0 0
      %1545 = vmatprep.subr.bf16.mxu0 0
      %1546 = vmatpush2.bf16.msra.mxu0 0
      %1547 = vmatprep.subr.bf16.mxu0 0
      %1548 = vmatpush2.bf16.msra.mxu0 0
      %1549 = vmatprep.subr.bf16.mxu0 0
      %1550 = vmatpush2.bf16.msra.mxu0 0
      %1551 = vmatprep.mubr.bf16.mxu0 0
      %1552 = vmatmul.mubr.bf16.gmra.mxu0 %v1505
      %v1553 = vpop.f32.mrf.mxu0
      %v1554 = vadd.f32 0.0, %v1553
      %v1555 = vpop.f32.mrf.mxu0
      %v1556 = vadd.f32 0.0, %v1555
      %v1557 = vpop.f32.mrf.mxu0
      %v1558 = vpop.f32.mrf.mxu0
      %1559 = vdwg.mxu0
      %1560 = vmatprep.subr.bf16.mxu0 0
      %1561 = vmatpush1.bf16.msra.mxu0 0
      %1562 = vmatprep.subr.bf16.mxu0 0
      %1563 = vmatpush1.bf16.msra.mxu0 0
      %1564 = vmatprep.subr.bf16.mxu0 0
      %1565 = vmatpush1.bf16.msra.mxu0 0
      %1566 = vmatprep.subr.bf16.mxu0 0
      %1567 = vmatpush1.bf16.msra.mxu0 0
      %1568 = vmatprep.subr.bf16.mxu0 0
      %1569 = vmatpush1.bf16.msra.mxu0 0
      %1570 = vmatprep.subr.bf16.mxu0 0
      %1571 = vmatpush1.bf16.msra.mxu0 0
      %1572 = vmatprep.subr.bf16.mxu0 0
      %1573 = vmatpush1.bf16.msra.mxu0 0
      %1574 = vmatprep.subr.bf16.mxu0 %v1517
      %1575 = vmatpush1.bf16.msra.mxu0 %v1514
      %1576 = vmatprep.subr.bf16.mxu0 0
      %1577 = vmatpush2.bf16.msra.mxu0 0
      %1578 = vmatprep.subr.bf16.mxu0 0
      %1579 = vmatpush2.bf16.msra.mxu0 0
      %1580 = vmatprep.subr.bf16.mxu0 0
      %1581 = vmatpush2.bf16.msra.mxu0 0
      %1582 = vmatprep.subr.bf16.mxu0 0
      %1583 = vmatpush2.bf16.msra.mxu0 0
      %1584 = vmatprep.subr.bf16.mxu0 0
      %1585 = vmatpush2.bf16.msra.mxu0 0
      %1586 = vmatprep.subr.bf16.mxu0 0
      %1587 = vmatpush2.bf16.msra.mxu0 0
      %1588 = vmatprep.subr.bf16.mxu0 0
      %1589 = vmatpush2.bf16.msra.mxu0 0
      %1590 = vmatprep.subr.bf16.mxu0 0
      %1591 = vmatpush2.bf16.msra.mxu0 0
      %1592 = vmatprep.mubr.bf16.mxu0 0
      %1593 = vmatmul.mubr.bf16.gmra.mxu0 %v1505
      %v1594 = vpop.f32.mrf.mxu0
      %v1595 = vadd.f32 0.0, %v1594
      %v1596 = vpop.f32.mrf.mxu0
      %v1597 = vadd.f32 0.0, %v1596
      %v1598 = vpop.f32.mrf.mxu0
      %v1599 = vpop.f32.mrf.mxu0
      %1600 = vdwg.mxu0
      %v1601 = vadd.f32 %v1486, %v1554
      %v1602 = vadd.f32 %v1487, %v1556
      %v1603 = vadd.f32 %v1488, %v1595
      %v1604 = vadd.f32 %v1489, %v1597
      %s1605 = scalar_lea.vmem %s3, 44
      %v1606 = vld [vmem:[%s1605] sm:$0xf]
      %1607 = vrot.lane.b32.xlu0 %v358, 124
      %v1608 = vpop.permute.xlu0 %1607
      %1609 = vrot.lane.b32.xlu0 %v359, 124
      %v1610 = vpop.permute.xlu0 %1609
      %1611 = vrot.lane.b32.xlu0 %v360, 124
      %v1612 = vpop.permute.xlu0 %1611
      %1613 = vrot.lane.b32.xlu0 %v361, 124
      %v1614 = vpop.permute.xlu0 %1613
      %vm1615 = vcmask 1014784
      %v1616 = vsel %vm1615, %v1608, %v1610
      %v1617 = vsel %vm1615, %v1610, %v1612
      %v1618 = vsel %vm1615, %v1612, %v1614
      %v1620 = vsel %vm374, %v1606, 0
      %v1623 = vsel %vm378, %v1616, 0
      %v1626 = vsel %vm378, %v1617, 0
      %v1629 = vsel %vm378, %v1618, 0
      %v1632 = vsel %vm378, %v1614, 0
      %1634 = vmatprep.subr.bf16.mxu0 0
      %1635 = vmatpush1.bf16.msra.mxu0 0
      %1636 = vmatprep.subr.bf16.mxu0 0
      %1637 = vmatpush1.bf16.msra.mxu0 0
      %1638 = vmatprep.subr.bf16.mxu0 0
      %1639 = vmatpush1.bf16.msra.mxu0 0
      %1640 = vmatprep.subr.bf16.mxu0 0
      %1641 = vmatpush1.bf16.msra.mxu0 0
      %1642 = vmatprep.subr.bf16.mxu0 0
      %1643 = vmatpush1.bf16.msra.mxu0 0
      %1644 = vmatprep.subr.bf16.mxu0 0
      %1645 = vmatpush1.bf16.msra.mxu0 0
      %1646 = vmatprep.subr.bf16.mxu0 0
      %1647 = vmatpush1.bf16.msra.mxu0 0
      %1648 = vmatprep.subr.bf16.mxu0 %v1626
      %1649 = vmatpush1.bf16.msra.mxu0 %v1623
      %1650 = vmatprep.subr.bf16.mxu0 0
      %1651 = vmatpush2.bf16.msra.mxu0 0
      %1652 = vmatprep.subr.bf16.mxu0 0
      %1653 = vmatpush2.bf16.msra.mxu0 0
      %1654 = vmatprep.subr.bf16.mxu0 0
      %1655 = vmatpush2.bf16.msra.mxu0 0
      %1656 = vmatprep.subr.bf16.mxu0 0
      %1657 = vmatpush2.bf16.msra.mxu0 0
      %1658 = vmatprep.subr.bf16.mxu0 0
      %1659 = vmatpush2.bf16.msra.mxu0 0
      %1660 = vmatprep.subr.bf16.mxu0 0
      %1661 = vmatpush2.bf16.msra.mxu0 0
      %1662 = vmatprep.subr.bf16.mxu0 0
      %1663 = vmatpush2.bf16.msra.mxu0 0
      %1664 = vmatprep.subr.bf16.mxu0 0
      %1665 = vmatpush2.bf16.msra.mxu0 0
      %1666 = vmatprep.mubr.bf16.mxu0 0
      %1667 = vmatmul.mubr.bf16.gmra.mxu0 %v1620
      %v1668 = vpop.f32.mrf.mxu0
      %v1669 = vadd.f32 0.0, %v1668
      %v1670 = vpop.f32.mrf.mxu0
      %v1671 = vadd.f32 0.0, %v1670
      %v1672 = vpop.f32.mrf.mxu0
      %v1673 = vpop.f32.mrf.mxu0
      %1674 = vdwg.mxu0
      %1675 = vmatprep.subr.bf16.mxu0 0
      %1676 = vmatpush1.bf16.msra.mxu0 0
      %1677 = vmatprep.subr.bf16.mxu0 0
      %1678 = vmatpush1.bf16.msra.mxu0 0
      %1679 = vmatprep.subr.bf16.mxu0 0
      %1680 = vmatpush1.bf16.msra.mxu0 0
      %1681 = vmatprep.subr.bf16.mxu0 0
      %1682 = vmatpush1.bf16.msra.mxu0 0
      %1683 = vmatprep.subr.bf16.mxu0 0
      %1684 = vmatpush1.bf16.msra.mxu0 0
      %1685 = vmatprep.subr.bf16.mxu0 0
      %1686 = vmatpush1.bf16.msra.mxu0 0
      %1687 = vmatprep.subr.bf16.mxu0 0
      %1688 = vmatpush1.bf16.msra.mxu0 0
      %1689 = vmatprep.subr.bf16.mxu0 %v1632
      %1690 = vmatpush1.bf16.msra.mxu0 %v1629
      %1691 = vmatprep.subr.bf16.mxu0 0
      %1692 = vmatpush2.bf16.msra.mxu0 0
      %1693 = vmatprep.subr.bf16.mxu0 0
      %1694 = vmatpush2.bf16.msra.mxu0 0
      %1695 = vmatprep.subr.bf16.mxu0 0
      %1696 = vmatpush2.bf16.msra.mxu0 0
      %1697 = vmatprep.subr.bf16.mxu0 0
      %1698 = vmatpush2.bf16.msra.mxu0 0
      %1699 = vmatprep.subr.bf16.mxu0 0
      %1700 = vmatpush2.bf16.msra.mxu0 0
      %1701 = vmatprep.subr.bf16.mxu0 0
      %1702 = vmatpush2.bf16.msra.mxu0 0
      %1703 = vmatprep.subr.bf16.mxu0 0
      %1704 = vmatpush2.bf16.msra.mxu0 0
      %1705 = vmatprep.subr.bf16.mxu0 0
      %1706 = vmatpush2.bf16.msra.mxu0 0
      %1707 = vmatprep.mubr.bf16.mxu0 0
      %1708 = vmatmul.mubr.bf16.gmra.mxu0 %v1620
      %v1709 = vpop.f32.mrf.mxu0
      %v1710 = vadd.f32 0.0, %v1709
      %v1711 = vpop.f32.mrf.mxu0
      %v1712 = vadd.f32 0.0, %v1711
      %v1713 = vpop.f32.mrf.mxu0
      %v1714 = vpop.f32.mrf.mxu0
      %1715 = vdwg.mxu0
      %v1716 = vadd.f32 %v1601, %v1669
      %v1717 = vadd.f32 %v1602, %v1671
      %v1718 = vadd.f32 %v1603, %v1710
      %v1719 = vadd.f32 %v1604, %v1712
      %s1720 = scalar_lea.vmem %s3, 48
      %v1721 = vld [vmem:[%s1720] sm:$0xf]
      %1722 = vrot.lane.b32.xlu0 %v358, 88
      %v1723 = vpop.permute.xlu0 %1722
      %1724 = vrot.lane.b32.xlu0 %v359, 88
      %v1725 = vpop.permute.xlu0 %1724
      %1726 = vrot.lane.b32.xlu0 %v360, 88
      %v1727 = vpop.permute.xlu0 %1726
      %1728 = vrot.lane.b32.xlu0 %v361, 88
      %v1729 = vpop.permute.xlu0 %1728
      %vm1730 = vcmask 719872
      %v1731 = vsel %vm1730, %v1723, %v1725
      %v1732 = vsel %vm1730, %v1725, %v1727
      %v1733 = vsel %vm1730, %v1727, %v1729
      %v1735 = vsel %vm374, %v1721, 0
      %v1738 = vsel %vm378, %v1731, 0
      %v1741 = vsel %vm378, %v1732, 0
      %v1744 = vsel %vm378, %v1733, 0
      %v1747 = vsel %vm378, %v1729, 0
      %1749 = vmatprep.subr.bf16.mxu0 0
      %1750 = vmatpush1.bf16.msra.mxu0 0
      %1751 = vmatprep.subr.bf16.mxu0 0
      %1752 = vmatpush1.bf16.msra.mxu0 0
      %1753 = vmatprep.subr.bf16.mxu0 0
      %1754 = vmatpush1.bf16.msra.mxu0 0
      %1755 = vmatprep.subr.bf16.mxu0 0
      %1756 = vmatpush1.bf16.msra.mxu0 0
      %1757 = vmatprep.subr.bf16.mxu0 0
      %1758 = vmatpush1.bf16.msra.mxu0 0
      %1759 = vmatprep.subr.bf16.mxu0 0
      %1760 = vmatpush1.bf16.msra.mxu0 0
      %1761 = vmatprep.subr.bf16.mxu0 0
      %1762 = vmatpush1.bf16.msra.mxu0 0
      %1763 = vmatprep.subr.bf16.mxu0 %v1741
      %1764 = vmatpush1.bf16.msra.mxu0 %v1738
      %1765 = vmatprep.subr.bf16.mxu0 0
      %1766 = vmatpush2.bf16.msra.mxu0 0
      %1767 = vmatprep.subr.bf16.mxu0 0
      %1768 = vmatpush2.bf16.msra.mxu0 0
      %1769 = vmatprep.subr.bf16.mxu0 0
      %1770 = vmatpush2.bf16.msra.mxu0 0
      %1771 = vmatprep.subr.bf16.mxu0 0
      %1772 = vmatpush2.bf16.msra.mxu0 0
      %1773 = vmatprep.subr.bf16.mxu0 0
      %1774 = vmatpush2.bf16.msra.mxu0 0
      %1775 = vmatprep.subr.bf16.mxu0 0
      %1776 = vmatpush2.bf16.msra.mxu0 0
      %1777 = vmatprep.subr.bf16.mxu0 0
      %1778 = vmatpush2.bf16.msra.mxu0 0
      %1779 = vmatprep.subr.bf16.mxu0 0
      %1780 = vmatpush2.bf16.msra.mxu0 0
      %1781 = vmatprep.mubr.bf16.mxu0 0
      %1782 = vmatmul.mubr.bf16.gmra.mxu0 %v1735
      %v1783 = vpop.f32.mrf.mxu0
      %v1784 = vadd.f32 0.0, %v1783
      %v1785 = vpop.f32.mrf.mxu0
      %v1786 = vadd.f32 0.0, %v1785
      %v1787 = vpop.f32.mrf.mxu0
      %v1788 = vpop.f32.mrf.mxu0
      %1789 = vdwg.mxu0
      %1790 = vmatprep.subr.bf16.mxu0 0
      %1791 = vmatpush1.bf16.msra.mxu0 0
      %1792 = vmatprep.subr.bf16.mxu0 0
      %1793 = vmatpush1.bf16.msra.mxu0 0
      %1794 = vmatprep.subr.bf16.mxu0 0
      %1795 = vmatpush1.bf16.msra.mxu0 0
      %1796 = vmatprep.subr.bf16.mxu0 0
      %1797 = vmatpush1.bf16.msra.mxu0 0
      %1798 = vmatprep.subr.bf16.mxu0 0
      %1799 = vmatpush1.bf16.msra.mxu0 0
      %1800 = vmatprep.subr.bf16.mxu0 0
      %1801 = vmatpush1.bf16.msra.mxu0 0
      %1802 = vmatprep.subr.bf16.mxu0 0
      %1803 = vmatpush1.bf16.msra.mxu0 0
      %1804 = vmatprep.subr.bf16.mxu0 %v1747
      %1805 = vmatpush1.bf16.msra.mxu0 %v1744
      %1806 = vmatprep.subr.bf16.mxu0 0
      %1807 = vmatpush2.bf16.msra.mxu0 0
      %1808 = vmatprep.subr.bf16.mxu0 0
      %1809 = vmatpush2.bf16.msra.mxu0 0
      %1810 = vmatprep.subr.bf16.mxu0 0
      %1811 = vmatpush2.bf16.msra.mxu0 0
      %1812 = vmatprep.subr.bf16.mxu0 0
      %1813 = vmatpush2.bf16.msra.mxu0 0
      %1814 = vmatprep.subr.bf16.mxu0 0
      %1815 = vmatpush2.bf16.msra.mxu0 0
      %1816 = vmatprep.subr.bf16.mxu0 0
      %1817 = vmatpush2.bf16.msra.mxu0 0
      %1818 = vmatprep.subr.bf16.mxu0 0
      %1819 = vmatpush2.bf16.msra.mxu0 0
      %1820 = vmatprep.subr.bf16.mxu0 0
      %1821 = vmatpush2.bf16.msra.mxu0 0
      %1822 = vmatprep.mubr.bf16.mxu0 0
      %1823 = vmatmul.mubr.bf16.gmra.mxu0 %v1735
      %v1824 = vpop.f32.mrf.mxu0
      %v1825 = vadd.f32 0.0, %v1824
      %v1826 = vpop.f32.mrf.mxu0
      %v1827 = vadd.f32 0.0, %v1826
      %v1828 = vpop.f32.mrf.mxu0
      %v1829 = vpop.f32.mrf.mxu0
      %1830 = vdwg.mxu0
      %v1831 = vadd.f32 %v1716, %v1784
      %v1832 = vadd.f32 %v1717, %v1786
      %v1833 = vadd.f32 %v1718, %v1825
      %v1834 = vadd.f32 %v1719, %v1827
      %s1835 = scalar_lea.vmem %s3, 52
      %v1836 = vld [vmem:[%s1835] sm:$0xf]
      %v1838 = vsel %vm374, %v1836, 0
      %1840 = vmatprep.subr.bf16.mxu0 0
      %1841 = vmatpush1.bf16.msra.mxu0 0
      %1842 = vmatprep.subr.bf16.mxu0 0
      %1843 = vmatpush1.bf16.msra.mxu0 0
      %1844 = vmatprep.subr.bf16.mxu0 0
      %1845 = vmatpush1.bf16.msra.mxu0 0
      %1846 = vmatprep.subr.bf16.mxu0 0
      %1847 = vmatpush1.bf16.msra.mxu0 0
      %1848 = vmatprep.subr.bf16.mxu0 0
      %1849 = vmatpush1.bf16.msra.mxu0 0
      %1850 = vmatprep.subr.bf16.mxu0 0
      %1851 = vmatpush1.bf16.msra.mxu0 0
      %1852 = vmatprep.subr.bf16.mxu0 0
      %1853 = vmatpush1.bf16.msra.mxu0 0
      %1854 = vmatprep.subr.bf16.mxu0 %v833
      %1855 = vmatpush1.bf16.msra.mxu0 %v830
      %1856 = vmatprep.subr.bf16.mxu0 0
      %1857 = vmatpush2.bf16.msra.mxu0 0
      %1858 = vmatprep.subr.bf16.mxu0 0
      %1859 = vmatpush2.bf16.msra.mxu0 0
      %1860 = vmatprep.subr.bf16.mxu0 0
      %1861 = vmatpush2.bf16.msra.mxu0 0
      %1862 = vmatprep.subr.bf16.mxu0 0
      %1863 = vmatpush2.bf16.msra.mxu0 0
      %1864 = vmatprep.subr.bf16.mxu0 0
      %1865 = vmatpush2.bf16.msra.mxu0 0
      %1866 = vmatprep.subr.bf16.mxu0 0
      %1867 = vmatpush2.bf16.msra.mxu0 0
      %1868 = vmatprep.subr.bf16.mxu0 0
      %1869 = vmatpush2.bf16.msra.mxu0 0
      %1870 = vmatprep.subr.bf16.mxu0 0
      %1871 = vmatpush2.bf16.msra.mxu0 0
      %1872 = vmatprep.mubr.bf16.mxu0 0
      %1873 = vmatmul.mubr.bf16.gmra.mxu0 %v1838
      %v1874 = vpop.f32.mrf.mxu0
      %v1875 = vadd.f32 0.0, %v1874
      %v1876 = vpop.f32.mrf.mxu0
      %v1877 = vadd.f32 0.0, %v1876
      %v1878 = vpop.f32.mrf.mxu0
      %v1879 = vpop.f32.mrf.mxu0
      %1880 = vdwg.mxu0
      %1881 = vmatprep.subr.bf16.mxu0 0
      %1882 = vmatpush1.bf16.msra.mxu0 0
      %1883 = vmatprep.subr.bf16.mxu0 0
      %1884 = vmatpush1.bf16.msra.mxu0 0
      %1885 = vmatprep.subr.bf16.mxu0 0
      %1886 = vmatpush1.bf16.msra.mxu0 0
      %1887 = vmatprep.subr.bf16.mxu0 0
      %1888 = vmatpush1.bf16.msra.mxu0 0
      %1889 = vmatprep.subr.bf16.mxu0 0
      %1890 = vmatpush1.bf16.msra.mxu0 0
      %1891 = vmatprep.subr.bf16.mxu0 0
      %1892 = vmatpush1.bf16.msra.mxu0 0
      %1893 = vmatprep.subr.bf16.mxu0 0
      %1894 = vmatpush1.bf16.msra.mxu0 0
      %1895 = vmatprep.subr.bf16.mxu0 %v839
      %1896 = vmatpush1.bf16.msra.mxu0 %v836
      %1897 = vmatprep.subr.bf16.mxu0 0
      %1898 = vmatpush2.bf16.msra.mxu0 0
      %1899 = vmatprep.subr.bf16.mxu0 0
      %1900 = vmatpush2.bf16.msra.mxu0 0
      %1901 = vmatprep.subr.bf16.mxu0 0
      %1902 = vmatpush2.bf16.msra.mxu0 0
      %1903 = vmatprep.subr.bf16.mxu0 0
      %1904 = vmatpush2.bf16.msra.mxu0 0
      %1905 = vmatprep.subr.bf16.mxu0 0
      %1906 = vmatpush2.bf16.msra.mxu0 0
      %1907 = vmatprep.subr.bf16.mxu0 0
      %1908 = vmatpush2.bf16.msra.mxu0 0
      %1909 = vmatprep.subr.bf16.mxu0 0
      %1910 = vmatpush2.bf16.msra.mxu0 0
      %1911 = vmatprep.subr.bf16.mxu0 0
      %1912 = vmatpush2.bf16.msra.mxu0 0
      %1913 = vmatprep.mubr.bf16.mxu0 0
      %1914 = vmatmul.mubr.bf16.gmra.mxu0 %v1838
      %v1915 = vpop.f32.mrf.mxu0
      %v1916 = vadd.f32 0.0, %v1915
      %v1917 = vpop.f32.mrf.mxu0
      %v1918 = vadd.f32 0.0, %v1917
      %v1919 = vpop.f32.mrf.mxu0
      %v1920 = vpop.f32.mrf.mxu0
      %1921 = vdwg.mxu0
      %v1922 = vadd.f32 %v1831, %v1875
      %v1923 = vadd.f32 %v1832, %v1877
      %v1924 = vadd.f32 %v1833, %v1916
      %v1925 = vadd.f32 %v1834, %v1918
      %s1926 = scalar_lea.vmem %s3, 56
      %v1927 = vld [vmem:[%s1926] sm:$0xf]
      %1928 = vrot.lane.b32.xlu0 %v358, 84
      %v1929 = vpop.permute.xlu0 %1928
      %1930 = vrot.lane.b32.xlu0 %v359, 84
      %v1931 = vpop.permute.xlu0 %1930
      %1932 = vrot.lane.b32.xlu0 %v360, 84
      %v1933 = vpop.permute.xlu0 %1932
      %1934 = vrot.lane.b32.xlu0 %v361, 84
      %v1935 = vpop.permute.xlu0 %1934
      %vm1936 = vcmask 687104
      %v1937 = vsel %vm1936, %v1929, %v1931
      %v1938 = vsel %vm1936, %v1931, %v1933
      %v1939 = vsel %vm1936, %v1933, %v1935
      %v1941 = vsel %vm374, %v1927, 0
      %v1944 = vsel %vm378, %v1937, 0
      %v1947 = vsel %vm378, %v1938, 0
      %v1950 = vsel %vm378, %v1939, 0
      %v1953 = vsel %vm378, %v1935, 0
      %1955 = vmatprep.subr.bf16.mxu0 0
      %1956 = vmatpush1.bf16.msra.mxu0 0
      %1957 = vmatprep.subr.bf16.mxu0 0
      %1958 = vmatpush1.bf16.msra.mxu0 0
      %1959 = vmatprep.subr.bf16.mxu0 0
      %1960 = vmatpush1.bf16.msra.mxu0 0
      %1961 = vmatprep.subr.bf16.mxu0 0
      %1962 = vmatpush1.bf16.msra.mxu0 0
      %1963 = vmatprep.subr.bf16.mxu0 0
      %1964 = vmatpush1.bf16.msra.mxu0 0
      %1965 = vmatprep.subr.bf16.mxu0 0
      %1966 = vmatpush1.bf16.msra.mxu0 0
      %1967 = vmatprep.subr.bf16.mxu0 0
      %1968 = vmatpush1.bf16.msra.mxu0 0
      %1969 = vmatprep.subr.bf16.mxu0 %v1947
      %1970 = vmatpush1.bf16.msra.mxu0 %v1944
      %1971 = vmatprep.subr.bf16.mxu0 0
      %1972 = vmatpush2.bf16.msra.mxu0 0
      %1973 = vmatprep.subr.bf16.mxu0 0
      %1974 = vmatpush2.bf16.msra.mxu0 0
      %1975 = vmatprep.subr.bf16.mxu0 0
      %1976 = vmatpush2.bf16.msra.mxu0 0
      %1977 = vmatprep.subr.bf16.mxu0 0
      %1978 = vmatpush2.bf16.msra.mxu0 0
      %1979 = vmatprep.subr.bf16.mxu0 0
      %1980 = vmatpush2.bf16.msra.mxu0 0
      %1981 = vmatprep.subr.bf16.mxu0 0
      %1982 = vmatpush2.bf16.msra.mxu0 0
      %1983 = vmatprep.subr.bf16.mxu0 0
      %1984 = vmatpush2.bf16.msra.mxu0 0
      %1985 = vmatprep.subr.bf16.mxu0 0
      %1986 = vmatpush2.bf16.msra.mxu0 0
      %1987 = vmatprep.mubr.bf16.mxu0 0
      %1988 = vmatmul.mubr.bf16.gmra.mxu0 %v1941
      %v1989 = vpop.f32.mrf.mxu0
      %v1990 = vadd.f32 0.0, %v1989
      %v1991 = vpop.f32.mrf.mxu0
      %v1992 = vadd.f32 0.0, %v1991
      %v1993 = vpop.f32.mrf.mxu0
      %v1994 = vpop.f32.mrf.mxu0
      %1995 = vdwg.mxu0
      %1996 = vmatprep.subr.bf16.mxu0 0
      %1997 = vmatpush1.bf16.msra.mxu0 0
      %1998 = vmatprep.subr.bf16.mxu0 0
      %1999 = vmatpush1.bf16.msra.mxu0 0
      %2000 = vmatprep.subr.bf16.mxu0 0
      %2001 = vmatpush1.bf16.msra.mxu0 0
      %2002 = vmatprep.subr.bf16.mxu0 0
      %2003 = vmatpush1.bf16.msra.mxu0 0
      %2004 = vmatprep.subr.bf16.mxu0 0
      %2005 = vmatpush1.bf16.msra.mxu0 0
      %2006 = vmatprep.subr.bf16.mxu0 0
      %2007 = vmatpush1.bf16.msra.mxu0 0
      %2008 = vmatprep.subr.bf16.mxu0 0
      %2009 = vmatpush1.bf16.msra.mxu0 0
      %2010 = vmatprep.subr.bf16.mxu0 %v1953
      %2011 = vmatpush1.bf16.msra.mxu0 %v1950
      %2012 = vmatprep.subr.bf16.mxu0 0
      %2013 = vmatpush2.bf16.msra.mxu0 0
      %2014 = vmatprep.subr.bf16.mxu0 0
      %2015 = vmatpush2.bf16.msra.mxu0 0
      %2016 = vmatprep.subr.bf16.mxu0 0
      %2017 = vmatpush2.bf16.msra.mxu0 0
      %2018 = vmatprep.subr.bf16.mxu0 0
      %2019 = vmatpush2.bf16.msra.mxu0 0
      %2020 = vmatprep.subr.bf16.mxu0 0
      %2021 = vmatpush2.bf16.msra.mxu0 0
      %2022 = vmatprep.subr.bf16.mxu0 0
      %2023 = vmatpush2.bf16.msra.mxu0 0
      %2024 = vmatprep.subr.bf16.mxu0 0
      %2025 = vmatpush2.bf16.msra.mxu0 0
      %2026 = vmatprep.subr.bf16.mxu0 0
      %2027 = vmatpush2.bf16.msra.mxu0 0
      %2028 = vmatprep.mubr.bf16.mxu0 0
      %2029 = vmatmul.mubr.bf16.gmra.mxu0 %v1941
      %v2030 = vpop.f32.mrf.mxu0
      %v2031 = vadd.f32 0.0, %v2030
      %v2032 = vpop.f32.mrf.mxu0
      %v2033 = vadd.f32 0.0, %v2032
      %v2034 = vpop.f32.mrf.mxu0
      %v2035 = vpop.f32.mrf.mxu0
      %2036 = vdwg.mxu0
      %v2037 = vadd.f32 %v1922, %v1990
      %v2038 = vadd.f32 %v1923, %v1992
      %v2039 = vadd.f32 %v1924, %v2031
      %v2040 = vadd.f32 %v1925, %v2033
      %s2041 = scalar_lea.vmem %s3, 60
      %v2042 = vld [vmem:[%s2041] sm:$0xf]
      %2043 = vrot.lane.b32.xlu0 %v358, 48
      %v2044 = vpop.permute.xlu0 %2043
      %2045 = vrot.lane.b32.xlu0 %v359, 48
      %v2046 = vpop.permute.xlu0 %2045
      %2047 = vrot.lane.b32.xlu0 %v360, 48
      %v2048 = vpop.permute.xlu0 %2047
      %2049 = vrot.lane.b32.xlu0 %v361, 48
      %v2050 = vpop.permute.xlu0 %2049
      %vm2051 = vcmask 392192
      %v2052 = vsel %vm2051, %v2044, %v2046
      %v2053 = vsel %vm2051, %v2046, %v2048
      %v2054 = vsel %vm2051, %v2048, %v2050
      %v2056 = vsel %vm374, %v2042, 0
      %v2059 = vsel %vm378, %v2052, 0
      %v2062 = vsel %vm378, %v2053, 0
      %v2065 = vsel %vm378, %v2054, 0
      %v2068 = vsel %vm378, %v2050, 0
      %2070 = vmatprep.subr.bf16.mxu0 0
      %2071 = vmatpush1.bf16.msra.mxu0 0
      %2072 = vmatprep.subr.bf16.mxu0 0
      %2073 = vmatpush1.bf16.msra.mxu0 0
      %2074 = vmatprep.subr.bf16.mxu0 0
      %2075 = vmatpush1.bf16.msra.mxu0 0
      %2076 = vmatprep.subr.bf16.mxu0 0
      %2077 = vmatpush1.bf16.msra.mxu0 0
      %2078 = vmatprep.subr.bf16.mxu0 0
      %2079 = vmatpush1.bf16.msra.mxu0 0
      %2080 = vmatprep.subr.bf16.mxu0 0
      %2081 = vmatpush1.bf16.msra.mxu0 0
      %2082 = vmatprep.subr.bf16.mxu0 0
      %2083 = vmatpush1.bf16.msra.mxu0 0
      %2084 = vmatprep.subr.bf16.mxu0 %v2062
      %2085 = vmatpush1.bf16.msra.mxu0 %v2059
      %2086 = vmatprep.subr.bf16.mxu0 0
      %2087 = vmatpush2.bf16.msra.mxu0 0
      %2088 = vmatprep.subr.bf16.mxu0 0
      %2089 = vmatpush2.bf16.msra.mxu0 0
      %2090 = vmatprep.subr.bf16.mxu0 0
      %2091 = vmatpush2.bf16.msra.mxu0 0
      %2092 = vmatprep.subr.bf16.mxu0 0
      %2093 = vmatpush2.bf16.msra.mxu0 0
      %2094 = vmatprep.subr.bf16.mxu0 0
      %2095 = vmatpush2.bf16.msra.mxu0 0
      %2096 = vmatprep.subr.bf16.mxu0 0
      %2097 = vmatpush2.bf16.msra.mxu0 0
      %2098 = vmatprep.subr.bf16.mxu0 0
      %2099 = vmatpush2.bf16.msra.mxu0 0
      %2100 = vmatprep.subr.bf16.mxu0 0
      %2101 = vmatpush2.bf16.msra.mxu0 0
      %2102 = vmatprep.mubr.bf16.mxu0 0
      %2103 = vmatmul.mubr.bf16.gmra.mxu0 %v2056
      %v2104 = vpop.f32.mrf.mxu0
      %v2105 = vadd.f32 0.0, %v2104
      %v2106 = vpop.f32.mrf.mxu0
      %v2107 = vadd.f32 0.0, %v2106
      %v2108 = vpop.f32.mrf.mxu0
      %v2109 = vpop.f32.mrf.mxu0
      %2110 = vdwg.mxu0
      %2111 = vmatprep.subr.bf16.mxu0 0
      %2112 = vmatpush1.bf16.msra.mxu0 0
      %2113 = vmatprep.subr.bf16.mxu0 0
      %2114 = vmatpush1.bf16.msra.mxu0 0
      %2115 = vmatprep.subr.bf16.mxu0 0
      %2116 = vmatpush1.bf16.msra.mxu0 0
      %2117 = vmatprep.subr.bf16.mxu0 0
      %2118 = vmatpush1.bf16.msra.mxu0 0
      %2119 = vmatprep.subr.bf16.mxu0 0
      %2120 = vmatpush1.bf16.msra.mxu0 0
      %2121 = vmatprep.subr.bf16.mxu0 0
      %2122 = vmatpush1.bf16.msra.mxu0 0
      %2123 = vmatprep.subr.bf16.mxu0 0
      %2124 = vmatpush1.bf16.msra.mxu0 0
      %2125 = vmatprep.subr.bf16.mxu0 %v2068
      %2126 = vmatpush1.bf16.msra.mxu0 %v2065
      %2127 = vmatprep.subr.bf16.mxu0 0
      %2128 = vmatpush2.bf16.msra.mxu0 0
      %2129 = vmatprep.subr.bf16.mxu0 0
      %2130 = vmatpush2.bf16.msra.mxu0 0
      %2131 = vmatprep.subr.bf16.mxu0 0
      %2132 = vmatpush2.bf16.msra.mxu0 0
      %2133 = vmatprep.subr.bf16.mxu0 0
      %2134 = vmatpush2.bf16.msra.mxu0 0
      %2135 = vmatprep.subr.bf16.mxu0 0
      %2136 = vmatpush2.bf16.msra.mxu0 0
      %2137 = vmatprep.subr.bf16.mxu0 0
      %2138 = vmatpush2.bf16.msra.mxu0 0
      %2139 = vmatprep.subr.bf16.mxu0 0
      %2140 = vmatpush2.bf16.msra.mxu0 0
      %2141 = vmatprep.subr.bf16.mxu0 0
      %2142 = vmatpush2.bf16.msra.mxu0 0
      %2143 = vmatprep.mubr.bf16.mxu0 0
      %2144 = vmatmul.mubr.bf16.gmra.mxu0 %v2056
      %v2145 = vpop.f32.mrf.mxu0
      %v2146 = vadd.f32 0.0, %v2145
      %v2147 = vpop.f32.mrf.mxu0
      %v2148 = vadd.f32 0.0, %v2147
      %v2149 = vpop.f32.mrf.mxu0
      %v2150 = vpop.f32.mrf.mxu0
      %2151 = vdwg.mxu0
      %v2152 = vadd.f32 %v2037, %v2105
      %v2153 = vadd.f32 %v2038, %v2107
      %v2154 = vadd.f32 %v2039, %v2146
      %v2155 = vadd.f32 %v2040, %v2148
      %s2156 = scalar_lea.vmem %s3, 64
      %v2157 = vld [vmem:[%s2156] sm:$0xf]
      %2158 = vrot.lane.b32.xlu0 %v358, 46
      %v2159 = vpop.permute.xlu0 %2158
      %2160 = vrot.lane.b32.xlu0 %v359, 46
      %v2161 = vpop.permute.xlu0 %2160
      %2162 = vrot.lane.b32.xlu0 %v360, 46
      %v2163 = vpop.permute.xlu0 %2162
      %2164 = vrot.lane.b32.xlu0 %v361, 46
      %v2165 = vpop.permute.xlu0 %2164
      %vm2166 = vcmask 375808
      %v2167 = vsel %vm2166, %v2159, %v2161
      %v2168 = vsel %vm2166, %v2161, %v2163
      %v2169 = vsel %vm2166, %v2163, %v2165
      %v2171 = vsel %vm374, %v2157, 0
      %v2174 = vsel %vm378, %v2167, 0
      %v2177 = vsel %vm378, %v2168, 0
      %v2180 = vsel %vm378, %v2169, 0
      %v2183 = vsel %vm378, %v2165, 0
      %2185 = vmatprep.subr.bf16.mxu0 0
      %2186 = vmatpush1.bf16.msra.mxu0 0
      %2187 = vmatprep.subr.bf16.mxu0 0
      %2188 = vmatpush1.bf16.msra.mxu0 0
      %2189 = vmatprep.subr.bf16.mxu0 0
      %2190 = vmatpush1.bf16.msra.mxu0 0
      %2191 = vmatprep.subr.bf16.mxu0 0
      %2192 = vmatpush1.bf16.msra.mxu0 0
      %2193 = vmatprep.subr.bf16.mxu0 0
      %2194 = vmatpush1.bf16.msra.mxu0 0
      %2195 = vmatprep.subr.bf16.mxu0 0
      %2196 = vmatpush1.bf16.msra.mxu0 0
      %2197 = vmatprep.subr.bf16.mxu0 0
      %2198 = vmatpush1.bf16.msra.mxu0 0
      %2199 = vmatprep.subr.bf16.mxu0 %v2177
      %2200 = vmatpush1.bf16.msra.mxu0 %v2174
      %2201 = vmatprep.subr.bf16.mxu0 0
      %2202 = vmatpush2.bf16.msra.mxu0 0
      %2203 = vmatprep.subr.bf16.mxu0 0
      %2204 = vmatpush2.bf16.msra.mxu0 0
      %2205 = vmatprep.subr.bf16.mxu0 0
      %2206 = vmatpush2.bf16.msra.mxu0 0
      %2207 = vmatprep.subr.bf16.mxu0 0
      %2208 = vmatpush2.bf16.msra.mxu0 0
      %2209 = vmatprep.subr.bf16.mxu0 0
      %2210 = vmatpush2.bf16.msra.mxu0 0
      %2211 = vmatprep.subr.bf16.mxu0 0
      %2212 = vmatpush2.bf16.msra.mxu0 0
      %2213 = vmatprep.subr.bf16.mxu0 0
      %2214 = vmatpush2.bf16.msra.mxu0 0
      %2215 = vmatprep.subr.bf16.mxu0 0
      %2216 = vmatpush2.bf16.msra.mxu0 0
      %2217 = vmatprep.mubr.bf16.mxu0 0
      %2218 = vmatmul.mubr.bf16.gmra.mxu0 %v2171
      %v2219 = vpop.f32.mrf.mxu0
      %v2220 = vadd.f32 0.0, %v2219
      %v2221 = vpop.f32.mrf.mxu0
      %v2222 = vadd.f32 0.0, %v2221
      %v2223 = vpop.f32.mrf.mxu0
      %v2224 = vpop.f32.mrf.mxu0
      %2225 = vdwg.mxu0
      %2226 = vmatprep.subr.bf16.mxu0 0
      %2227 = vmatpush1.bf16.msra.mxu0 0
      %2228 = vmatprep.subr.bf16.mxu0 0
      %2229 = vmatpush1.bf16.msra.mxu0 0
      %2230 = vmatprep.subr.bf16.mxu0 0
      %2231 = vmatpush1.bf16.msra.mxu0 0
      %2232 = vmatprep.subr.bf16.mxu0 0
      %2233 = vmatpush1.bf16.msra.mxu0 0
      %2234 = vmatprep.subr.bf16.mxu0 0
      %2235 = vmatpush1.bf16.msra.mxu0 0
      %2236 = vmatprep.subr.bf16.mxu0 0
      %2237 = vmatpush1.bf16.msra.mxu0 0
      %2238 = vmatprep.subr.bf16.mxu0 0
      %2239 = vmatpush1.bf16.msra.mxu0 0
      %2240 = vmatprep.subr.bf16.mxu0 %v2183
      %2241 = vmatpush1.bf16.msra.mxu0 %v2180
      %2242 = vmatprep.subr.bf16.mxu0 0
      %2243 = vmatpush2.bf16.msra.mxu0 0
      %2244 = vmatprep.subr.bf16.mxu0 0
      %2245 = vmatpush2.bf16.msra.mxu0 0
      %2246 = vmatprep.subr.bf16.mxu0 0
      %2247 = vmatpush2.bf16.msra.mxu0 0
      %2248 = vmatprep.subr.bf16.mxu0 0
      %2249 = vmatpush2.bf16.msra.mxu0 0
      %2250 = vmatprep.subr.bf16.mxu0 0
      %2251 = vmatpush2.bf16.msra.mxu0 0
      %2252 = vmatprep.subr.bf16.mxu0 0
      %2253 = vmatpush2.bf16.msra.mxu0 0
      %2254 = vmatprep.subr.bf16.mxu0 0
      %2255 = vmatpush2.bf16.msra.mxu0 0
      %2256 = vmatprep.subr.bf16.mxu0 0
      %2257 = vmatpush2.bf16.msra.mxu0 0
      %2258 = vmatprep.mubr.bf16.mxu0 0
      %2259 = vmatmul.mubr.bf16.gmra.mxu0 %v2171
      %v2260 = vpop.f32.mrf.mxu0
      %v2261 = vadd.f32 0.0, %v2260
      %v2262 = vpop.f32.mrf.mxu0
      %v2263 = vadd.f32 0.0, %v2262
      %v2264 = vpop.f32.mrf.mxu0
      %v2265 = vpop.f32.mrf.mxu0
      %2266 = vdwg.mxu0
      %v2267 = vadd.f32 %v2152, %v2220
      %v2268 = vadd.f32 %v2153, %v2222
      %v2269 = vadd.f32 %v2154, %v2261
      %v2270 = vadd.f32 %v2155, %v2263
      %s2271 = scalar_lea.vmem %s3, 68
      %v2272 = vld [vmem:[%s2271] sm:$0xf]
      %2273 = vrot.lane.b32.xlu0 %v358, 44
      %v2274 = vpop.permute.xlu0 %2273
      %2275 = vrot.lane.b32.xlu0 %v359, 44
      %v2276 = vpop.permute.xlu0 %2275
      %2277 = vrot.lane.b32.xlu0 %v360, 44
      %v2278 = vpop.permute.xlu0 %2277
      %2279 = vrot.lane.b32.xlu0 %v361, 44
      %v2280 = vpop.permute.xlu0 %2279
      %vm2281 = vcmask 359424
      %v2282 = vsel %vm2281, %v2274, %v2276
      %v2283 = vsel %vm2281, %v2276, %v2278
      %v2284 = vsel %vm2281, %v2278, %v2280
      %v2286 = vsel %vm374, %v2272, 0
      %v2289 = vsel %vm378, %v2282, 0
      %v2292 = vsel %vm378, %v2283, 0
      %v2295 = vsel %vm378, %v2284, 0
      %v2298 = vsel %vm378, %v2280, 0
      %2300 = vmatprep.subr.bf16.mxu0 0
      %2301 = vmatpush1.bf16.msra.mxu0 0
      %2302 = vmatprep.subr.bf16.mxu0 0
      %2303 = vmatpush1.bf16.msra.mxu0 0
      %2304 = vmatprep.subr.bf16.mxu0 0
      %2305 = vmatpush1.bf16.msra.mxu0 0
      %2306 = vmatprep.subr.bf16.mxu0 0
      %2307 = vmatpush1.bf16.msra.mxu0 0
      %2308 = vmatprep.subr.bf16.mxu0 0
      %2309 = vmatpush1.bf16.msra.mxu0 0
      %2310 = vmatprep.subr.bf16.mxu0 0
      %2311 = vmatpush1.bf16.msra.mxu0 0
      %2312 = vmatprep.subr.bf16.mxu0 0
      %2313 = vmatpush1.bf16.msra.mxu0 0
      %2314 = vmatprep.subr.bf16.mxu0 %v2292
      %2315 = vmatpush1.bf16.msra.mxu0 %v2289
      %2316 = vmatprep.subr.bf16.mxu0 0
      %2317 = vmatpush2.bf16.msra.mxu0 0
      %2318 = vmatprep.subr.bf16.mxu0 0
      %2319 = vmatpush2.bf16.msra.mxu0 0
      %2320 = vmatprep.subr.bf16.mxu0 0
      %2321 = vmatpush2.bf16.msra.mxu0 0
      %2322 = vmatprep.subr.bf16.mxu0 0
      %2323 = vmatpush2.bf16.msra.mxu0 0
      %2324 = vmatprep.subr.bf16.mxu0 0
      %2325 = vmatpush2.bf16.msra.mxu0 0
      %2326 = vmatprep.subr.bf16.mxu0 0
      %2327 = vmatpush2.bf16.msra.mxu0 0
      %2328 = vmatprep.subr.bf16.mxu0 0
      %2329 = vmatpush2.bf16.msra.mxu0 0
      %2330 = vmatprep.subr.bf16.mxu0 0
      %2331 = vmatpush2.bf16.msra.mxu0 0
      %2332 = vmatprep.mubr.bf16.mxu0 0
      %2333 = vmatmul.mubr.bf16.gmra.mxu0 %v2286
      %v2334 = vpop.f32.mrf.mxu0
      %v2335 = vadd.f32 0.0, %v2334
      %v2336 = vpop.f32.mrf.mxu0
      %v2337 = vadd.f32 0.0, %v2336
      %v2338 = vpop.f32.mrf.mxu0
      %v2339 = vpop.f32.mrf.mxu0
      %2340 = vdwg.mxu0
      %2341 = vmatprep.subr.bf16.mxu0 0
      %2342 = vmatpush1.bf16.msra.mxu0 0
      %2343 = vmatprep.subr.bf16.mxu0 0
      %2344 = vmatpush1.bf16.msra.mxu0 0
      %2345 = vmatprep.subr.bf16.mxu0 0
      %2346 = vmatpush1.bf16.msra.mxu0 0
      %2347 = vmatprep.subr.bf16.mxu0 0
      %2348 = vmatpush1.bf16.msra.mxu0 0
      %2349 = vmatprep.subr.bf16.mxu0 0
      %2350 = vmatpush1.bf16.msra.mxu0 0
      %2351 = vmatprep.subr.bf16.mxu0 0
      %2352 = vmatpush1.bf16.msra.mxu0 0
      %2353 = vmatprep.subr.bf16.mxu0 0
      %2354 = vmatpush1.bf16.msra.mxu0 0
      %2355 = vmatprep.subr.bf16.mxu0 %v2298
      %2356 = vmatpush1.bf16.msra.mxu0 %v2295
      %2357 = vmatprep.subr.bf16.mxu0 0
      %2358 = vmatpush2.bf16.msra.mxu0 0
      %2359 = vmatprep.subr.bf16.mxu0 0
      %2360 = vmatpush2.bf16.msra.mxu0 0
      %2361 = vmatprep.subr.bf16.mxu0 0
      %2362 = vmatpush2.bf16.msra.mxu0 0
      %2363 = vmatprep.subr.bf16.mxu0 0
      %2364 = vmatpush2.bf16.msra.mxu0 0
      %2365 = vmatprep.subr.bf16.mxu0 0
      %2366 = vmatpush2.bf16.msra.mxu0 0
      %2367 = vmatprep.subr.bf16.mxu0 0
      %2368 = vmatpush2.bf16.msra.mxu0 0
      %2369 = vmatprep.subr.bf16.mxu0 0
      %2370 = vmatpush2.bf16.msra.mxu0 0
      %2371 = vmatprep.subr.bf16.mxu0 0
      %2372 = vmatpush2.bf16.msra.mxu0 0
      %2373 = vmatprep.mubr.bf16.mxu0 0
      %2374 = vmatmul.mubr.bf16.gmra.mxu0 %v2286
      %v2375 = vpop.f32.mrf.mxu0
      %v2376 = vadd.f32 0.0, %v2375
      %v2377 = vpop.f32.mrf.mxu0
      %v2378 = vadd.f32 0.0, %v2377
      %v2379 = vpop.f32.mrf.mxu0
      %v2380 = vpop.f32.mrf.mxu0
      %2381 = vdwg.mxu0
      %v2382 = vadd.f32 %v2267, %v2335
      %v2383 = vadd.f32 %v2268, %v2337
      %v2384 = vadd.f32 %v2269, %v2376
      %v2385 = vadd.f32 %v2270, %v2378
      %v2386 = vld [vmem:[%s4] sm:$0xff]
      %2388 = vset.pattern.permute.xlu0 0
      %2389 = vperm.xlu0 %2388, %v2386
      %v2390 = vpop.permute.xlu0 %2389
      %v2392 = vadd.f32 %v2382, %v2390
      %v2393 = vadd.f32 %v2383, %v2390
      %v2394 = vadd.f32 %v2384, %v2390
      %v2395 = vadd.f32 %v2385, %v2390
      %v2396 = vmax.f32 %v2392, 0.0
      %v2397 = vmax.f32 %v2393, 0.0
      %v2398 = vmax.f32 %v2394, 0.0
      %v2399 = vmax.f32 %v2395, 0.0
      %v2400 = vld [vmem:[%s5] sm:$0xf]
      %v2402 = vlaneseq
      %v2403 = vshrl.u32 %v2402, 7
      %v2404 = vsub.s32 0, %v2403
      %v2405 = vrot.slane %v2400, %v2404
      %v2406 = vlaneseq
      %v2407 = vshrl.u32 %v2406, 7
      %v2408 = vsub.s32 1, %v2407
      %v2409 = vrot.slane %v2400, %v2408
      %v2410 = vlaneseq
      %v2411 = vshrl.u32 %v2410, 7
      %v2412 = vsub.s32 2, %v2411
      %v2413 = vrot.slane %v2400, %v2412
      %v2414 = vlaneseq
      %v2415 = vshrl.u32 %v2414, 7
      %v2416 = vsub.s32 3, %v2415
      %v2417 = vrot.slane %v2400, %v2416
      %v2422 = vmul.f32 %v2396, %v2405
      %v2423 = vmul.f32 %v2397, %v2409
      %v2424 = vmul.f32 %v2398, %v2413
      %v2425 = vmul.f32 %v2399, %v2417
      %v2426 = vld [vmem:[%s6] sm:$0xf]
      %v2427 = vld [vmem:[%s335] sm:$0xff]
      %v2428 = vld [vmem:[%s335 + $0x8] sm:$0xff]
      %s2429 = scalar_lea.vmem %s6, 4
      %v2430 = vld [vmem:[%s2429] sm:$0xf]
      %v2431 = vld [vmem:[%s340] sm:$0xff]
      %v2432 = vld [vmem:[%s340 + $0x8] sm:$0xff]
      %v2435 = vunpack.c.l.b16 %v2431
      %v2436 = vunpack.c.h.b16 %v2431
      %v2437 = vunpack.c.l.b16 %v2432
      %v2438 = vunpack.c.h.b16 %v2432
      %v2439 = vpack.c.b16 %v2435, %v2435
      %v2440 = vpack.c.b16 %v2436, %v2436
      %v2441 = vpack.c.b16 %v2437, %v2437
      %v2442 = vpack.c.b16 %v2438, %v2438
      %2443 = vrot.lane.b32.xlu0 %v2439, 86
      %v2444 = vpop.permute.xlu0 %2443
      %2445 = vrot.lane.b32.xlu0 %v2440, 86
      %v2446 = vpop.permute.xlu0 %2445
      %2447 = vrot.lane.b32.xlu0 %v2441, 86
      %v2448 = vpop.permute.xlu0 %2447
      %2449 = vrot.lane.b32.xlu0 %v2442, 86
      %v2450 = vpop.permute.xlu0 %2449
      %v2451 = vsel %vm822, %v2444, %v2446
      %v2452 = vsel %vm822, %v2446, %v2448
      %v2453 = vsel %vm822, %v2448, %v2450
      %v2455 = vsel %vm374, %v2430, 0
      %v2458 = vsel %vm378, %v2451, 0
      %v2461 = vsel %vm378, %v2452, 0
      %v2464 = vsel %vm378, %v2453, 0
      %v2467 = vsel %vm378, %v2450, 0
      %2469 = vmatprep.subr.bf16.mxu0 0
      %2470 = vmatpush1.bf16.msra.mxu0 0
      %2471 = vmatprep.subr.bf16.mxu0 0
      %2472 = vmatpush1.bf16.msra.mxu0 0
      %2473 = vmatprep.subr.bf16.mxu0 0
      %2474 = vmatpush1.bf16.msra.mxu0 0
      %2475 = vmatprep.subr.bf16.mxu0 0
      %2476 = vmatpush1.bf16.msra.mxu0 0
      %2477 = vmatprep.subr.bf16.mxu0 0
      %2478 = vmatpush1.bf16.msra.mxu0 0
      %2479 = vmatprep.subr.bf16.mxu0 0
      %2480 = vmatpush1.bf16.msra.mxu0 0
      %2481 = vmatprep.subr.bf16.mxu0 0
      %2482 = vmatpush1.bf16.msra.mxu0 0
      %2483 = vmatprep.subr.bf16.mxu0 %v2461
      %2484 = vmatpush1.bf16.msra.mxu0 %v2458
      %2485 = vmatprep.subr.bf16.mxu0 0
      %2486 = vmatpush2.bf16.msra.mxu0 0
      %2487 = vmatprep.subr.bf16.mxu0 0
      %2488 = vmatpush2.bf16.msra.mxu0 0
      %2489 = vmatprep.subr.bf16.mxu0 0
      %2490 = vmatpush2.bf16.msra.mxu0 0
      %2491 = vmatprep.subr.bf16.mxu0 0
      %2492 = vmatpush2.bf16.msra.mxu0 0
      %2493 = vmatprep.subr.bf16.mxu0 0
      %2494 = vmatpush2.bf16.msra.mxu0 0
      %2495 = vmatprep.subr.bf16.mxu0 0
      %2496 = vmatpush2.bf16.msra.mxu0 0
      %2497 = vmatprep.subr.bf16.mxu0 0
      %2498 = vmatpush2.bf16.msra.mxu0 0
      %2499 = vmatprep.subr.bf16.mxu0 0
      %2500 = vmatpush2.bf16.msra.mxu0 0
      %2501 = vmatprep.mubr.bf16.mxu0 0
      %2502 = vmatmul.mubr.bf16.gmra.mxu0 %v2455
      %v2503 = vpop.f32.mrf.mxu0
      %v2504 = vadd.f32 0.0, %v2503
      %v2505 = vpop.f32.mrf.mxu0
      %v2506 = vadd.f32 0.0, %v2505
      %v2507 = vpop.f32.mrf.mxu0
      %v2508 = vpop.f32.mrf.mxu0
      %2509 = vdwg.mxu0
      %2510 = vmatprep.subr.bf16.mxu0 0
      %2511 = vmatpush1.bf16.msra.mxu0 0
      %2512 = vmatprep.subr.bf16.mxu0 0
      %2513 = vmatpush1.bf16.msra.mxu0 0
      %2514 = vmatprep.subr.bf16.mxu0 0
      %2515 = vmatpush1.bf16.msra.mxu0 0
      %2516 = vmatprep.subr.bf16.mxu0 0
      %2517 = vmatpush1.bf16.msra.mxu0 0
      %2518 = vmatprep.subr.bf16.mxu0 0
      %2519 = vmatpush1.bf16.msra.mxu0 0
      %2520 = vmatprep.subr.bf16.mxu0 0
      %2521 = vmatpush1.bf16.msra.mxu0 0
      %2522 = vmatprep.subr.bf16.mxu0 0
      %2523 = vmatpush1.bf16.msra.mxu0 0
      %2524 = vmatprep.subr.bf16.mxu0 %v2467
      %2525 = vmatpush1.bf16.msra.mxu0 %v2464
      %2526 = vmatprep.subr.bf16.mxu0 0
      %2527 = vmatpush2.bf16.msra.mxu0 0
      %2528 = vmatprep.subr.bf16.mxu0 0
      %2529 = vmatpush2.bf16.msra.mxu0 0
      %2530 = vmatprep.subr.bf16.mxu0 0
      %2531 = vmatpush2.bf16.msra.mxu0 0
      %2532 = vmatprep.subr.bf16.mxu0 0
      %2533 = vmatpush2.bf16.msra.mxu0 0
      %2534 = vmatprep.subr.bf16.mxu0 0
      %2535 = vmatpush2.bf16.msra.mxu0 0
      %2536 = vmatprep.subr.bf16.mxu0 0
      %2537 = vmatpush2.bf16.msra.mxu0 0
      %2538 = vmatprep.subr.bf16.mxu0 0
      %2539 = vmatpush2.bf16.msra.mxu0 0
      %2540 = vmatprep.subr.bf16.mxu0 0
      %2541 = vmatpush2.bf16.msra.mxu0 0
      %2542 = vmatprep.mubr.bf16.mxu0 0
      %2543 = vmatmul.mubr.bf16.gmra.mxu0 %v2455
      %v2544 = vpop.f32.mrf.mxu0
      %v2545 = vadd.f32 0.0, %v2544
      %v2546 = vpop.f32.mrf.mxu0
      %v2547 = vadd.f32 0.0, %v2546
      %v2548 = vpop.f32.mrf.mxu0
      %v2549 = vpop.f32.mrf.mxu0
      %2550 = vdwg.mxu0
      %v2553 = vunpack.c.l.b16 %v2427
      %v2554 = vunpack.c.h.b16 %v2427
      %v2555 = vunpack.c.l.b16 %v2428
      %v2556 = vunpack.c.h.b16 %v2428
      %v2557 = vpack.c.b16 %v2553, %v2553
      %v2558 = vpack.c.b16 %v2554, %v2554
      %v2559 = vpack.c.b16 %v2555, %v2555
      %v2560 = vpack.c.b16 %v2556, %v2556
      %2561 = vrot.lane.b32.xlu0 %v2557, 86
      %v2562 = vpop.permute.xlu0 %2561
      %2563 = vrot.lane.b32.xlu0 %v2558, 86
      %v2564 = vpop.permute.xlu0 %2563
      %2565 = vrot.lane.b32.xlu0 %v2559, 86
      %v2566 = vpop.permute.xlu0 %2565
      %2567 = vrot.lane.b32.xlu0 %v2560, 86
      %v2568 = vpop.permute.xlu0 %2567
      %v2569 = vsel %vm822, %v2562, %v2564
      %v2570 = vsel %vm822, %v2564, %v2566
      %v2571 = vsel %vm822, %v2566, %v2568
      %v2573 = vsel %vm374, %v2426, 0
      %v2576 = vsel %vm378, %v2569, 0
      %v2579 = vsel %vm378, %v2570, 0
      %v2582 = vsel %vm378, %v2571, 0
      %v2585 = vsel %vm378, %v2568, 0
      %2587 = vmatprep.subr.bf16.mxu0 0
      %2588 = vmatpush1.bf16.msra.mxu0 0
      %2589 = vmatprep.subr.bf16.mxu0 0
      %2590 = vmatpush1.bf16.msra.mxu0 0
      %2591 = vmatprep.subr.bf16.mxu0 0
      %2592 = vmatpush1.bf16.msra.mxu0 0
      %2593 = vmatprep.subr.bf16.mxu0 0
      %2594 = vmatpush1.bf16.msra.mxu0 0
      %2595 = vmatprep.subr.bf16.mxu0 0
      %2596 = vmatpush1.bf16.msra.mxu0 0
      %2597 = vmatprep.subr.bf16.mxu0 0
      %2598 = vmatpush1.bf16.msra.mxu0 0
      %2599 = vmatprep.subr.bf16.mxu0 0
      %2600 = vmatpush1.bf16.msra.mxu0 0
      %2601 = vmatprep.subr.bf16.mxu0 %v2579
      %2602 = vmatpush1.bf16.msra.mxu0 %v2576
      %2603 = vmatprep.subr.bf16.mxu0 0
      %2604 = vmatpush2.bf16.msra.mxu0 0
      %2605 = vmatprep.subr.bf16.mxu0 0
      %2606 = vmatpush2.bf16.msra.mxu0 0
      %2607 = vmatprep.subr.bf16.mxu0 0
      %2608 = vmatpush2.bf16.msra.mxu0 0
      %2609 = vmatprep.subr.bf16.mxu0 0
      %2610 = vmatpush2.bf16.msra.mxu0 0
      %2611 = vmatprep.subr.bf16.mxu0 0
      %2612 = vmatpush2.bf16.msra.mxu0 0
      %2613 = vmatprep.subr.bf16.mxu0 0
      %2614 = vmatpush2.bf16.msra.mxu0 0
      %2615 = vmatprep.subr.bf16.mxu0 0
      %2616 = vmatpush2.bf16.msra.mxu0 0
      %2617 = vmatprep.subr.bf16.mxu0 0
      %2618 = vmatpush2.bf16.msra.mxu0 0
      %2619 = vmatprep.mubr.bf16.mxu0 0
      %2620 = vmatmul.mubr.bf16.gmra.mxu0 %v2573
      %v2621 = vpop.f32.mrf.mxu0
      %v2622 = vadd.f32 %v2504, %v2621
      %v2623 = vpop.f32.mrf.mxu0
      %v2624 = vadd.f32 %v2506, %v2623
      %v2625 = vpop.f32.mrf.mxu0
      %v2626 = vpop.f32.mrf.mxu0
      %2627 = vdwg.mxu0
      %2628 = vmatprep.subr.bf16.mxu0 0
      %2629 = vmatpush1.bf16.msra.mxu0 0
      %2630 = vmatprep.subr.bf16.mxu0 0
      %2631 = vmatpush1.bf16.msra.mxu0 0
      %2632 = vmatprep.subr.bf16.mxu0 0
      %2633 = vmatpush1.bf16.msra.mxu0 0
      %2634 = vmatprep.subr.bf16.mxu0 0
      %2635 = vmatpush1.bf16.msra.mxu0 0
      %2636 = vmatprep.subr.bf16.mxu0 0
      %2637 = vmatpush1.bf16.msra.mxu0 0
      %2638 = vmatprep.subr.bf16.mxu0 0
      %2639 = vmatpush1.bf16.msra.mxu0 0
      %2640 = vmatprep.subr.bf16.mxu0 0
      %2641 = vmatpush1.bf16.msra.mxu0 0
      %2642 = vmatprep.subr.bf16.mxu0 %v2585
      %2643 = vmatpush1.bf16.msra.mxu0 %v2582
      %2644 = vmatprep.subr.bf16.mxu0 0
      %2645 = vmatpush2.bf16.msra.mxu0 0
      %2646 = vmatprep.subr.bf16.mxu0 0
      %2647 = vmatpush2.bf16.msra.mxu0 0
      %2648 = vmatprep.subr.bf16.mxu0 0
      %2649 = vmatpush2.bf16.msra.mxu0 0
      %2650 = vmatprep.subr.bf16.mxu0 0
      %2651 = vmatpush2.bf16.msra.mxu0 0
      %2652 = vmatprep.subr.bf16.mxu0 0
      %2653 = vmatpush2.bf16.msra.mxu0 0
      %2654 = vmatprep.subr.bf16.mxu0 0
      %2655 = vmatpush2.bf16.msra.mxu0 0
      %2656 = vmatprep.subr.bf16.mxu0 0
      %2657 = vmatpush2.bf16.msra.mxu0 0
      %2658 = vmatprep.subr.bf16.mxu0 0
      %2659 = vmatpush2.bf16.msra.mxu0 0
      %2660 = vmatprep.mubr.bf16.mxu0 0
      %2661 = vmatmul.mubr.bf16.gmra.mxu0 %v2573
      %v2662 = vpop.f32.mrf.mxu0
      %v2663 = vadd.f32 %v2545, %v2662
      %v2664 = vpop.f32.mrf.mxu0
      %v2665 = vadd.f32 %v2547, %v2664
      %v2666 = vpop.f32.mrf.mxu0
      %v2667 = vpop.f32.mrf.mxu0
      %2668 = vdwg.mxu0
      %s2669 = scalar_lea.vmem %s6, 8
      %v2670 = vld [vmem:[%s2669] sm:$0xf]
      %v2672 = vsel %vm374, %v2670, 0
      %2674 = vmatprep.subr.bf16.mxu0 0
      %2675 = vmatpush1.bf16.msra.mxu0 0
      %2676 = vmatprep.subr.bf16.mxu0 0
      %2677 = vmatpush1.bf16.msra.mxu0 0
      %2678 = vmatprep.subr.bf16.mxu0 0
      %2679 = vmatpush1.bf16.msra.mxu0 0
      %2680 = vmatprep.subr.bf16.mxu0 0
      %2681 = vmatpush1.bf16.msra.mxu0 0
      %2682 = vmatprep.subr.bf16.mxu0 0
      %2683 = vmatpush1.bf16.msra.mxu0 0
      %2684 = vmatprep.subr.bf16.mxu0 0
      %2685 = vmatpush1.bf16.msra.mxu0 0
      %2686 = vmatprep.subr.bf16.mxu0 0
      %2687 = vmatpush1.bf16.msra.mxu0 0
      %2688 = vmatprep.subr.bf16.mxu0 %v833
      %2689 = vmatpush1.bf16.msra.mxu0 %v830
      %2690 = vmatprep.subr.bf16.mxu0 0
      %2691 = vmatpush2.bf16.msra.mxu0 0
      %2692 = vmatprep.subr.bf16.mxu0 0
      %2693 = vmatpush2.bf16.msra.mxu0 0
      %2694 = vmatprep.subr.bf16.mxu0 0
      %2695 = vmatpush2.bf16.msra.mxu0 0
      %2696 = vmatprep.subr.bf16.mxu0 0
      %2697 = vmatpush2.bf16.msra.mxu0 0
      %2698 = vmatprep.subr.bf16.mxu0 0
      %2699 = vmatpush2.bf16.msra.mxu0 0
      %2700 = vmatprep.subr.bf16.mxu0 0
      %2701 = vmatpush2.bf16.msra.mxu0 0
      %2702 = vmatprep.subr.bf16.mxu0 0
      %2703 = vmatpush2.bf16.msra.mxu0 0
      %2704 = vmatprep.subr.bf16.mxu0 0
      %2705 = vmatpush2.bf16.msra.mxu0 0
      %2706 = vmatprep.mubr.bf16.mxu0 0
      %2707 = vmatmul.mubr.bf16.gmra.mxu0 %v2672
      %v2708 = vpop.f32.mrf.mxu0
      %v2709 = vadd.f32 0.0, %v2708
      %v2710 = vpop.f32.mrf.mxu0
      %v2711 = vadd.f32 0.0, %v2710
      %v2712 = vpop.f32.mrf.mxu0
      %v2713 = vpop.f32.mrf.mxu0
      %2714 = vdwg.mxu0
      %2715 = vmatprep.subr.bf16.mxu0 0
      %2716 = vmatpush1.bf16.msra.mxu0 0
      %2717 = vmatprep.subr.bf16.mxu0 0
      %2718 = vmatpush1.bf16.msra.mxu0 0
      %2719 = vmatprep.subr.bf16.mxu0 0
      %2720 = vmatpush1.bf16.msra.mxu0 0
      %2721 = vmatprep.subr.bf16.mxu0 0
      %2722 = vmatpush1.bf16.msra.mxu0 0
      %2723 = vmatprep.subr.bf16.mxu0 0
      %2724 = vmatpush1.bf16.msra.mxu0 0
      %2725 = vmatprep.subr.bf16.mxu0 0
      %2726 = vmatpush1.bf16.msra.mxu0 0
      %2727 = vmatprep.subr.bf16.mxu0 0
      %2728 = vmatpush1.bf16.msra.mxu0 0
      %2729 = vmatprep.subr.bf16.mxu0 %v839
      %2730 = vmatpush1.bf16.msra.mxu0 %v836
      %2731 = vmatprep.subr.bf16.mxu0 0
      %2732 = vmatpush2.bf16.msra.mxu0 0
      %2733 = vmatprep.subr.bf16.mxu0 0
      %2734 = vmatpush2.bf16.msra.mxu0 0
      %2735 = vmatprep.subr.bf16.mxu0 0
      %2736 = vmatpush2.bf16.msra.mxu0 0
      %2737 = vmatprep.subr.bf16.mxu0 0
      %2738 = vmatpush2.bf16.msra.mxu0 0
      %2739 = vmatprep.subr.bf16.mxu0 0
      %2740 = vmatpush2.bf16.msra.mxu0 0
      %2741 = vmatprep.subr.bf16.mxu0 0
      %2742 = vmatpush2.bf16.msra.mxu0 0
      %2743 = vmatprep.subr.bf16.mxu0 0
      %2744 = vmatpush2.bf16.msra.mxu0 0
      %2745 = vmatprep.subr.bf16.mxu0 0
      %2746 = vmatpush2.bf16.msra.mxu0 0
      %2747 = vmatprep.mubr.bf16.mxu0 0
      %2748 = vmatmul.mubr.bf16.gmra.mxu0 %v2672
      %v2749 = vpop.f32.mrf.mxu0
      %v2750 = vadd.f32 0.0, %v2749
      %v2751 = vpop.f32.mrf.mxu0
      %v2752 = vadd.f32 0.0, %v2751
      %v2753 = vpop.f32.mrf.mxu0
      %v2754 = vpop.f32.mrf.mxu0
      %2755 = vdwg.mxu0
      %v2756 = vadd.f32 %v2622, %v2709
      %v2757 = vadd.f32 %v2624, %v2711
      %v2758 = vadd.f32 %v2663, %v2750
      %v2759 = vadd.f32 %v2665, %v2752
      %s2760 = scalar_lea.vmem %s6, 12
      %v2761 = vld [vmem:[%s2760] sm:$0xf]
      %v2762 = vpack.c.bf16 %v2422, %v2422
      %v2763 = vpack.c.bf16 %v2423, %v2423
      %v2764 = vpack.c.bf16 %v2424, %v2424
      %v2765 = vpack.c.bf16 %v2425, %v2425
      %v2767 = vsel %vm374, %v2761, 0
      %v2770 = vsel %vm378, %v2762, 0
      %v2773 = vsel %vm378, %v2763, 0
      %v2776 = vsel %vm378, %v2764, 0
      %v2779 = vsel %vm378, %v2765, 0
      %2781 = vmatprep.subr.bf16.mxu0 0
      %2782 = vmatpush1.bf16.msra.mxu0 0
      %2783 = vmatprep.subr.bf16.mxu0 0
      %2784 = vmatpush1.bf16.msra.mxu0 0
      %2785 = vmatprep.subr.bf16.mxu0 0
      %2786 = vmatpush1.bf16.msra.mxu0 0
      %2787 = vmatprep.subr.bf16.mxu0 0
      %2788 = vmatpush1.bf16.msra.mxu0 0
      %2789 = vmatprep.subr.bf16.mxu0 0
      %2790 = vmatpush1.bf16.msra.mxu0 0
      %2791 = vmatprep.subr.bf16.mxu0 0
      %2792 = vmatpush1.bf16.msra.mxu0 0
      %2793 = vmatprep.subr.bf16.mxu0 0
      %2794 = vmatpush1.bf16.msra.mxu0 0
      %2795 = vmatprep.subr.bf16.mxu0 %v2773
      %2796 = vmatpush1.bf16.msra.mxu0 %v2770
      %2797 = vmatprep.subr.bf16.mxu0 0
      %2798 = vmatpush2.bf16.msra.mxu0 0
      %2799 = vmatprep.subr.bf16.mxu0 0
      %2800 = vmatpush2.bf16.msra.mxu0 0
      %2801 = vmatprep.subr.bf16.mxu0 0
      %2802 = vmatpush2.bf16.msra.mxu0 0
      %2803 = vmatprep.subr.bf16.mxu0 0
      %2804 = vmatpush2.bf16.msra.mxu0 0
      %2805 = vmatprep.subr.bf16.mxu0 0
      %2806 = vmatpush2.bf16.msra.mxu0 0
      %2807 = vmatprep.subr.bf16.mxu0 0
      %2808 = vmatpush2.bf16.msra.mxu0 0
      %2809 = vmatprep.subr.bf16.mxu0 0
      %2810 = vmatpush2.bf16.msra.mxu0 0
      %2811 = vmatprep.subr.bf16.mxu0 0
      %2812 = vmatpush2.bf16.msra.mxu0 0
      %2813 = vmatprep.mubr.bf16.mxu0 0
      %2814 = vmatmul.mubr.bf16.gmra.mxu0 %v2767
      %v2815 = vpop.f32.mrf.mxu0
      %v2816 = vadd.f32 0.0, %v2815
      %v2817 = vpop.f32.mrf.mxu0
      %v2818 = vadd.f32 0.0, %v2817
      %v2819 = vpop.f32.mrf.mxu0
      %v2820 = vpop.f32.mrf.mxu0
      %2821 = vdwg.mxu0
      %2822 = vmatprep.subr.bf16.mxu0 0
      %2823 = vmatpush1.bf16.msra.mxu0 0
      %2824 = vmatprep.subr.bf16.mxu0 0
      %2825 = vmatpush1.bf16.msra.mxu0 0
      %2826 = vmatprep.subr.bf16.mxu0 0
      %2827 = vmatpush1.bf16.msra.mxu0 0
      %2828 = vmatprep.subr.bf16.mxu0 0
      %2829 = vmatpush1.bf16.msra.mxu0 0
      %2830 = vmatprep.subr.bf16.mxu0 0
      %2831 = vmatpush1.bf16.msra.mxu0 0
      %2832 = vmatprep.subr.bf16.mxu0 0
      %2833 = vmatpush1.bf16.msra.mxu0 0
      %2834 = vmatprep.subr.bf16.mxu0 0
      %2835 = vmatpush1.bf16.msra.mxu0 0
      %2836 = vmatprep.subr.bf16.mxu0 %v2779
      %2837 = vmatpush1.bf16.msra.mxu0 %v2776
      %2838 = vmatprep.subr.bf16.mxu0 0
      %2839 = vmatpush2.bf16.msra.mxu0 0
      %2840 = vmatprep.subr.bf16.mxu0 0
      %2841 = vmatpush2.bf16.msra.mxu0 0
      %2842 = vmatprep.subr.bf16.mxu0 0
      %2843 = vmatpush2.bf16.msra.mxu0 0
      %2844 = vmatprep.subr.bf16.mxu0 0
      %2845 = vmatpush2.bf16.msra.mxu0 0
      %2846 = vmatprep.subr.bf16.mxu0 0
      %2847 = vmatpush2.bf16.msra.mxu0 0
      %2848 = vmatprep.subr.bf16.mxu0 0
      %2849 = vmatpush2.bf16.msra.mxu0 0
      %2850 = vmatprep.subr.bf16.mxu0 0
      %2851 = vmatpush2.bf16.msra.mxu0 0
      %2852 = vmatprep.subr.bf16.mxu0 0
      %2853 = vmatpush2.bf16.msra.mxu0 0
      %2854 = vmatprep.mubr.bf16.mxu0 0
      %2855 = vmatmul.mubr.bf16.gmra.mxu0 %v2767
      %v2856 = vpop.f32.mrf.mxu0
      %v2857 = vadd.f32 0.0, %v2856
      %v2858 = vpop.f32.mrf.mxu0
      %v2859 = vadd.f32 0.0, %v2858
      %v2860 = vpop.f32.mrf.mxu0
      %v2861 = vpop.f32.mrf.mxu0
      %2862 = vdwg.mxu0
      %v2863 = vadd.f32 %v2756, %v2816
      %v2864 = vadd.f32 %v2757, %v2818
      %v2865 = vadd.f32 %v2758, %v2857
      %v2866 = vadd.f32 %v2759, %v2859
      %v2867 = vld [vmem:[%s7] sm:$0xff]
      %2869 = vset.pattern.permute.xlu0 0
      %2870 = vperm.xlu0 %2869, %v2867
      %v2871 = vpop.permute.xlu0 %2870
      %v2873 = vadd.f32 %v2863, %v2871
      %v2874 = vadd.f32 %v2864, %v2871
      %v2875 = vadd.f32 %v2865, %v2871
      %v2876 = vadd.f32 %v2866, %v2871
      %2877 = vst [vmem:[%s345] sm:$0xff] %v2873
      %2878 = vst [vmem:[%s345 + $0x8] sm:$0xff] %v2874
      %2879 = vst [vmem:[%s345 + $0x10] sm:$0xff] %v2875
      %vm2880 = vcmask 130048
      %2881 = vst.msk [vmem:[%s345 + $0x18] sm:$0xff] %vm2880, %v2876
      %p2882 = scmp.lt.s32.totalorder %s19, 1
      %s2883 = scalar_select %p2882, %s19, 1
      %s2884 = smul.addr %s2883, 4
      %s2885 = smul.addr %s2884, 8
      %s2886 = scalar_lea.vmem %s8, %s2885
      // Predicated region
      $region53: #{ccl_forward.9} parent=51 // pred_check
        %p2887 = pneg %p220
      $region54: #{ccl_forward.9} parent=51 // pred_check_branch
        %2889 = sbr.rel (%p2887) target = $region56
      $region55: #{ccl_forward.9} parent=51 // pred_region
        _
      $region56: #{ccl_forward.9} parent=51 // pred_fallthru
        _
    $region52: #{ccl_forward.9} parent=5 // pred_fallthru
      _
    %p2890 = scmp.le.s32.totalorder 2, %s14
    // Predicated region
    $region57: #{ccl_forward.9} parent=5 // pred_check
      %p2891 = pneg %p2890
    $region58: #{ccl_forward.9} parent=5 // pred_check_branch
      %2893 = sbr.rel (%p2891) target = $region60
    $region59: #{ccl_forward.9} parent=5 // pred_region
      %s2894 = ssub.s32 %s14, 2
      // Predicated region
      $region61: #{ccl_forward.9} parent=59 // pred_check
        %p2895 = pneg %p226
      $region62: #{ccl_forward.9} parent=59 // pred_check_branch
        %2897 = sbr.rel (%p2895) target = $region64
      $region63: #{ccl_forward.9} parent=59 // pred_region
        %p2898 = scmp.lt.s32.totalorder %s20, 1
        %s2899 = scalar_select %p2898, %s20, 1
        %s2900 = smul.addr %s2899, 4
        %s2901 = smul.addr %s2900, 8
        %s2902 = scalar_lea.vmem %s8, %s2901
      $region64: #{ccl_forward.9} parent=59 // pred_fallthru
        _
    $region60: #{ccl_forward.9} parent=5 // pred_fallthru
      _
  $region6: #{ccl_forward.9} parent=0 // loop_footer
    %s18 = sadd.s32 1, %s14
  $region7: #{ccl_forward.9} parent=0 // loop_footer_branch
    %13 = sbr.rel target = $region3
  $region8: #{ccl_forward.9} parent=0 // loop_exit
    _

</llo_original>
